<compile_context>
chip_gen: v7x
topology: tpu7x:2x2x1
jax: 0.10.0
libtpu: 0.0.40
codegen_flags: <defaults>
</compile_context>

<pallas_src>
import jax
import jax.numpy as jnp
from jax.experimental import pallas as pl
from jax.experimental.pallas import tpu as pltpu


HIDDEN = 256  # fixed by the module (fc_cooc_1: n_labels -> 256)


def nn_coocs_kernel(x_ref, w1_ref, b1_ref, w2_ref, b2_ref, out_ref):
    # ---- fc_cooc_1 (+ folded BatchNorm): in-kernel bf16 cast, f32 MXU accumulate ----
    x = x_ref[...].astype(w1_ref.dtype)
    h = jnp.dot(x, w1_ref[...], preferred_element_type=jnp.float32)
    h = jnp.maximum(h + b1_ref[...], 0.0)                       # bias + ReLU (f32, VPU)

    # ---- fc: (tile_m, hidden) @ (hidden, n_labels) + b2 ----
    logits = jnp.dot(h.astype(w2_ref.dtype), w2_ref[...],
                     preferred_element_type=jnp.float32)
    logits = logits + b2_ref[...]

    # ---- softmax over labels (eval path, last_layer=False) ----
    # (If EUP ever saturates on v6e/v7x after the traffic fixes, exp could be taken in bf16.)
    m = jnp.max(logits, axis=-1, keepdims=True)
    e = jnp.exp(logits - m)
    s = jnp.sum(e, axis=-1, keepdims=True)
    r = pl.reciprocal(s, approx=True)                           # EUP vrcp (free slot)
    r = r * (2.0 - s * r)                                       # one Newton step -> ~f32 accurate
    out_ref[...] = (e * r).astype(out_ref.dtype)


def _round_up(n, m):
    return ((n + m - 1) // m) * m


def _tpu_vmem_and_cores():
    """Return (physical VMEM bytes per TensorCore, has_two_tensorcores)."""
    kind = ""
    try:
        kind = jax.devices()[0].device_kind.lower()
    except Exception:
        pass
    two_cores = ("v7" in kind) or ("7x" in kind)

    cap = None
    try:
        info = pltpu.get_tpu_info()
        for attr in ("vmem_capacity_bytes", "vmem_bytes", "vmem_size_bytes"):
            v = getattr(info, attr, None)
            if v:
                cap = int(v)
                break
    except Exception:
        cap = None
    if cap is None:
        if two_cores:
            cap = 64 * 1024 * 1024                       # v7x: 64 MiB / TC
        elif any(t in kind for t in ("v4", "v5", "v6")):
            cap = 128 * 1024 * 1024                      # v4/v5e/v6e: 128 MiB
        else:
            cap = 64 * 1024 * 1024                       # unknown: be conservative
    if two_cores:
        cap = min(cap, 64 * 1024 * 1024)                 # guard against per-chip reporting
    return cap, two_cores


def _choose_tile_m(batch, n_labels, out_bytes, vmem_cap, two_cores):
    """Pick an MXU/VMEM-friendly batch tile, per TPU generation.

    Budget ~55% of physical VMEM for per-row traffic (double-buffered f32 x tile,
    double-buffered out tile, f32 logits/exp temporaries, bf16 casts, hidden activations)
    after subtracting the resident weight/bias buffers.
    """
    per_row = (2 * 4 * n_labels            # x tile (f32), double-buffered
               + 2 * out_bytes * n_labels  # out tile, double-buffered
               + 2 * 4 * n_labels          # logits + exp temporaries (f32)
               + 2 * n_labels              # bf16 cast of the x tile
               + 6 * HIDDEN)               # hidden activations: f32 + bf16
    weights = 2 * 2 * n_labels * HIDDEN + 4 * (n_labels + HIDDEN) + (1 << 20)
    budget = int(vmem_cap * 0.55) - weights
    cap = max(128, min(4096, (budget // per_row) // 128 * 128))

    if batch <= 256 and batch <= cap:
        if two_cores and batch > 32:
            # Split across v7x's two TensorCores; bf16 packs 16 rows per vreg.
            return int(max(16, min(cap, _round_up(pl.cdiv(batch, 2), 16))))
        return int(batch)                  # single full-dim block (valid for any batch size)

    min_steps = 4 if two_cores else 2      # >= 2 steps per core keeps the DMA pipeline full
    return int(min(cap, max(128, _round_up(pl.cdiv(batch, min_steps), 128))))


def nn_coocs_forward(x, params, *, tile_m=None, matmul_dtype=jnp.bfloat16,
                     out_dtype=jnp.float32):
    """x: (batch, n_labels) float32.  params: dict of transposed weights / BN stats.

    out_dtype=jnp.bfloat16 halves the dominant output writeback traffic of this HBM-bound
    kernel; the default float32 preserves the module's output dtype.
    """
    B, n_labels = x.shape
    hidden = params["w1_t"].shape[1]

    # ---- fold BatchNorm1d (eval mode, running stats) into fc_cooc_1 (exact affine fold) ----
    eps = 1e-5
    scale = params["gamma"] * jax.lax.rsqrt(params["running_var"] + eps)            # (1, hidden)
    w1_eff = (params["w1_t"] * scale).astype(matmul_dtype)                           # (n_labels, hidden)
    b1_eff = ((params["b1"] - params["running_mean"]) * scale
              + params["beta"]).astype(jnp.float32)                                  # (1, hidden)
    w2 = params["w2_t"].astype(matmul_dtype)                                         # (hidden, n_labels)
    b2 = params["b2"].astype(jnp.float32)                                            # (1, n_labels)

    vmem_cap, two_cores = _tpu_vmem_and_cores()
    out_bytes = jnp.dtype(out_dtype).itemsize
    if tile_m is None:
        tile_m = _choose_tile_m(B, n_labels, out_bytes, vmem_cap, two_cores)
    tile_m = int(max(1, min(tile_m, B)))

    grid = (pl.cdiv(B, tile_m),)
    vmem_limit = int(min(max(vmem_cap * 3 // 4, 32 * 1024 * 1024), 100 * 1024 * 1024))

    def _run(single_buffer_weights):
        if single_buffer_weights:
            # Grid-invariant blocks are fetched once; drop the dead second pipeline buffer.
            const_spec = lambda shape: pl.BlockSpec(shape, lambda i: (0, 0),
                                                    pipeline_mode=pl.Buffered(1))
        else:
            const_spec = lambda shape: pl.BlockSpec(shape, lambda i: (0, 0))
        return pl.pallas_call(
            nn_coocs_kernel,
            out_shape=jax.ShapeDtypeStruct((B, n_labels), out_dtype),
            grid_spec=pltpu.PrefetchScalarGridSpec(
                num_scalar_prefetch=0,
                grid=grid,
                in_specs=[
                    pl.BlockSpec((tile_m, n_labels), lambda i: (i, 0)),   # x tile (f32)
                    const_spec((n_labels, hidden)),                       # w1 (BN folded, bf16)
                    const_spec((1, hidden)),                              # b1 (BN folded, f32)
                    const_spec((hidden, n_labels)),                       # w2 (bf16)
                    const_spec((1, n_labels)),                            # b2 (f32)
                ],
                out_specs=pl.BlockSpec((tile_m, n_labels), lambda i: (i, 0)),
            ),
            compiler_params=pltpu.CompilerParams(
                dimension_semantics=("parallel",),   # batch tiles shard across v7x's 2 TCs
                vmem_limit_bytes=vmem_limit,
            ),
        )(x, w1_eff, b1_eff, w2, b2)

    try:
        return _run(single_buffer_weights=True)
    except Exception:
        # Fallback if this JAX/Mosaic rejects single-buffered pipeline_mode; default
        # buffering only costs a few MiB of extra resident VMEM for the weights.
        return _run(single_buffer_weights=False)


def init_params(key, n_labels, hidden=HIDDEN):
    """Deterministic synthetic parameters (PyTorch-Linear-style uniform init)."""
    k1, k2, k3, k4 = jax.random.split(key, 4)
    bound1 = 1.0 / jnp.sqrt(n_labels)
    bound2 = 1.0 / jnp.sqrt(hidden)
    w1_t = jax.random.uniform(k1, (n_labels, hidden), jnp.float32, -bound1, bound1)
    b1 = jax.random.uniform(k2, (1, hidden), jnp.float32, -bound1, bound1)
    w2_t = jax.random.uniform(k3, (hidden, n_labels), jnp.float32, -bound2, bound2)
    b2 = jax.random.uniform(k4, (1, n_labels), jnp.float32, -bound2, bound2)
    # Fresh BatchNorm1d: gamma=1, beta=0, running_mean=0, running_var=1
    return dict(
        w1_t=w1_t, b1=b1,
        gamma=jnp.ones((1, hidden), jnp.float32),
        beta=jnp.zeros((1, hidden), jnp.float32),
        running_mean=jnp.zeros((1, hidden), jnp.float32),
        running_var=jnp.ones((1, hidden), jnp.float32),
        w2_t=w2_t, b2=b2,
    )


def reference_forward_f32(x, p):
    """Pure-f32 reference of the module's eval forward (BN in eval mode)."""
    h = x @ p["w1_t"] + p["b1"]
    h = (h - p["running_mean"]) * jax.lax.rsqrt(p["running_var"] + 1e-5) * p["gamma"] + p["beta"]
    h = jnp.maximum(h, 0.0)
    logits = h @ p["w2_t"] + p["b2"]
    return jax.nn.softmax(logits, axis=-1)


def reference_forward_matched(x, p, matmul_dtype=jnp.bfloat16):
    """Same folded-BN / bf16-matmul math as the kernel, in plain JAX."""
    eps = 1e-5
    scale = p["gamma"] * jax.lax.rsqrt(p["running_var"] + eps)
    w1_eff = (p["w1_t"] * scale).astype(matmul_dtype)
    b1_eff = (p["b1"] - p["running_mean"]) * scale + p["beta"]
    h = jnp.dot(x.astype(matmul_dtype), w1_eff, preferred_element_type=jnp.float32) + b1_eff
    h = jnp.maximum(h, 0.0)
    logits = jnp.dot(h.astype(matmul_dtype), p["w2_t"].astype(matmul_dtype),
                     preferred_element_type=jnp.float32) + p["b2"]
    return jax.nn.softmax(logits, axis=-1)


if __name__ == "__main__":
    # Small shapes consistent with the module: hidden is fixed at 256 by the module;
    # n_labels is a ctor arg (512 here; the production 3336 also works — full-dim label
    # blocks keep the softmax exact, at the cost of a masked tail store).
    batch, n_labels = 128, 512
    key = jax.random.PRNGKey(0)
    kx, kp = jax.random.split(key)
    x = jax.random.normal(kx, (batch, n_labels), jnp.float32)
    params = init_params(kp, n_labels, hidden=HIDDEN)

    out = jax.block_until_ready(nn_coocs_forward(x, params))
    assert out.shape == (batch, n_labels)
    assert out.dtype == jnp.float32

    # softmax rows sum to 1
    assert jnp.allclose(jnp.sum(out, axis=-1), 1.0, atol=1e-4)

    # tight check vs. a plain-JAX reference using identical bf16-matmul / folded-BN math
    ref_matched = reference_forward_matched(x, params)
    assert jnp.allclose(out, ref_matched, atol=5e-5, rtol=1e-3), "mismatch vs matched-precision reference"

    # sanity check vs. the original f32 module semantics (bf16 matmuls -> looser tolerance)
    ref_f32 = reference_forward_f32(x, params)
    assert jnp.allclose(out, ref_f32, atol=2e-3, rtol=5e-2), "mismatch vs f32 reference"

    # exercise the cdiv / partial-last-tile path (no wrapper-side batch padding anymore)
    x_odd = x[:100]
    out_odd = jax.block_until_ready(nn_coocs_forward(x_odd, params, tile_m=64))
    assert out_odd.shape == (100, n_labels)
    assert jnp.allclose(out_odd, ref_matched[:100], atol=5e-5, rtol=1e-3), "partial-tile mismatch"

    print("KERNEL_OK")
</pallas_src>

<mosaic_0001>
module attributes {stable_mosaic.version = 11 : i64} {
  func.func @nn_coocs_kernel(%arg0: i32, %arg1: memref<128x512xf32, #tpu.memory_space<vmem>>, %arg2: memref<512x256xbf16, #tpu.memory_space<vmem>>, %arg3: memref<1x256xf32, #tpu.memory_space<vmem>>, %arg4: memref<256x512xbf16, #tpu.memory_space<vmem>>, %arg5: memref<1x512xf32, #tpu.memory_space<vmem>>, %arg6: memref<128x512xf32, #tpu.memory_space<vmem>>) attributes {dimension_semantics = [#tpu.dimension_semantics<parallel>], iteration_bounds = array<i64: 1>, scalar_prefetch = 0 : i64, scratch_operands = 0 : i64, tpu.core_type = #tpu.core_type<tc>, window_params = [{transform_indices = @transform_0, window_bounds = array<i64: 128, 512>}, {pipeline_mode = #tpu.pipeline_mode<synchronous>, transform_indices = @transform_1, window_bounds = array<i64: 512, 256>}, {pipeline_mode = #tpu.pipeline_mode<synchronous>, transform_indices = @transform_2, window_bounds = array<i64: 1, 256>}, {pipeline_mode = #tpu.pipeline_mode<synchronous>, transform_indices = @transform_3, window_bounds = array<i64: 256, 512>}, {pipeline_mode = #tpu.pipeline_mode<synchronous>, transform_indices = @transform_4, window_bounds = array<i64: 1, 512>}, {transform_indices = @transform_5, window_bounds = array<i64: 128, 512>}]} {
    %c0 = arith.constant 0 : index
    %c0_0 = arith.constant 0 : index
    %0 = vector.load %arg1[%c0, %c0_0] : memref<128x512xf32, #tpu.memory_space<vmem>>, vector<128x512xf32>
    %1 = arith.truncf %0 : vector<128x512xf32> to vector<128x512xbf16>
    %c0_1 = arith.constant 0 : index
    %c0_2 = arith.constant 0 : index
    %2 = vector.load %arg2[%c0_1, %c0_2] : memref<512x256xbf16, #tpu.memory_space<vmem>>, vector<512x256xbf16>
    %cst = arith.constant dense<0.000000e+00> : vector<128x256xf32>
    %3 = tpu.matmul %1, %2, %cst {dimension_numbers = #tpu.dot_dimension_numbers<[1], [0], [0], [1], [0, 0, 1, 1], [], []>} : vector<128x512xbf16>, vector<512x256xbf16>, vector<128x256xf32> -> vector<128x256xf32>
    %c0_3 = arith.constant 0 : index
    %c0_4 = arith.constant 0 : index
    %4 = vector.load %arg3[%c0_3, %c0_4] : memref<1x256xf32, #tpu.memory_space<vmem>>, vector<1x256xf32>
    %5 = vector.broadcast %4 : vector<1x256xf32> to vector<128x256xf32>
    %6 = arith.addf %3, %5 : vector<128x256xf32>
    %cst_5 = arith.constant 0.000000e+00 : f32
    %7 = vector.broadcast %cst_5 : f32 to vector<128x256xf32>
    %8 = arith.maximumf %6, %7 : vector<128x256xf32>
    %9 = arith.truncf %8 : vector<128x256xf32> to vector<128x256xbf16>
    %c0_6 = arith.constant 0 : index
    %c0_7 = arith.constant 0 : index
    %10 = vector.load %arg4[%c0_6, %c0_7] : memref<256x512xbf16, #tpu.memory_space<vmem>>, vector<256x512xbf16>
    %cst_8 = arith.constant dense<0.000000e+00> : vector<128x512xf32>
    %11 = tpu.matmul %9, %10, %cst_8 {dimension_numbers = #tpu.dot_dimension_numbers<[1], [0], [0], [1], [0, 0, 1, 1], [], []>} : vector<128x256xbf16>, vector<256x512xbf16>, vector<128x512xf32> -> vector<128x512xf32>
    %c0_9 = arith.constant 0 : index
    %c0_10 = arith.constant 0 : index
    %12 = vector.load %arg5[%c0_9, %c0_10] : memref<1x512xf32, #tpu.memory_space<vmem>>, vector<1x512xf32>
    %13 = vector.broadcast %12 : vector<1x512xf32> to vector<128x512xf32>
    %14 = arith.addf %11, %13 : vector<128x512xf32>
    %cst_11 = arith.constant dense<0xFF800000> : vector<128xf32>
    %15 = vector.multi_reduction <maximumf>, %14, %cst_11 [1] : vector<128x512xf32> to vector<128xf32>
    %16 = vector.shape_cast %15 : vector<128xf32> to vector<128x1xf32>
    %17 = vector.broadcast %16 : vector<128x1xf32> to vector<128x512xf32>
    %18 = arith.subf %14, %17 : vector<128x512xf32>
    %19 = math.exp %18 : vector<128x512xf32>
    %cst_12 = arith.constant dense<0.000000e+00> : vector<128xf32>
    %20 = vector.multi_reduction <add>, %19, %cst_12 [1] : vector<128x512xf32> to vector<128xf32>
    %21 = vector.shape_cast %20 : vector<128xf32> to vector<128x1xf32>
    %22 = tpu.reciprocal %21 {approx = true} : vector<128x1xf32> -> vector<128x1xf32>
    %23 = arith.mulf %21, %22 : vector<128x1xf32>
    %cst_13 = arith.constant 2.000000e+00 : f32
    %24 = vector.broadcast %cst_13 : f32 to vector<128x1xf32>
    %25 = arith.subf %24, %23 : vector<128x1xf32>
    %26 = arith.mulf %22, %25 : vector<128x1xf32>
    %27 = vector.broadcast %26 : vector<128x1xf32> to vector<128x512xf32>
    %28 = arith.mulf %19, %27 : vector<128x512xf32>
    %c0_14 = arith.constant 0 : index
    %c0_15 = arith.constant 0 : index
    %29 = vector.load %arg6[%c0_14, %c0_15] : memref<128x512xf32, #tpu.memory_space<vmem>>, vector<128x512xf32>
    tpu.vector_store %arg6[%c0_14, %c0_15], %28 {strides = array<i32>} : memref<128x512xf32, #tpu.memory_space<vmem>>, vector<128x512xf32>,
    return
  }
  func.func @transform_0(%arg0: i32) -> (i32, i32) {
    %c0_i32 = arith.constant 0 : i32
    %c0_i32_0 = arith.constant 0 : i32
    return %arg0, %c0_i32 : i32, i32
  }
  func.func @transform_1(%arg0: i32) -> (i32, i32) {
    %c0_i32 = arith.constant 0 : i32
    %c0_i32_0 = arith.constant 0 : i32
    %c0_i32_1 = arith.constant 0 : i32
    return %c0_i32, %c0_i32_0 : i32, i32
  }
  func.func @transform_2(%arg0: i32) -> (i32, i32) {
    %c0_i32 = arith.constant 0 : i32
    %c0_i32_0 = arith.constant 0 : i32
    %c0_i32_1 = arith.constant 0 : i32
    return %c0_i32, %c0_i32_0 : i32, i32
  }
  func.func @transform_3(%arg0: i32) -> (i32, i32) {
    %c0_i32 = arith.constant 0 : i32
    %c0_i32_0 = arith.constant 0 : i32
    %c0_i32_1 = arith.constant 0 : i32
    return %c0_i32, %c0_i32_0 : i32, i32
  }
  func.func @transform_4(%arg0: i32) -> (i32, i32) {
    %c0_i32 = arith.constant 0 : i32
    %c0_i32_0 = arith.constant 0 : i32
    %c0_i32_1 = arith.constant 0 : i32
    return %c0_i32, %c0_i32_0 : i32, i32
  }
  func.func @transform_5(%arg0: i32) -> (i32, i32) {
    %c0_i32 = arith.constant 0 : i32
    %c0_i32_0 = arith.constant 0 : i32
    return %arg0, %c0_i32 : i32, i32
  }
}

module attributes {stable_mosaic.version = 11 : i64} {
  func.func @nn_coocs_kernel(%arg0: i32, %arg1: memref<128x512xf32, #tpu.memory_space<vmem>>, %arg2: memref<512x256xbf16, #tpu.memory_space<vmem>>, %arg3: memref<1x256xf32, #tpu.memory_space<vmem>>, %arg4: memref<256x512xbf16, #tpu.memory_space<vmem>>, %arg5: memref<1x512xf32, #tpu.memory_space<vmem>>, %arg6: memref<128x512xf32, #tpu.memory_space<vmem>>) attributes {dimension_semantics = [#tpu.dimension_semantics<parallel>], iteration_bounds = array<i64: 1>, scalar_prefetch = 0 : i64, scratch_operands = 0 : i64, tpu.core_type = #tpu.core_type<tc>, window_params = [{transform_indices = @transform_0, window_bounds = array<i64: 128, 512>}, {pipeline_mode = #tpu.pipeline_mode<synchronous>, transform_indices = @transform_1, window_bounds = array<i64: 512, 256>}, {pipeline_mode = #tpu.pipeline_mode<synchronous>, transform_indices = @transform_2, window_bounds = array<i64: 1, 256>}, {pipeline_mode = #tpu.pipeline_mode<synchronous>, transform_indices = @transform_3, window_bounds = array<i64: 256, 512>}, {pipeline_mode = #tpu.pipeline_mode<synchronous>, transform_indices = @transform_4, window_bounds = array<i64: 1, 512>}, {transform_indices = @transform_5, window_bounds = array<i64: 128, 512>}]} {
    %c0 = arith.constant 0 : index
    %c0_0 = arith.constant 0 : index
    %0 = vector.load %arg1[%c0, %c0_0] : memref<128x512xf32, #tpu.memory_space<vmem>>, vector<128x512xf32>
    %1 = arith.truncf %0 : vector<128x512xf32> to vector<128x512xbf16>
    %c0_1 = arith.constant 0 : index
    %c0_2 = arith.constant 0 : index
    %2 = vector.load %arg2[%c0_1, %c0_2] : memref<512x256xbf16, #tpu.memory_space<vmem>>, vector<512x256xbf16>
    %cst = arith.constant dense<0.000000e+00> : vector<128x256xf32>
    %3 = tpu.matmul %1, %2, %cst {dimension_numbers = #tpu.dot_dimension_numbers<[1], [0], [0], [1], [0, 0, 1, 1], [], []>} : vector<128x512xbf16>, vector<512x256xbf16>, vector<128x256xf32> -> vector<128x256xf32>
    %c0_3 = arith.constant 0 : index
    %c0_4 = arith.constant 0 : index
    %4 = vector.load %arg3[%c0_3, %c0_4] : memref<1x256xf32, #tpu.memory_space<vmem>>, vector<1x256xf32>
    %5 = vector.broadcast %4 : vector<1x256xf32> to vector<128x256xf32>
    %6 = arith.addf %3, %5 : vector<128x256xf32>
    %cst_5 = arith.constant 0.000000e+00 : f32
    %7 = vector.broadcast %cst_5 : f32 to vector<128x256xf32>
    %8 = arith.maximumf %6, %7 : vector<128x256xf32>
    %9 = arith.truncf %8 : vector<128x256xf32> to vector<128x256xbf16>
    %c0_6 = arith.constant 0 : index
    %c0_7 = arith.constant 0 : index
    %10 = vector.load %arg4[%c0_6, %c0_7] : memref<256x512xbf16, #tpu.memory_space<vmem>>, vector<256x512xbf16>
    %cst_8 = arith.constant dense<0.000000e+00> : vector<128x512xf32>
    %11 = tpu.matmul %9, %10, %cst_8 {dimension_numbers = #tpu.dot_dimension_numbers<[1], [0], [0], [1], [0, 0, 1, 1], [], []>} : vector<128x256xbf16>, vector<256x512xbf16>, vector<128x512xf32> -> vector<128x512xf32>
    %c0_9 = arith.constant 0 : index
    %c0_10 = arith.constant 0 : index
    %12 = vector.load %arg5[%c0_9, %c0_10] : memref<1x512xf32, #tpu.memory_space<vmem>>, vector<1x512xf32>
    %13 = vector.broadcast %12 : vector<1x512xf32> to vector<128x512xf32>
    %14 = arith.addf %11, %13 : vector<128x512xf32>
    %cst_11 = arith.constant dense<0xFF800000> : vector<128xf32>
    %15 = vector.multi_reduction <maximumf>, %14, %cst_11 [1] : vector<128x512xf32> to vector<128xf32>
    %16 = vector.shape_cast %15 : vector<128xf32> to vector<128x1xf32>
    %17 = vector.broadcast %16 : vector<128x1xf32> to vector<128x512xf32>
    %18 = arith.subf %14, %17 : vector<128x512xf32>
    %19 = math.exp %18 : vector<128x512xf32>
    %cst_12 = arith.constant dense<0.000000e+00> : vector<128xf32>
    %20 = vector.multi_reduction <add>, %19, %cst_12 [1] : vector<128x512xf32> to vector<128xf32>
    %21 = vector.shape_cast %20 : vector<128xf32> to vector<128x1xf32>
    %22 = tpu.reciprocal %21 {approx = true} : vector<128x1xf32> -> vector<128x1xf32>
    %23 = arith.mulf %21, %22 : vector<128x1xf32>
    %cst_13 = arith.constant 2.000000e+00 : f32
    %24 = vector.broadcast %cst_13 : f32 to vector<128x1xf32>
    %25 = arith.subf %24, %23 : vector<128x1xf32>
    %26 = arith.mulf %22, %25 : vector<128x1xf32>
    %27 = vector.broadcast %26 : vector<128x1xf32> to vector<128x512xf32>
    %28 = arith.mulf %19, %27 : vector<128x512xf32>
    %c0_14 = arith.constant 0 : index
    %c0_15 = arith.constant 0 : index
    %29 = vector.load %arg6[%c0_14, %c0_15] : memref<128x512xf32, #tpu.memory_space<vmem>>, vector<128x512xf32>
    tpu.vector_store %arg6[%c0_14, %c0_15], %28 {strides = array<i32>} : memref<128x512xf32, #tpu.memory_space<vmem>>, vector<128x512xf32>,
    return
  }
  func.func @transform_0(%arg0: i32) -> (i32, i32) {
    %c0_i32 = arith.constant 0 : i32
    %c0_i32_0 = arith.constant 0 : i32
    return %arg0, %c0_i32 : i32, i32
  }
  func.func @transform_1(%arg0: i32) -> (i32, i32) {
    %c0_i32 = arith.constant 0 : i32
    %c0_i32_0 = arith.constant 0 : i32
    %c0_i32_1 = arith.constant 0 : i32
    return %c0_i32, %c0_i32_0 : i32, i32
  }
  func.func @transform_2(%arg0: i32) -> (i32, i32) {
    %c0_i32 = arith.constant 0 : i32
    %c0_i32_0 = arith.constant 0 : i32
    %c0_i32_1 = arith.constant 0 : i32
    return %c0_i32, %c0_i32_0 : i32, i32
  }
  func.func @transform_3(%arg0: i32) -> (i32, i32) {
    %c0_i32 = arith.constant 0 : i32
    %c0_i32_0 = arith.constant 0 : i32
    %c0_i32_1 = arith.constant 0 : i32
    return %c0_i32, %c0_i32_0 : i32, i32
  }
  func.func @transform_4(%arg0: i32) -> (i32, i32) {
    %c0_i32 = arith.constant 0 : i32
    %c0_i32_0 = arith.constant 0 : i32
    %c0_i32_1 = arith.constant 0 : i32
    return %c0_i32, %c0_i32_0 : i32, i32
  }
  func.func @transform_5(%arg0: i32) -> (i32, i32) {
    %c0_i32 = arith.constant 0 : i32
    %c0_i32_0 = arith.constant 0 : i32
    return %arg0, %c0_i32 : i32, i32
  }
}

</mosaic_0001>

<llo_original>
// kernel: tpu_custom_call.1
$region0: #{tpu_custom_call.1}
  #allocation0 [shape = 'u32[]', space=smem, size = 0x4, offset = 0x4, fixed_abs, tag = 'smem constant byte address 0x4 - core index']
  #allocation1 [shape = 'u32[144,128]{1,0:T(1,128)}', space=vmem, size = 0x12000, scoped, tag = 'internal scratch']
  %s0 = inlined_call_operand.hbm [shape: f32[128,512], index: 0, kind: input, shape index: {}]
  %s1 = inlined_call_operand.hbm [shape: bf16[512,256], index: 1, kind: input, shape index: {}]
  %s2 = inlined_call_operand.vmem [shape: f32[1,256], index: 2, kind: input, shape index: {}]
  %s3 = inlined_call_operand.hbm [shape: bf16[256,512], index: 3, kind: input, shape index: {}]
  %s4 = inlined_call_operand.vmem [shape: f32[1,512], index: 4, kind: input, shape index: {}]
  %s5 = inlined_call_operand.hbm [shape: f32[128,512], index: 5, kind: output, shape index: {}]
  %s6 = sld [smem:[#allocation0]]
  $region42: #{tpu_custom_call.1} parent=0
    _
  %s8 = ssub.s32 1, %s6
  %s9 = scalar_select 0, %s8, %s6
  $region1: #{tpu_custom_call.1} parent=0
    #allocation2 [shape = 'u8[262144]{0}', space=vmem, size = 0x40000, scoped, tag = 'input window, operand 0, single buffered']
    #allocation3 [shape = 's32[1]{0}', space=sflag, size = 0x4, scoped, tag = 'scoped memory for tpu_custom_call.1']
    #allocation4 [shape = 's32[1]{0}', space=sflag, size = 0x4, scoped, tag = 'scoped memory for tpu_custom_call.1']
    #allocation5 [shape = 'u8[262144]{0}', space=vmem, size = 0x40000, scoped, tag = 'input window, operand 1, single buffered']
    #allocation6 [shape = 's32[1]{0}', space=sflag, size = 0x4, scoped, tag = 'scoped memory for tpu_custom_call.1']
    #allocation7 [shape = 'u8[262144]{0}', space=vmem, size = 0x40000, scoped, tag = 'input window, operand 3, single buffered']
    #allocation8 [shape = 'u8[262144]{0}', space=vmem, size = 0x40000, scoped, tag = 'output window, operand 0, single buffered']
    %10 = vsyncpa [#allocation3], 0
    %11 = vsyncpa [#allocation6], 0
    %12 = vsyncpa [#allocation4], 0
    // Predicated region
    $region2: #{tpu_custom_call.1} parent=1 // pred_check
      _
    $region3: #{tpu_custom_call.1} parent=1 // pred_check_branch
      %14 = sbr.rel (0) target = $region5
    $region4: #{tpu_custom_call.1} parent=1 // pred_region
      %s16 = ssub.s32 8192, 8192
      %17 = vsyncadd [#allocation3], %s16
      %s18 = sshll.u32 [#allocation2], 4
      %s19 = int_to_ptr.vmem [resolvable:$true] %s18
      %24 = dma.hbm_to_vmem [thread:$0]  %s0, 8192, %s19, [#allocation3], 512, 512, 32
    $region5: #{tpu_custom_call.1} parent=1 // pred_fallthru
      _
    // Predicated region
    $region6: #{tpu_custom_call.1} parent=1 // pred_check
      _
    $region7: #{tpu_custom_call.1} parent=1 // pred_check_branch
      %26 = sbr.rel (0) target = $region9
    $region8: #{tpu_custom_call.1} parent=1 // pred_region
      %s28 = ssub.s32 8192, 8192
      %29 = vsyncadd [#allocation6], %s28
      %s30 = sshll.u32 [#allocation5], 4
      %s31 = int_to_ptr.vmem [resolvable:$true] %s30
      %36 = dma.hbm_to_vmem [thread:$0]  %s1, 8192, %s31, [#allocation6], 128, 128, 8
    $region9: #{tpu_custom_call.1} parent=1 // pred_fallthru
      _
    // Predicated region
    $region10: #{tpu_custom_call.1} parent=1 // pred_check
      _
    $region11: #{tpu_custom_call.1} parent=1 // pred_check_branch
      %38 = sbr.rel (0) target = $region13
    $region12: #{tpu_custom_call.1} parent=1 // pred_region
      _
    $region13: #{tpu_custom_call.1} parent=1 // pred_fallthru
      _
    // Predicated region
    $region14: #{tpu_custom_call.1} parent=1 // pred_check
      _
    $region15: #{tpu_custom_call.1} parent=1 // pred_check_branch
      %40 = sbr.rel (0) target = $region17
    $region16: #{tpu_custom_call.1} parent=1 // pred_region
      %s42 = ssub.s32 8192, 8192
      %43 = vsyncadd [#allocation6], %s42
      %s44 = sshll.u32 [#allocation7], 4
      %s45 = int_to_ptr.vmem [resolvable:$true] %s44
      %50 = dma.hbm_to_vmem [thread:$0]  %s3, 8192, %s45, [#allocation6], 256, 256, 16
    $region17: #{tpu_custom_call.1} parent=1 // pred_fallthru
      _
    // Predicated region
    $region18: #{tpu_custom_call.1} parent=1 // pred_check
      _
    $region19: #{tpu_custom_call.1} parent=1 // pred_check_branch
      %52 = sbr.rel (0) target = $region21
    $region20: #{tpu_custom_call.1} parent=1 // pred_region
      _
    $region21: #{tpu_custom_call.1} parent=1 // pred_fallthru
      _
    // Predicated region
    $region22: #{tpu_custom_call.1} parent=1 // pred_check
      _
    $region23: #{tpu_custom_call.1} parent=1 // pred_check_branch
      %54 = sbr.rel (0) target = $region25
    $region24: #{tpu_custom_call.1} parent=1 // pred_region
      %55 = dma.done [#allocation3], 8192
    $region25: #{tpu_custom_call.1} parent=1 // pred_fallthru
      _
    // Predicated region
    $region26: #{tpu_custom_call.1} parent=1 // pred_check
      _
    $region27: #{tpu_custom_call.1} parent=1 // pred_check_branch
      %57 = sbr.rel (0) target = $region29
    $region28: #{tpu_custom_call.1} parent=1 // pred_region
      %58 = dma.done [#allocation6], 8192
    $region29: #{tpu_custom_call.1} parent=1 // pred_fallthru
      _
    // Predicated region
    $region30: #{tpu_custom_call.1} parent=1 // pred_check
      _
    $region31: #{tpu_custom_call.1} parent=1 // pred_check_branch
      %60 = sbr.rel (0) target = $region33
    $region32: #{tpu_custom_call.1} parent=1 // pred_region
      %61 = dma.done [#allocation6], 8192
    $region33: #{tpu_custom_call.1} parent=1 // pred_fallthru
      _
    %v62 = vld [vmem:[#allocation2] sm:$0xff]
    %v63 = vld [vmem:[#allocation2 + $0x8] sm:$0xff]
    %v64 = vld [vmem:[#allocation2 + $0x10] sm:$0xff]
    %v65 = vld [vmem:[#allocation2 + $0x18] sm:$0xff]
    %v66 = vld [vmem:[#allocation2 + $0x20] sm:$0xff]
    %v67 = vld [vmem:[#allocation2 + $0x28] sm:$0xff]
    %v68 = vld [vmem:[#allocation2 + $0x30] sm:$0xff]
    %v69 = vld [vmem:[#allocation2 + $0x38] sm:$0xff]
    %v70 = vld [vmem:[#allocation2 + $0x40] sm:$0xff]
    %v71 = vld [vmem:[#allocation2 + $0x48] sm:$0xff]
    %v72 = vld [vmem:[#allocation2 + $0x50] sm:$0xff]
    %v73 = vld [vmem:[#allocation2 + $0x58] sm:$0xff]
    %v74 = vld [vmem:[#allocation2 + $0x60] sm:$0xff]
    %v75 = vld [vmem:[#allocation2 + $0x68] sm:$0xff]
    %v76 = vld [vmem:[#allocation2 + $0x70] sm:$0xff]
    %v77 = vld [vmem:[#allocation2 + $0x78] sm:$0xff]
    %v78 = vld [vmem:[#allocation2 + $0x80] sm:$0xff]
    %v79 = vld [vmem:[#allocation2 + $0x88] sm:$0xff]
    %v80 = vld [vmem:[#allocation2 + $0x90] sm:$0xff]
    %v81 = vld [vmem:[#allocation2 + $0x98] sm:$0xff]
    %v82 = vld [vmem:[#allocation2 + $0xa0] sm:$0xff]
    %v83 = vld [vmem:[#allocation2 + $0xa8] sm:$0xff]
    %v84 = vld [vmem:[#allocation2 + $0xb0] sm:$0xff]
    %v85 = vld [vmem:[#allocation2 + $0xb8] sm:$0xff]
    %v86 = vld [vmem:[#allocation2 + $0xc0] sm:$0xff]
    %v87 = vld [vmem:[#allocation2 + $0xc8] sm:$0xff]
    %v88 = vld [vmem:[#allocation2 + $0xd0] sm:$0xff]
    %v89 = vld [vmem:[#allocation2 + $0xd8] sm:$0xff]
    %v90 = vld [vmem:[#allocation2 + $0xe0] sm:$0xff]
    %v91 = vld [vmem:[#allocation2 + $0xe8] sm:$0xff]
    %v92 = vld [vmem:[#allocation2 + $0xf0] sm:$0xff]
    %v93 = vld [vmem:[#allocation2 + $0xf8] sm:$0xff]
    %v94 = vld [vmem:[#allocation2 + $0x100] sm:$0xff]
    %v95 = vld [vmem:[#allocation2 + $0x108] sm:$0xff]
    %v96 = vld [vmem:[#allocation2 + $0x110] sm:$0xff]
    %v97 = vld [vmem:[#allocation2 + $0x118] sm:$0xff]
    %v98 = vld [vmem:[#allocation2 + $0x120] sm:$0xff]
    %v99 = vld [vmem:[#allocation2 + $0x128] sm:$0xff]
    %v100 = vld [vmem:[#allocation2 + $0x130] sm:$0xff]
    %v101 = vld [vmem:[#allocation2 + $0x138] sm:$0xff]
    %v102 = vld [vmem:[#allocation2 + $0x140] sm:$0xff]
    %v103 = vld [vmem:[#allocation2 + $0x148] sm:$0xff]
    %v104 = vld [vmem:[#allocation2 + $0x150] sm:$0xff]
    %v105 = vld [vmem:[#allocation2 + $0x158] sm:$0xff]
    %v106 = vld [vmem:[#allocation2 + $0x160] sm:$0xff]
    %v107 = vld [vmem:[#allocation2 + $0x168] sm:$0xff]
    %v108 = vld [vmem:[#allocation2 + $0x170] sm:$0xff]
    %v109 = vld [vmem:[#allocation2 + $0x178] sm:$0xff]
    %v110 = vld [vmem:[#allocation2 + $0x180] sm:$0xff]
    %v111 = vld [vmem:[#allocation2 + $0x188] sm:$0xff]
    %v112 = vld [vmem:[#allocation2 + $0x190] sm:$0xff]
    %v113 = vld [vmem:[#allocation2 + $0x198] sm:$0xff]
    %v114 = vld [vmem:[#allocation2 + $0x1a0] sm:$0xff]
    %v115 = vld [vmem:[#allocation2 + $0x1a8] sm:$0xff]
    %v116 = vld [vmem:[#allocation2 + $0x1b0] sm:$0xff]
    %v117 = vld [vmem:[#allocation2 + $0x1b8] sm:$0xff]
    %v118 = vld [vmem:[#allocation2 + $0x1c0] sm:$0xff]
    %v119 = vld [vmem:[#allocation2 + $0x1c8] sm:$0xff]
    %v120 = vld [vmem:[#allocation2 + $0x1d0] sm:$0xff]
    %v121 = vld [vmem:[#allocation2 + $0x1d8] sm:$0xff]
    %v122 = vld [vmem:[#allocation2 + $0x1e0] sm:$0xff]
    %v123 = vld [vmem:[#allocation2 + $0x1e8] sm:$0xff]
    %v124 = vld [vmem:[#allocation2 + $0x1f0] sm:$0xff]
    %v125 = vld [vmem:[#allocation2 + $0x1f8] sm:$0xff]
    %v126 = vpack.c.bf16 %v66, %v62
    %v127 = vpack.c.bf16 %v67, %v63
    %v128 = vpack.c.bf16 %v68, %v64
    %v129 = vpack.c.bf16 %v69, %v65
    %v130 = vpack.c.bf16 %v74, %v70
    %v131 = vpack.c.bf16 %v75, %v71
    %v132 = vpack.c.bf16 %v76, %v72
    %v133 = vpack.c.bf16 %v77, %v73
    %v134 = vpack.c.bf16 %v82, %v78
    %v135 = vpack.c.bf16 %v83, %v79
    %v136 = vpack.c.bf16 %v84, %v80
    %v137 = vpack.c.bf16 %v85, %v81
    %v138 = vpack.c.bf16 %v90, %v86
    %v139 = vpack.c.bf16 %v91, %v87
    %v140 = vpack.c.bf16 %v92, %v88
    %v141 = vpack.c.bf16 %v93, %v89
    %v142 = vpack.c.bf16 %v98, %v94
    %v143 = vpack.c.bf16 %v99, %v95
    %v144 = vpack.c.bf16 %v100, %v96
    %v145 = vpack.c.bf16 %v101, %v97
    %v146 = vpack.c.bf16 %v106, %v102
    %v147 = vpack.c.bf16 %v107, %v103
    %v148 = vpack.c.bf16 %v108, %v104
    %v149 = vpack.c.bf16 %v109, %v105
    %v150 = vpack.c.bf16 %v114, %v110
    %v151 = vpack.c.bf16 %v115, %v111
    %v152 = vpack.c.bf16 %v116, %v112
    %v153 = vpack.c.bf16 %v117, %v113
    %v154 = vpack.c.bf16 %v122, %v118
    %v155 = vpack.c.bf16 %v123, %v119
    %v156 = vpack.c.bf16 %v124, %v120
    %v157 = vpack.c.bf16 %v125, %v121
    %v158 = vld [vmem:[#allocation5] sm:$0xff]
    %v159 = vld [vmem:[#allocation5 + $0x8] sm:$0xff]
    %v160 = vld [vmem:[#allocation5 + $0x10] sm:$0xff]
    %v161 = vld [vmem:[#allocation5 + $0x18] sm:$0xff]
    %v162 = vld [vmem:[#allocation5 + $0x20] sm:$0xff]
    %v163 = vld [vmem:[#allocation5 + $0x28] sm:$0xff]
    %v164 = vld [vmem:[#allocation5 + $0x30] sm:$0xff]
    %v165 = vld [vmem:[#allocation5 + $0x38] sm:$0xff]
    %v166 = vld [vmem:[#allocation5 + $0x40] sm:$0xff]
    %v167 = vld [vmem:[#allocation5 + $0x48] sm:$0xff]
    %v168 = vld [vmem:[#allocation5 + $0x50] sm:$0xff]
    %v169 = vld [vmem:[#allocation5 + $0x58] sm:$0xff]
    %v170 = vld [vmem:[#allocation5 + $0x60] sm:$0xff]
    %v171 = vld [vmem:[#allocation5 + $0x68] sm:$0xff]
    %v172 = vld [vmem:[#allocation5 + $0x70] sm:$0xff]
    %v173 = vld [vmem:[#allocation5 + $0x78] sm:$0xff]
    %v174 = vld [vmem:[#allocation5 + $0x80] sm:$0xff]
    %v175 = vld [vmem:[#allocation5 + $0x88] sm:$0xff]
    %v176 = vld [vmem:[#allocation5 + $0x90] sm:$0xff]
    %v177 = vld [vmem:[#allocation5 + $0x98] sm:$0xff]
    %v178 = vld [vmem:[#allocation5 + $0xa0] sm:$0xff]
    %v179 = vld [vmem:[#allocation5 + $0xa8] sm:$0xff]
    %v180 = vld [vmem:[#allocation5 + $0xb0] sm:$0xff]
    %v181 = vld [vmem:[#allocation5 + $0xb8] sm:$0xff]
    %v182 = vld [vmem:[#allocation5 + $0xc0] sm:$0xff]
    %v183 = vld [vmem:[#allocation5 + $0xc8] sm:$0xff]
    %v184 = vld [vmem:[#allocation5 + $0xd0] sm:$0xff]
    %v185 = vld [vmem:[#allocation5 + $0xd8] sm:$0xff]
    %v186 = vld [vmem:[#allocation5 + $0xe0] sm:$0xff]
    %v187 = vld [vmem:[#allocation5 + $0xe8] sm:$0xff]
    %v188 = vld [vmem:[#allocation5 + $0xf0] sm:$0xff]
    %v189 = vld [vmem:[#allocation5 + $0xf8] sm:$0xff]
    %v190 = vld [vmem:[#allocation5 + $0x100] sm:$0xff]
    %v191 = vld [vmem:[#allocation5 + $0x108] sm:$0xff]
    %v192 = vld [vmem:[#allocation5 + $0x110] sm:$0xff]
    %v193 = vld [vmem:[#allocation5 + $0x118] sm:$0xff]
    %v194 = vld [vmem:[#allocation5 + $0x120] sm:$0xff]
    %v195 = vld [vmem:[#allocation5 + $0x128] sm:$0xff]
    %v196 = vld [vmem:[#allocation5 + $0x130] sm:$0xff]
    %v197 = vld [vmem:[#allocation5 + $0x138] sm:$0xff]
    %v198 = vld [vmem:[#allocation5 + $0x140] sm:$0xff]
    %v199 = vld [vmem:[#allocation5 + $0x148] sm:$0xff]
    %v200 = vld [vmem:[#allocation5 + $0x150] sm:$0xff]
    %v201 = vld [vmem:[#allocation5 + $0x158] sm:$0xff]
    %v202 = vld [vmem:[#allocation5 + $0x160] sm:$0xff]
    %v203 = vld [vmem:[#allocation5 + $0x168] sm:$0xff]
    %v204 = vld [vmem:[#allocation5 + $0x170] sm:$0xff]
    %v205 = vld [vmem:[#allocation5 + $0x178] sm:$0xff]
    %v206 = vld [vmem:[#allocation5 + $0x180] sm:$0xff]
    %v207 = vld [vmem:[#allocation5 + $0x188] sm:$0xff]
    %v208 = vld [vmem:[#allocation5 + $0x190] sm:$0xff]
    %v209 = vld [vmem:[#allocation5 + $0x198] sm:$0xff]
    %v210 = vld [vmem:[#allocation5 + $0x1a0] sm:$0xff]
    %v211 = vld [vmem:[#allocation5 + $0x1a8] sm:$0xff]
    %v212 = vld [vmem:[#allocation5 + $0x1b0] sm:$0xff]
    %v213 = vld [vmem:[#allocation5 + $0x1b8] sm:$0xff]
    %v214 = vld [vmem:[#allocation5 + $0x1c0] sm:$0xff]
    %v215 = vld [vmem:[#allocation5 + $0x1c8] sm:$0xff]
    %v216 = vld [vmem:[#allocation5 + $0x1d0] sm:$0xff]
    %v217 = vld [vmem:[#allocation5 + $0x1d8] sm:$0xff]
    %v218 = vld [vmem:[#allocation5 + $0x1e0] sm:$0xff]
    %v219 = vld [vmem:[#allocation5 + $0x1e8] sm:$0xff]
    %v220 = vld [vmem:[#allocation5 + $0x1f0] sm:$0xff]
    %v221 = vld [vmem:[#allocation5 + $0x1f8] sm:$0xff]
    %v222 = vld [vmem:[%s2] sm:$0x3]
    %v224 = vlaneseq
    %v225 = vshrl.u32 %v224, 7
    %v226 = vsub.s32 0, %v225
    %v227 = vrot.slane %v222, %v226
    %v228 = vlaneseq
    %v229 = vshrl.u32 %v228, 7
    %v230 = vsub.s32 1, %v229
    %v231 = vrot.slane %v222, %v230
    %v298 = vunpack.c.l.b16 %v158
    %v299 = vunpack.c.h.b16 %v158
    %v300 = vunpack.c.l.b16 %v159
    %v301 = vunpack.c.h.b16 %v159
    %v302 = vunpack.c.l.b16 %v160
    %v303 = vunpack.c.h.b16 %v160
    %v304 = vunpack.c.l.b16 %v161
    %v305 = vunpack.c.h.b16 %v161
    %v306 = vunpack.c.l.b16 %v162
    %v307 = vunpack.c.h.b16 %v162
    %v308 = vunpack.c.l.b16 %v163
    %v309 = vunpack.c.h.b16 %v163
    %v310 = vunpack.c.l.b16 %v164
    %v311 = vunpack.c.h.b16 %v164
    %v312 = vunpack.c.l.b16 %v165
    %v313 = vunpack.c.h.b16 %v165
    %v314 = vunpack.c.l.b16 %v166
    %v315 = vunpack.c.h.b16 %v166
    %v316 = vunpack.c.l.b16 %v167
    %v317 = vunpack.c.h.b16 %v167
    %v318 = vunpack.c.l.b16 %v168
    %v319 = vunpack.c.h.b16 %v168
    %v320 = vunpack.c.l.b16 %v169
    %v321 = vunpack.c.h.b16 %v169
    %v322 = vunpack.c.l.b16 %v170
    %v323 = vunpack.c.h.b16 %v170
    %v324 = vunpack.c.l.b16 %v171
    %v325 = vunpack.c.h.b16 %v171
    %v326 = vunpack.c.l.b16 %v172
    %v327 = vunpack.c.h.b16 %v172
    %v328 = vunpack.c.l.b16 %v173
    %v329 = vunpack.c.h.b16 %v173
    %v330 = vunpack.c.l.b16 %v174
    %v331 = vunpack.c.h.b16 %v174
    %v332 = vunpack.c.l.b16 %v175
    %v333 = vunpack.c.h.b16 %v175
    %v334 = vunpack.c.l.b16 %v176
    %v335 = vunpack.c.h.b16 %v176
    %v336 = vunpack.c.l.b16 %v177
    %v337 = vunpack.c.h.b16 %v177
    %v338 = vunpack.c.l.b16 %v178
    %v339 = vunpack.c.h.b16 %v178
    %v340 = vunpack.c.l.b16 %v179
    %v341 = vunpack.c.h.b16 %v179
    %v342 = vunpack.c.l.b16 %v180
    %v343 = vunpack.c.h.b16 %v180
    %v344 = vunpack.c.l.b16 %v181
    %v345 = vunpack.c.h.b16 %v181
    %v346 = vunpack.c.l.b16 %v182
    %v347 = vunpack.c.h.b16 %v182
    %v348 = vunpack.c.l.b16 %v183
    %v349 = vunpack.c.h.b16 %v183
    %v350 = vunpack.c.l.b16 %v184
    %v351 = vunpack.c.h.b16 %v184
    %v352 = vunpack.c.l.b16 %v185
    %v353 = vunpack.c.h.b16 %v185
    %v354 = vunpack.c.l.b16 %v186
    %v355 = vunpack.c.h.b16 %v186
    %v356 = vunpack.c.l.b16 %v187
    %v357 = vunpack.c.h.b16 %v187
    %v358 = vunpack.c.l.b16 %v188
    %v359 = vunpack.c.h.b16 %v188
    %v360 = vunpack.c.l.b16 %v189
    %v361 = vunpack.c.h.b16 %v189
    %v362 = vunpack.c.l.b16 %v190
    %v363 = vunpack.c.h.b16 %v190
    %v364 = vunpack.c.l.b16 %v191
    %v365 = vunpack.c.h.b16 %v191
    %v366 = vunpack.c.l.b16 %v192
    %v367 = vunpack.c.h.b16 %v192
    %v368 = vunpack.c.l.b16 %v193
    %v369 = vunpack.c.h.b16 %v193
    %v370 = vunpack.c.l.b16 %v194
    %v371 = vunpack.c.h.b16 %v194
    %v372 = vunpack.c.l.b16 %v195
    %v373 = vunpack.c.h.b16 %v195
    %v374 = vunpack.c.l.b16 %v196
    %v375 = vunpack.c.h.b16 %v196
    %v376 = vunpack.c.l.b16 %v197
    %v377 = vunpack.c.h.b16 %v197
    %v378 = vunpack.c.l.b16 %v198
    %v379 = vunpack.c.h.b16 %v198
    %v380 = vunpack.c.l.b16 %v199
    %v381 = vunpack.c.h.b16 %v199
    %v382 = vunpack.c.l.b16 %v200
    %v383 = vunpack.c.h.b16 %v200
    %v384 = vunpack.c.l.b16 %v201
    %v385 = vunpack.c.h.b16 %v201
    %v386 = vunpack.c.l.b16 %v202
    %v387 = vunpack.c.h.b16 %v202
    %v388 = vunpack.c.l.b16 %v203
    %v389 = vunpack.c.h.b16 %v203
    %v390 = vunpack.c.l.b16 %v204
    %v391 = vunpack.c.h.b16 %v204
    %v392 = vunpack.c.l.b16 %v205
    %v393 = vunpack.c.h.b16 %v205
    %v394 = vunpack.c.l.b16 %v206
    %v395 = vunpack.c.h.b16 %v206
    %v396 = vunpack.c.l.b16 %v207
    %v397 = vunpack.c.h.b16 %v207
    %v398 = vunpack.c.l.b16 %v208
    %v399 = vunpack.c.h.b16 %v208
    %v400 = vunpack.c.l.b16 %v209
    %v401 = vunpack.c.h.b16 %v209
    %v402 = vunpack.c.l.b16 %v210
    %v403 = vunpack.c.h.b16 %v210
    %v404 = vunpack.c.l.b16 %v211
    %v405 = vunpack.c.h.b16 %v211
    %v406 = vunpack.c.l.b16 %v212
    %v407 = vunpack.c.h.b16 %v212
    %v408 = vunpack.c.l.b16 %v213
    %v409 = vunpack.c.h.b16 %v213
    %v410 = vunpack.c.l.b16 %v214
    %v411 = vunpack.c.h.b16 %v214
    %v412 = vunpack.c.l.b16 %v215
    %v413 = vunpack.c.h.b16 %v215
    %v414 = vunpack.c.l.b16 %v216
    %v415 = vunpack.c.h.b16 %v216
    %v416 = vunpack.c.l.b16 %v217
    %v417 = vunpack.c.h.b16 %v217
    %v418 = vunpack.c.l.b16 %v218
    %v419 = vunpack.c.h.b16 %v218
    %v420 = vunpack.c.l.b16 %v219
    %v421 = vunpack.c.h.b16 %v219
    %v422 = vunpack.c.l.b16 %v220
    %v423 = vunpack.c.h.b16 %v220
    %v424 = vunpack.c.l.b16 %v221
    %v425 = vunpack.c.h.b16 %v221
    %v426 = vpack.c.b16 %v300, %v298
    %v427 = vpack.c.b16 %v301, %v299
    %v428 = vpack.c.b16 %v304, %v302
    %v429 = vpack.c.b16 %v305, %v303
    %v430 = vpack.c.b16 %v308, %v306
    %v431 = vpack.c.b16 %v309, %v307
    %v432 = vpack.c.b16 %v312, %v310
    %v433 = vpack.c.b16 %v313, %v311
    %v434 = vpack.c.b16 %v316, %v314
    %v435 = vpack.c.b16 %v317, %v315
    %v436 = vpack.c.b16 %v320, %v318
    %v437 = vpack.c.b16 %v321, %v319
    %v438 = vpack.c.b16 %v324, %v322
    %v439 = vpack.c.b16 %v325, %v323
    %v440 = vpack.c.b16 %v328, %v326
    %v441 = vpack.c.b16 %v329, %v327
    %v442 = vpack.c.b16 %v332, %v330
    %v443 = vpack.c.b16 %v333, %v331
    %v444 = vpack.c.b16 %v336, %v334
    %v445 = vpack.c.b16 %v337, %v335
    %v446 = vpack.c.b16 %v340, %v338
    %v447 = vpack.c.b16 %v341, %v339
    %v448 = vpack.c.b16 %v344, %v342
    %v449 = vpack.c.b16 %v345, %v343
    %v450 = vpack.c.b16 %v348, %v346
    %v451 = vpack.c.b16 %v349, %v347
    %v452 = vpack.c.b16 %v352, %v350
    %v453 = vpack.c.b16 %v353, %v351
    %v454 = vpack.c.b16 %v356, %v354
    %v455 = vpack.c.b16 %v357, %v355
    %v456 = vpack.c.b16 %v360, %v358
    %v457 = vpack.c.b16 %v361, %v359
    %v458 = vpack.c.b16 %v364, %v362
    %v459 = vpack.c.b16 %v365, %v363
    %v460 = vpack.c.b16 %v368, %v366
    %v461 = vpack.c.b16 %v369, %v367
    %v462 = vpack.c.b16 %v372, %v370
    %v463 = vpack.c.b16 %v373, %v371
    %v464 = vpack.c.b16 %v376, %v374
    %v465 = vpack.c.b16 %v377, %v375
    %v466 = vpack.c.b16 %v380, %v378
    %v467 = vpack.c.b16 %v381, %v379
    %v468 = vpack.c.b16 %v384, %v382
    %v469 = vpack.c.b16 %v385, %v383
    %v470 = vpack.c.b16 %v388, %v386
    %v471 = vpack.c.b16 %v389, %v387
    %v472 = vpack.c.b16 %v392, %v390
    %v473 = vpack.c.b16 %v393, %v391
    %v474 = vpack.c.b16 %v396, %v394
    %v475 = vpack.c.b16 %v397, %v395
    %v476 = vpack.c.b16 %v400, %v398
    %v477 = vpack.c.b16 %v401, %v399
    %v478 = vpack.c.b16 %v404, %v402
    %v479 = vpack.c.b16 %v405, %v403
    %v480 = vpack.c.b16 %v408, %v406
    %v481 = vpack.c.b16 %v409, %v407
    %v482 = vpack.c.b16 %v412, %v410
    %v483 = vpack.c.b16 %v413, %v411
    %v484 = vpack.c.b16 %v416, %v414
    %v485 = vpack.c.b16 %v417, %v415
    %v486 = vpack.c.b16 %v420, %v418
    %v487 = vpack.c.b16 %v421, %v419
    %v488 = vpack.c.b16 %v424, %v422
    %v489 = vpack.c.b16 %v425, %v423
    %554 = vmatprep.subr.bf16.mxu0 %v427
    %555 = vmatpush1.bf16.msra.mxu0 %v426
    %556 = vmatprep.subr.bf16.mxu0 %v429
    %557 = vmatpush1.bf16.msra.mxu0 %v428
    %558 = vmatprep.subr.bf16.mxu0 %v431
    %559 = vmatpush1.bf16.msra.mxu0 %v430
    %560 = vmatprep.subr.bf16.mxu0 %v433
    %561 = vmatpush1.bf16.msra.mxu0 %v432
    %562 = vmatprep.subr.bf16.mxu0 %v435
    %563 = vmatpush1.bf16.msra.mxu0 %v434
    %564 = vmatprep.subr.bf16.mxu0 %v437
    %565 = vmatpush1.bf16.msra.mxu0 %v436
    %566 = vmatprep.subr.bf16.mxu0 %v439
    %567 = vmatpush1.bf16.msra.mxu0 %v438
    %568 = vmatprep.subr.bf16.mxu0 %v441
    %569 = vmatpush1.bf16.msra.mxu0 %v440
    %570 = vmatprep.subr.bf16.mxu0 %v443
    %571 = vmatpush1.bf16.msra.mxu0 %v442
    %572 = vmatprep.subr.bf16.mxu0 %v445
    %573 = vmatpush1.bf16.msra.mxu0 %v444
    %574 = vmatprep.subr.bf16.mxu0 %v447
    %575 = vmatpush1.bf16.msra.mxu0 %v446
    %576 = vmatprep.subr.bf16.mxu0 %v449
    %577 = vmatpush1.bf16.msra.mxu0 %v448
    %578 = vmatprep.subr.bf16.mxu0 %v451
    %579 = vmatpush1.bf16.msra.mxu0 %v450
    %580 = vmatprep.subr.bf16.mxu0 %v453
    %581 = vmatpush1.bf16.msra.mxu0 %v452
    %582 = vmatprep.subr.bf16.mxu0 %v455
    %583 = vmatpush1.bf16.msra.mxu0 %v454
    %584 = vmatprep.subr.bf16.mxu0 %v457
    %585 = vmatpush1.bf16.msra.mxu0 %v456
    %586 = vmatprep.mubr.bf16.mxu0 %v127
    %587 = vmatmul.mubr.bf16.gmra.mrb[0].mxu0 %v126
    %v588 = vpop.f32.mrb[0].mxu0
    %v589 = vadd.f32 %v227, %v588
    %v590 = vpop.f32.mrb[0].mxu0
    %v591 = vadd.f32 %v231, %v590
    %v592 = vpop.f32.mrb[0].mxu0
    %v593 = vadd.f32 %v227, %v592
    %v594 = vpop.f32.mrb[0].mxu0
    %v595 = vadd.f32 %v231, %v594
    %596 = vmatprep.mubr.bf16.mxu0 %v131
    %597 = vmatmul.mubr.bf16.gmra.mrb[0].mxu0 %v130
    %v598 = vpop.f32.mrb[0].mxu0
    %v599 = vadd.f32 %v227, %v598
    %v600 = vpop.f32.mrb[0].mxu0
    %v601 = vadd.f32 %v231, %v600
    %v602 = vpop.f32.mrb[0].mxu0
    %v603 = vadd.f32 %v227, %v602
    %v604 = vpop.f32.mrb[0].mxu0
    %v605 = vadd.f32 %v231, %v604
    %606 = vmatprep.mubr.bf16.mxu0 %v135
    %607 = vmatmul.mubr.bf16.gmra.mrb[0].mxu0 %v134
    %v608 = vpop.f32.mrb[0].mxu0
    %v609 = vadd.f32 %v227, %v608
    %v610 = vpop.f32.mrb[0].mxu0
    %v611 = vadd.f32 %v231, %v610
    %v612 = vpop.f32.mrb[0].mxu0
    %v613 = vadd.f32 %v227, %v612
    %v614 = vpop.f32.mrb[0].mxu0
    %v615 = vadd.f32 %v231, %v614
    %616 = vmatprep.mubr.bf16.mxu0 %v139
    %617 = vmatmul.mubr.bf16.gmra.mrb[0].mxu0 %v138
    %v618 = vpop.f32.mrb[0].mxu0
    %v619 = vadd.f32 %v227, %v618
    %v620 = vpop.f32.mrb[0].mxu0
    %v621 = vadd.f32 %v231, %v620
    %v622 = vpop.f32.mrb[0].mxu0
    %v623 = vadd.f32 %v227, %v622
    %v624 = vpop.f32.mrb[0].mxu0
    %v625 = vadd.f32 %v231, %v624
    %626 = vmatprep.mubr.bf16.mxu0 %v143
    %627 = vmatmul.mubr.bf16.gmra.mrb[0].mxu0 %v142
    %v628 = vpop.f32.mrb[0].mxu0
    %v629 = vadd.f32 %v227, %v628
    %v630 = vpop.f32.mrb[0].mxu0
    %v631 = vadd.f32 %v231, %v630
    %v632 = vpop.f32.mrb[0].mxu0
    %v633 = vadd.f32 %v227, %v632
    %v634 = vpop.f32.mrb[0].mxu0
    %v635 = vadd.f32 %v231, %v634
    %636 = vmatprep.mubr.bf16.mxu0 %v147
    %637 = vmatmul.mubr.bf16.gmra.mrb[0].mxu0 %v146
    %v638 = vpop.f32.mrb[0].mxu0
    %v639 = vadd.f32 %v227, %v638
    %v640 = vpop.f32.mrb[0].mxu0
    %v641 = vadd.f32 %v231, %v640
    %v642 = vpop.f32.mrb[0].mxu0
    %v643 = vadd.f32 %v227, %v642
    %v644 = vpop.f32.mrb[0].mxu0
    %v645 = vadd.f32 %v231, %v644
    %646 = vmatprep.mubr.bf16.mxu0 %v151
    %647 = vmatmul.mubr.bf16.gmra.mrb[0].mxu0 %v150
    %v648 = vpop.f32.mrb[0].mxu0
    %v649 = vadd.f32 %v227, %v648
    %v650 = vpop.f32.mrb[0].mxu0
    %v651 = vadd.f32 %v231, %v650
    %v652 = vpop.f32.mrb[0].mxu0
    %v653 = vadd.f32 %v227, %v652
    %v654 = vpop.f32.mrb[0].mxu0
    %v655 = vadd.f32 %v231, %v654
    %656 = vmatprep.mubr.bf16.mxu0 %v155
    %657 = vmatmul.mubr.bf16.gmra.mrb[0].mxu0 %v154
    %v658 = vpop.f32.mrb[0].mxu0
    %v659 = vadd.f32 %v227, %v658
    %v660 = vpop.f32.mrb[0].mxu0
    %v661 = vadd.f32 %v231, %v660
    %v662 = vpop.f32.mrb[0].mxu0
    %v663 = vadd.f32 %v227, %v662
    %v664 = vpop.f32.mrb[0].mxu0
    %v665 = vadd.f32 %v231, %v664
    %666 = vdwg.mxu0
    %667 = vmatprep.subr.bf16.mxu0 %v459
    %668 = vmatpush1.bf16.msra.mxu0 %v458
    %669 = vmatprep.subr.bf16.mxu0 %v461
    %670 = vmatpush1.bf16.msra.mxu0 %v460
    %671 = vmatprep.subr.bf16.mxu0 %v463
    %672 = vmatpush1.bf16.msra.mxu0 %v462
    %673 = vmatprep.subr.bf16.mxu0 %v465
    %674 = vmatpush1.bf16.msra.mxu0 %v464
    %675 = vmatprep.subr.bf16.mxu0 %v467
    %676 = vmatpush1.bf16.msra.mxu0 %v466
    %677 = vmatprep.subr.bf16.mxu0 %v469
    %678 = vmatpush1.bf16.msra.mxu0 %v468
    %679 = vmatprep.subr.bf16.mxu0 %v471
    %680 = vmatpush1.bf16.msra.mxu0 %v470
    %681 = vmatprep.subr.bf16.mxu0 %v473
    %682 = vmatpush1.bf16.msra.mxu0 %v472
    %683 = vmatprep.subr.bf16.mxu0 %v475
    %684 = vmatpush1.bf16.msra.mxu0 %v474
    %685 = vmatprep.subr.bf16.mxu0 %v477
    %686 = vmatpush1.bf16.msra.mxu0 %v476
    %687 = vmatprep.subr.bf16.mxu0 %v479
    %688 = vmatpush1.bf16.msra.mxu0 %v478
    %689 = vmatprep.subr.bf16.mxu0 %v481
    %690 = vmatpush1.bf16.msra.mxu0 %v480
    %691 = vmatprep.subr.bf16.mxu0 %v483
    %692 = vmatpush1.bf16.msra.mxu0 %v482
    %693 = vmatprep.subr.bf16.mxu0 %v485
    %694 = vmatpush1.bf16.msra.mxu0 %v484
    %695 = vmatprep.subr.bf16.mxu0 %v487
    %696 = vmatpush1.bf16.msra.mxu0 %v486
    %697 = vmatprep.subr.bf16.mxu0 %v489
    %698 = vmatpush1.bf16.msra.mxu0 %v488
    %699 = vmatprep.mubr.bf16.mxu0 %v129
    %700 = vmatmul.mubr.bf16.gmra.mrb[0].mxu0 %v128
    %v701 = vpop.f32.mrb[0].mxu0
    %v702 = vadd.f32 %v589, %v701
    %v703 = vpop.f32.mrb[0].mxu0
    %v704 = vadd.f32 %v591, %v703
    %v705 = vpop.f32.mrb[0].mxu0
    %v706 = vadd.f32 %v593, %v705
    %v707 = vpop.f32.mrb[0].mxu0
    %v708 = vadd.f32 %v595, %v707
    %709 = vmatprep.mubr.bf16.mxu0 %v133
    %710 = vmatmul.mubr.bf16.gmra.mrb[0].mxu0 %v132
    %v711 = vpop.f32.mrb[0].mxu0
    %v712 = vadd.f32 %v599, %v711
    %v713 = vpop.f32.mrb[0].mxu0
    %v714 = vadd.f32 %v601, %v713
    %v715 = vpop.f32.mrb[0].mxu0
    %v716 = vadd.f32 %v603, %v715
    %v717 = vpop.f32.mrb[0].mxu0
    %v718 = vadd.f32 %v605, %v717
    %719 = vmatprep.mubr.bf16.mxu0 %v137
    %720 = vmatmul.mubr.bf16.gmra.mrb[0].mxu0 %v136
    %v721 = vpop.f32.mrb[0].mxu0
    %v722 = vadd.f32 %v609, %v721
    %v723 = vpop.f32.mrb[0].mxu0
    %v724 = vadd.f32 %v611, %v723
    %v725 = vpop.f32.mrb[0].mxu0
    %v726 = vadd.f32 %v613, %v725
    %v727 = vpop.f32.mrb[0].mxu0
    %v728 = vadd.f32 %v615, %v727
    %729 = vmatprep.mubr.bf16.mxu0 %v141
    %730 = vmatmul.mubr.bf16.gmra.mrb[0].mxu0 %v140
    %v731 = vpop.f32.mrb[0].mxu0
    %v732 = vadd.f32 %v619, %v731
    %v733 = vpop.f32.mrb[0].mxu0
    %v734 = vadd.f32 %v621, %v733
    %v735 = vpop.f32.mrb[0].mxu0
    %v736 = vadd.f32 %v623, %v735
    %v737 = vpop.f32.mrb[0].mxu0
    %v738 = vadd.f32 %v625, %v737
    %739 = vmatprep.mubr.bf16.mxu0 %v145
    %740 = vmatmul.mubr.bf16.gmra.mrb[0].mxu0 %v144
    %v741 = vpop.f32.mrb[0].mxu0
    %v742 = vadd.f32 %v629, %v741
    %v743 = vpop.f32.mrb[0].mxu0
    %v744 = vadd.f32 %v631, %v743
    %v745 = vpop.f32.mrb[0].mxu0
    %v746 = vadd.f32 %v633, %v745
    %v747 = vpop.f32.mrb[0].mxu0
    %v748 = vadd.f32 %v635, %v747
    %749 = vmatprep.mubr.bf16.mxu0 %v149
    %750 = vmatmul.mubr.bf16.gmra.mrb[0].mxu0 %v148
    %v751 = vpop.f32.mrb[0].mxu0
    %v752 = vadd.f32 %v639, %v751
    %v753 = vpop.f32.mrb[0].mxu0
    %v754 = vadd.f32 %v641, %v753
    %v755 = vpop.f32.mrb[0].mxu0
    %v756 = vadd.f32 %v643, %v755
    %v757 = vpop.f32.mrb[0].mxu0
    %v758 = vadd.f32 %v645, %v757
    %759 = vmatprep.mubr.bf16.mxu0 %v153
    %760 = vmatmul.mubr.bf16.gmra.mrb[0].mxu0 %v152
    %v761 = vpop.f32.mrb[0].mxu0
    %v762 = vadd.f32 %v649, %v761
    %v763 = vpop.f32.mrb[0].mxu0
    %v764 = vadd.f32 %v651, %v763
    %v765 = vpop.f32.mrb[0].mxu0
    %v766 = vadd.f32 %v653, %v765
    %v767 = vpop.f32.mrb[0].mxu0
    %v768 = vadd.f32 %v655, %v767
    %769 = vmatprep.mubr.bf16.mxu0 %v157
    %770 = vmatmul.mubr.bf16.gmra.mrb[0].mxu0 %v156
    %v771 = vpop.f32.mrb[0].mxu0
    %v772 = vadd.f32 %v659, %v771
    %v773 = vpop.f32.mrb[0].mxu0
    %v774 = vadd.f32 %v661, %v773
    %v775 = vpop.f32.mrb[0].mxu0
    %v776 = vadd.f32 %v663, %v775
    %v777 = vpop.f32.mrb[0].mxu0
    %v778 = vadd.f32 %v665, %v777
    %779 = vdwg.mxu0
    %v780 = vmax.f32 %v702, 0.0
    %v781 = vmax.f32 %v704, 0.0
    %v782 = vmax.f32 %v706, 0.0
    %v783 = vmax.f32 %v708, 0.0
    %v784 = vmax.f32 %v712, 0.0
    %v785 = vmax.f32 %v714, 0.0
    %v786 = vmax.f32 %v716, 0.0
    %v787 = vmax.f32 %v718, 0.0
    %v788 = vmax.f32 %v722, 0.0
    %v789 = vmax.f32 %v724, 0.0
    %v790 = vmax.f32 %v726, 0.0
    %v791 = vmax.f32 %v728, 0.0
    %v792 = vmax.f32 %v732, 0.0
    %v793 = vmax.f32 %v734, 0.0
    %v794 = vmax.f32 %v736, 0.0
    %v795 = vmax.f32 %v738, 0.0
    %v796 = vmax.f32 %v742, 0.0
    %v797 = vmax.f32 %v744, 0.0
    %v798 = vmax.f32 %v746, 0.0
    %v799 = vmax.f32 %v748, 0.0
    %v800 = vmax.f32 %v752, 0.0
    %v801 = vmax.f32 %v754, 0.0
    %v802 = vmax.f32 %v756, 0.0
    %v803 = vmax.f32 %v758, 0.0
    %v804 = vmax.f32 %v762, 0.0
    %v805 = vmax.f32 %v764, 0.0
    %v806 = vmax.f32 %v766, 0.0
    %v807 = vmax.f32 %v768, 0.0
    %v808 = vmax.f32 %v772, 0.0
    %v809 = vmax.f32 %v774, 0.0
    %v810 = vmax.f32 %v776, 0.0
    %v811 = vmax.f32 %v778, 0.0
    %v812 = vpack.c.bf16 %v782, %v780
    %v813 = vpack.c.bf16 %v783, %v781
    %v814 = vpack.c.bf16 %v786, %v784
    %v815 = vpack.c.bf16 %v787, %v785
    %v816 = vpack.c.bf16 %v790, %v788
    %v817 = vpack.c.bf16 %v791, %v789
    %v818 = vpack.c.bf16 %v794, %v792
    %v819 = vpack.c.bf16 %v795, %v793
    %v820 = vpack.c.bf16 %v798, %v796
    %v821 = vpack.c.bf16 %v799, %v797
    %v822 = vpack.c.bf16 %v802, %v800
    %v823 = vpack.c.bf16 %v803, %v801
    %v824 = vpack.c.bf16 %v806, %v804
    %v825 = vpack.c.bf16 %v807, %v805
    %v826 = vpack.c.bf16 %v810, %v808
    %v827 = vpack.c.bf16 %v811, %v809
    %v828 = vld [vmem:[#allocation7] sm:$0xff]
    %v829 = vld [vmem:[#allocation7 + $0x8] sm:$0xff]
    %v830 = vld [vmem:[#allocation7 + $0x10] sm:$0xff]
    %v831 = vld [vmem:[#allocation7 + $0x18] sm:$0xff]
    %v832 = vld [vmem:[#allocation7 + $0x20] sm:$0xff]
    %v833 = vld [vmem:[#allocation7 + $0x28] sm:$0xff]
    %v834 = vld [vmem:[#allocation7 + $0x30] sm:$0xff]
    %v835 = vld [vmem:[#allocation7 + $0x38] sm:$0xff]
    %v836 = vld [vmem:[#allocation7 + $0x40] sm:$0xff]
    %v837 = vld [vmem:[#allocation7 + $0x48] sm:$0xff]
    %v838 = vld [vmem:[#allocation7 + $0x50] sm:$0xff]
    %v839 = vld [vmem:[#allocation7 + $0x58] sm:$0xff]
    %v840 = vld [vmem:[#allocation7 + $0x60] sm:$0xff]
    %v841 = vld [vmem:[#allocation7 + $0x68] sm:$0xff]
    %v842 = vld [vmem:[#allocation7 + $0x70] sm:$0xff]
    %v843 = vld [vmem:[#allocation7 + $0x78] sm:$0xff]
    %v844 = vld [vmem:[#allocation7 + $0x80] sm:$0xff]
    %v845 = vld [vmem:[#allocation7 + $0x88] sm:$0xff]
    %v846 = vld [vmem:[#allocation7 + $0x90] sm:$0xff]
    %v847 = vld [vmem:[#allocation7 + $0x98] sm:$0xff]
    %v848 = vld [vmem:[#allocation7 + $0xa0] sm:$0xff]
    %v849 = vld [vmem:[#allocation7 + $0xa8] sm:$0xff]
    %v850 = vld [vmem:[#allocation7 + $0xb0] sm:$0xff]
    %v851 = vld [vmem:[#allocation7 + $0xb8] sm:$0xff]
    %v852 = vld [vmem:[#allocation7 + $0xc0] sm:$0xff]
    %v853 = vld [vmem:[#allocation7 + $0xc8] sm:$0xff]
    %v854 = vld [vmem:[#allocation7 + $0xd0] sm:$0xff]
    %v855 = vld [vmem:[#allocation7 + $0xd8] sm:$0xff]
    %v856 = vld [vmem:[#allocation7 + $0xe0] sm:$0xff]
    %v857 = vld [vmem:[#allocation7 + $0xe8] sm:$0xff]
    %v858 = vld [vmem:[#allocation7 + $0xf0] sm:$0xff]
    %v859 = vld [vmem:[#allocation7 + $0xf8] sm:$0xff]
    %v860 = vld [vmem:[#allocation7 + $0x100] sm:$0xff]
    %v861 = vld [vmem:[#allocation7 + $0x108] sm:$0xff]
    %v862 = vld [vmem:[#allocation7 + $0x110] sm:$0xff]
    %v863 = vld [vmem:[#allocation7 + $0x118] sm:$0xff]
    %v864 = vld [vmem:[#allocation7 + $0x120] sm:$0xff]
    %v865 = vld [vmem:[#allocation7 + $0x128] sm:$0xff]
    %v866 = vld [vmem:[#allocation7 + $0x130] sm:$0xff]
    %v867 = vld [vmem:[#allocation7 + $0x138] sm:$0xff]
    %v868 = vld [vmem:[#allocation7 + $0x140] sm:$0xff]
    %v869 = vld [vmem:[#allocation7 + $0x148] sm:$0xff]
    %v870 = vld [vmem:[#allocation7 + $0x150] sm:$0xff]
    %v871 = vld [vmem:[#allocation7 + $0x158] sm:$0xff]
    %v872 = vld [vmem:[#allocation7 + $0x160] sm:$0xff]
    %v873 = vld [vmem:[#allocation7 + $0x168] sm:$0xff]
    %v874 = vld [vmem:[#allocation7 + $0x170] sm:$0xff]
    %v875 = vld [vmem:[#allocation7 + $0x178] sm:$0xff]
    %v876 = vld [vmem:[#allocation7 + $0x180] sm:$0xff]
    %v877 = vld [vmem:[#allocation7 + $0x188] sm:$0xff]
    %v878 = vld [vmem:[#allocation7 + $0x190] sm:$0xff]
    %v879 = vld [vmem:[#allocation7 + $0x198] sm:$0xff]
    %v880 = vld [vmem:[#allocation7 + $0x1a0] sm:$0xff]
    %v881 = vld [vmem:[#allocation7 + $0x1a8] sm:$0xff]
    %v882 = vld [vmem:[#allocation7 + $0x1b0] sm:$0xff]
    %v883 = vld [vmem:[#allocation7 + $0x1b8] sm:$0xff]
    %v884 = vld [vmem:[#allocation7 + $0x1c0] sm:$0xff]
    %v885 = vld [vmem:[#allocation7 + $0x1c8] sm:$0xff]
    %v886 = vld [vmem:[#allocation7 + $0x1d0] sm:$0xff]
    %v887 = vld [vmem:[#allocation7 + $0x1d8] sm:$0xff]
    %v888 = vld [vmem:[#allocation7 + $0x1e0] sm:$0xff]
    %v889 = vld [vmem:[#allocation7 + $0x1e8] sm:$0xff]
    %v890 = vld [vmem:[#allocation7 + $0x1f0] sm:$0xff]
    %v891 = vld [vmem:[#allocation7 + $0x1f8] sm:$0xff]
    %v892 = vld [vmem:[%s4] sm:$0xf]
    %v894 = vlaneseq
    %v895 = vshrl.u32 %v894, 7
    %v896 = vsub.s32 0, %v895
    %v897 = vrot.slane %v892, %v896
    %v898 = vlaneseq
    %v899 = vshrl.u32 %v898, 7
    %v900 = vsub.s32 1, %v899
    %v901 = vrot.slane %v892, %v900
    %v902 = vlaneseq
    %v903 = vshrl.u32 %v902, 7
    %v904 = vsub.s32 2, %v903
    %v905 = vrot.slane %v892, %v904
    %v906 = vlaneseq
    %v907 = vshrl.u32 %v906, 7
    %v908 = vsub.s32 3, %v907
    %v909 = vrot.slane %v892, %v908
    %v978 = vunpack.c.l.b16 %v828
    %v979 = vunpack.c.h.b16 %v828
    %v980 = vunpack.c.l.b16 %v829
    %v981 = vunpack.c.h.b16 %v829
    %v982 = vunpack.c.l.b16 %v830
    %v983 = vunpack.c.h.b16 %v830
    %v984 = vunpack.c.l.b16 %v831
    %v985 = vunpack.c.h.b16 %v831
    %v986 = vunpack.c.l.b16 %v832
    %v987 = vunpack.c.h.b16 %v832
    %v988 = vunpack.c.l.b16 %v833
    %v989 = vunpack.c.h.b16 %v833
    %v990 = vunpack.c.l.b16 %v834
    %v991 = vunpack.c.h.b16 %v834
    %v992 = vunpack.c.l.b16 %v835
    %v993 = vunpack.c.h.b16 %v835
    %v994 = vunpack.c.l.b16 %v836
    %v995 = vunpack.c.h.b16 %v836
    %v996 = vunpack.c.l.b16 %v837
    %v997 = vunpack.c.h.b16 %v837
    %v998 = vunpack.c.l.b16 %v838
    %v999 = vunpack.c.h.b16 %v838
    %v1000 = vunpack.c.l.b16 %v839
    %v1001 = vunpack.c.h.b16 %v839
    %v1002 = vunpack.c.l.b16 %v840
    %v1003 = vunpack.c.h.b16 %v840
    %v1004 = vunpack.c.l.b16 %v841
    %v1005 = vunpack.c.h.b16 %v841
    %v1006 = vunpack.c.l.b16 %v842
    %v1007 = vunpack.c.h.b16 %v842
    %v1008 = vunpack.c.l.b16 %v843
    %v1009 = vunpack.c.h.b16 %v843
    %v1010 = vunpack.c.l.b16 %v844
    %v1011 = vunpack.c.h.b16 %v844
    %v1012 = vunpack.c.l.b16 %v845
    %v1013 = vunpack.c.h.b16 %v845
    %v1014 = vunpack.c.l.b16 %v846
    %v1015 = vunpack.c.h.b16 %v846
    %v1016 = vunpack.c.l.b16 %v847
    %v1017 = vunpack.c.h.b16 %v847
    %v1018 = vunpack.c.l.b16 %v848
    %v1019 = vunpack.c.h.b16 %v848
    %v1020 = vunpack.c.l.b16 %v849
    %v1021 = vunpack.c.h.b16 %v849
    %v1022 = vunpack.c.l.b16 %v850
    %v1023 = vunpack.c.h.b16 %v850
    %v1024 = vunpack.c.l.b16 %v851
    %v1025 = vunpack.c.h.b16 %v851
    %v1026 = vunpack.c.l.b16 %v852
    %v1027 = vunpack.c.h.b16 %v852
    %v1028 = vunpack.c.l.b16 %v853
    %v1029 = vunpack.c.h.b16 %v853
    %v1030 = vunpack.c.l.b16 %v854
    %v1031 = vunpack.c.h.b16 %v854
    %v1032 = vunpack.c.l.b16 %v855
    %v1033 = vunpack.c.h.b16 %v855
    %v1034 = vunpack.c.l.b16 %v856
    %v1035 = vunpack.c.h.b16 %v856
    %v1036 = vunpack.c.l.b16 %v857
    %v1037 = vunpack.c.h.b16 %v857
    %v1038 = vunpack.c.l.b16 %v858
    %v1039 = vunpack.c.h.b16 %v858
    %v1040 = vunpack.c.l.b16 %v859
    %v1041 = vunpack.c.h.b16 %v859
    %v1042 = vunpack.c.l.b16 %v860
    %v1043 = vunpack.c.h.b16 %v860
    %v1044 = vunpack.c.l.b16 %v861
    %v1045 = vunpack.c.h.b16 %v861
    %v1046 = vunpack.c.l.b16 %v862
    %v1047 = vunpack.c.h.b16 %v862
    %v1048 = vunpack.c.l.b16 %v863
    %v1049 = vunpack.c.h.b16 %v863
    %v1050 = vunpack.c.l.b16 %v864
    %v1051 = vunpack.c.h.b16 %v864
    %v1052 = vunpack.c.l.b16 %v865
    %v1053 = vunpack.c.h.b16 %v865
    %v1054 = vunpack.c.l.b16 %v866
    %v1055 = vunpack.c.h.b16 %v866
    %v1056 = vunpack.c.l.b16 %v867
    %v1057 = vunpack.c.h.b16 %v867
    %v1058 = vunpack.c.l.b16 %v868
    %v1059 = vunpack.c.h.b16 %v868
    %v1060 = vunpack.c.l.b16 %v869
    %v1061 = vunpack.c.h.b16 %v869
    %v1062 = vunpack.c.l.b16 %v870
    %v1063 = vunpack.c.h.b16 %v870
    %v1064 = vunpack.c.l.b16 %v871
    %v1065 = vunpack.c.h.b16 %v871
    %v1066 = vunpack.c.l.b16 %v872
    %v1067 = vunpack.c.h.b16 %v872
    %v1068 = vunpack.c.l.b16 %v873
    %v1069 = vunpack.c.h.b16 %v873
    %v1070 = vunpack.c.l.b16 %v874
    %v1071 = vunpack.c.h.b16 %v874
    %v1072 = vunpack.c.l.b16 %v875
    %v1073 = vunpack.c.h.b16 %v875
    %v1074 = vunpack.c.l.b16 %v876
    %v1075 = vunpack.c.h.b16 %v876
    %v1076 = vunpack.c.l.b16 %v877
    %v1077 = vunpack.c.h.b16 %v877
    %v1078 = vunpack.c.l.b16 %v878
    %v1079 = vunpack.c.h.b16 %v878
    %v1080 = vunpack.c.l.b16 %v879
    %v1081 = vunpack.c.h.b16 %v879
    %v1082 = vunpack.c.l.b16 %v880
    %v1083 = vunpack.c.h.b16 %v880
    %v1084 = vunpack.c.l.b16 %v881
    %v1085 = vunpack.c.h.b16 %v881
    %v1086 = vunpack.c.l.b16 %v882
    %v1087 = vunpack.c.h.b16 %v882
    %v1088 = vunpack.c.l.b16 %v883
    %v1089 = vunpack.c.h.b16 %v883
    %v1090 = vunpack.c.l.b16 %v884
    %v1091 = vunpack.c.h.b16 %v884
    %v1092 = vunpack.c.l.b16 %v885
    %v1093 = vunpack.c.h.b16 %v885
    %v1094 = vunpack.c.l.b16 %v886
    %v1095 = vunpack.c.h.b16 %v886
    %v1096 = vunpack.c.l.b16 %v887
    %v1097 = vunpack.c.h.b16 %v887
    %v1098 = vunpack.c.l.b16 %v888
    %v1099 = vunpack.c.h.b16 %v888
    %v1100 = vunpack.c.l.b16 %v889
    %v1101 = vunpack.c.h.b16 %v889
    %v1102 = vunpack.c.l.b16 %v890
    %v1103 = vunpack.c.h.b16 %v890
    %v1104 = vunpack.c.l.b16 %v891
    %v1105 = vunpack.c.h.b16 %v891
    %v1106 = vpack.c.b16 %v982, %v978
    %v1107 = vpack.c.b16 %v983, %v979
    %v1108 = vpack.c.b16 %v984, %v980
    %v1109 = vpack.c.b16 %v985, %v981
    %v1110 = vpack.c.b16 %v990, %v986
    %v1111 = vpack.c.b16 %v991, %v987
    %v1112 = vpack.c.b16 %v992, %v988
    %v1113 = vpack.c.b16 %v993, %v989
    %v1114 = vpack.c.b16 %v998, %v994
    %v1115 = vpack.c.b16 %v999, %v995
    %v1116 = vpack.c.b16 %v1000, %v996
    %v1117 = vpack.c.b16 %v1001, %v997
    %v1118 = vpack.c.b16 %v1006, %v1002
    %v1119 = vpack.c.b16 %v1007, %v1003
    %v1120 = vpack.c.b16 %v1008, %v1004
    %v1121 = vpack.c.b16 %v1009, %v1005
    %v1122 = vpack.c.b16 %v1014, %v1010
    %v1123 = vpack.c.b16 %v1015, %v1011
    %v1124 = vpack.c.b16 %v1016, %v1012
    %v1125 = vpack.c.b16 %v1017, %v1013
    %v1126 = vpack.c.b16 %v1022, %v1018
    %v1127 = vpack.c.b16 %v1023, %v1019
    %v1128 = vpack.c.b16 %v1024, %v1020
    %v1129 = vpack.c.b16 %v1025, %v1021
    %v1130 = vpack.c.b16 %v1030, %v1026
    %v1131 = vpack.c.b16 %v1031, %v1027
    %v1132 = vpack.c.b16 %v1032, %v1028
    %v1133 = vpack.c.b16 %v1033, %v1029
    %v1134 = vpack.c.b16 %v1038, %v1034
    %v1135 = vpack.c.b16 %v1039, %v1035
    %v1136 = vpack.c.b16 %v1040, %v1036
    %v1137 = vpack.c.b16 %v1041, %v1037
    %v1138 = vpack.c.b16 %v1046, %v1042
    %v1139 = vpack.c.b16 %v1047, %v1043
    %v1140 = vpack.c.b16 %v1048, %v1044
    %v1141 = vpack.c.b16 %v1049, %v1045
    %v1142 = vpack.c.b16 %v1054, %v1050
    %v1143 = vpack.c.b16 %v1055, %v1051
    %v1144 = vpack.c.b16 %v1056, %v1052
    %v1145 = vpack.c.b16 %v1057, %v1053
    %v1146 = vpack.c.b16 %v1062, %v1058
    %v1147 = vpack.c.b16 %v1063, %v1059
    %v1148 = vpack.c.b16 %v1064, %v1060
    %v1149 = vpack.c.b16 %v1065, %v1061
    %v1150 = vpack.c.b16 %v1070, %v1066
    %v1151 = vpack.c.b16 %v1071, %v1067
    %v1152 = vpack.c.b16 %v1072, %v1068
    %v1153 = vpack.c.b16 %v1073, %v1069
    %v1154 = vpack.c.b16 %v1078, %v1074
    %v1155 = vpack.c.b16 %v1079, %v1075
    %v1156 = vpack.c.b16 %v1080, %v1076
    %v1157 = vpack.c.b16 %v1081, %v1077
    %v1158 = vpack.c.b16 %v1086, %v1082
    %v1159 = vpack.c.b16 %v1087, %v1083
    %v1160 = vpack.c.b16 %v1088, %v1084
    %v1161 = vpack.c.b16 %v1089, %v1085
    %v1162 = vpack.c.b16 %v1094, %v1090
    %v1163 = vpack.c.b16 %v1095, %v1091
    %v1164 = vpack.c.b16 %v1096, %v1092
    %v1165 = vpack.c.b16 %v1097, %v1093
    %v1166 = vpack.c.b16 %v1102, %v1098
    %v1167 = vpack.c.b16 %v1103, %v1099
    %v1168 = vpack.c.b16 %v1104, %v1100
    %v1169 = vpack.c.b16 %v1105, %v1101
    %1234 = vmatprep.subr.bf16.mxu0 %v1107
    %1235 = vmatpush1.bf16.msra.mxu0 %v1106
    %1236 = vmatprep.subr.bf16.mxu0 %v1111
    %1237 = vmatpush1.bf16.msra.mxu0 %v1110
    %1238 = vmatprep.subr.bf16.mxu0 %v1115
    %1239 = vmatpush1.bf16.msra.mxu0 %v1114
    %1240 = vmatprep.subr.bf16.mxu0 %v1119
    %1241 = vmatpush1.bf16.msra.mxu0 %v1118
    %1242 = vmatprep.subr.bf16.mxu0 %v1123
    %1243 = vmatpush1.bf16.msra.mxu0 %v1122
    %1244 = vmatprep.subr.bf16.mxu0 %v1127
    %1245 = vmatpush1.bf16.msra.mxu0 %v1126
    %1246 = vmatprep.subr.bf16.mxu0 %v1131
    %1247 = vmatpush1.bf16.msra.mxu0 %v1130
    %1248 = vmatprep.subr.bf16.mxu0 %v1135
    %1249 = vmatpush1.bf16.msra.mxu0 %v1134
    %1250 = vmatprep.subr.bf16.mxu0 %v1139
    %1251 = vmatpush1.bf16.msra.mxu0 %v1138
    %1252 = vmatprep.subr.bf16.mxu0 %v1143
    %1253 = vmatpush1.bf16.msra.mxu0 %v1142
    %1254 = vmatprep.subr.bf16.mxu0 %v1147
    %1255 = vmatpush1.bf16.msra.mxu0 %v1146
    %1256 = vmatprep.subr.bf16.mxu0 %v1151
    %1257 = vmatpush1.bf16.msra.mxu0 %v1150
    %1258 = vmatprep.subr.bf16.mxu0 %v1155
    %1259 = vmatpush1.bf16.msra.mxu0 %v1154
    %1260 = vmatprep.subr.bf16.mxu0 %v1159
    %1261 = vmatpush1.bf16.msra.mxu0 %v1158
    %1262 = vmatprep.subr.bf16.mxu0 %v1163
    %1263 = vmatpush1.bf16.msra.mxu0 %v1162
    %1264 = vmatprep.subr.bf16.mxu0 %v1167
    %1265 = vmatpush1.bf16.msra.mxu0 %v1166
    %1266 = vmatprep.mubr.bf16.mxu0 %v813
    %1267 = vmatmul.mubr.bf16.gmra.mrb[0].mxu0 %v812
    %v1268 = vpop.f32.mrb[0].mxu0
    %v1269 = vadd.f32 %v897, %v1268
    %v1270 = vpop.f32.mrb[0].mxu0
    %v1271 = vadd.f32 %v901, %v1270
    %v1272 = vpop.f32.mrb[0].mxu0
    %v1273 = vadd.f32 %v897, %v1272
    %v1274 = vpop.f32.mrb[0].mxu0
    %v1275 = vadd.f32 %v901, %v1274
    %1276 = vmatprep.mubr.bf16.mxu0 %v815
    %1277 = vmatmul.mubr.bf16.gmra.mrb[0].mxu0 %v814
    %v1278 = vpop.f32.mrb[0].mxu0
    %v1279 = vadd.f32 %v897, %v1278
    %v1280 = vpop.f32.mrb[0].mxu0
    %v1281 = vadd.f32 %v901, %v1280
    %v1282 = vpop.f32.mrb[0].mxu0
    %v1283 = vadd.f32 %v897, %v1282
    %v1284 = vpop.f32.mrb[0].mxu0
    %v1285 = vadd.f32 %v901, %v1284
    %1286 = vmatprep.mubr.bf16.mxu0 %v817
    %1287 = vmatmul.mubr.bf16.gmra.mrb[0].mxu0 %v816
    %v1288 = vpop.f32.mrb[0].mxu0
    %v1289 = vadd.f32 %v897, %v1288
    %v1290 = vpop.f32.mrb[0].mxu0
    %v1291 = vadd.f32 %v901, %v1290
    %v1292 = vpop.f32.mrb[0].mxu0
    %v1293 = vadd.f32 %v897, %v1292
    %v1294 = vpop.f32.mrb[0].mxu0
    %v1295 = vadd.f32 %v901, %v1294
    %1296 = vmatprep.mubr.bf16.mxu0 %v819
    %1297 = vmatmul.mubr.bf16.gmra.mrb[0].mxu0 %v818
    %v1298 = vpop.f32.mrb[0].mxu0
    %v1299 = vadd.f32 %v897, %v1298
    %v1300 = vpop.f32.mrb[0].mxu0
    %v1301 = vadd.f32 %v901, %v1300
    %v1302 = vpop.f32.mrb[0].mxu0
    %v1303 = vadd.f32 %v897, %v1302
    %v1304 = vpop.f32.mrb[0].mxu0
    %v1305 = vadd.f32 %v901, %v1304
    %1306 = vmatprep.mubr.bf16.mxu0 %v821
    %1307 = vmatmul.mubr.bf16.gmra.mrb[0].mxu0 %v820
    %v1308 = vpop.f32.mrb[0].mxu0
    %v1309 = vadd.f32 %v897, %v1308
    %v1310 = vpop.f32.mrb[0].mxu0
    %v1311 = vadd.f32 %v901, %v1310
    %v1312 = vpop.f32.mrb[0].mxu0
    %v1313 = vadd.f32 %v897, %v1312
    %v1314 = vpop.f32.mrb[0].mxu0
    %v1315 = vadd.f32 %v901, %v1314
    %1316 = vmatprep.mubr.bf16.mxu0 %v823
    %1317 = vmatmul.mubr.bf16.gmra.mrb[0].mxu0 %v822
    %v1318 = vpop.f32.mrb[0].mxu0
    %v1319 = vadd.f32 %v897, %v1318
    %v1320 = vpop.f32.mrb[0].mxu0
    %v1321 = vadd.f32 %v901, %v1320
    %v1322 = vpop.f32.mrb[0].mxu0
    %v1323 = vadd.f32 %v897, %v1322
    %v1324 = vpop.f32.mrb[0].mxu0
    %v1325 = vadd.f32 %v901, %v1324
    %1326 = vmatprep.mubr.bf16.mxu0 %v825
    %1327 = vmatmul.mubr.bf16.gmra.mrb[0].mxu0 %v824
    %v1328 = vpop.f32.mrb[0].mxu0
    %v1329 = vadd.f32 %v897, %v1328
    %v1330 = vpop.f32.mrb[0].mxu0
    %v1331 = vadd.f32 %v901, %v1330
    %v1332 = vpop.f32.mrb[0].mxu0
    %v1333 = vadd.f32 %v897, %v1332
    %v1334 = vpop.f32.mrb[0].mxu0
    %v1335 = vadd.f32 %v901, %v1334
    %1336 = vmatprep.mubr.bf16.mxu0 %v827
    %1337 = vmatmul.mubr.bf16.gmra.mrb[0].mxu0 %v826
    %v1338 = vpop.f32.mrb[0].mxu0
    %v1339 = vadd.f32 %v897, %v1338
    %v1340 = vpop.f32.mrb[0].mxu0
    %v1341 = vadd.f32 %v901, %v1340
    %v1342 = vpop.f32.mrb[0].mxu0
    %v1343 = vadd.f32 %v897, %v1342
    %v1344 = vpop.f32.mrb[0].mxu0
    %v1345 = vadd.f32 %v901, %v1344
    %1346 = vdwg.mxu0
    %1347 = vmatprep.subr.bf16.mxu0 %v1109
    %1348 = vmatpush1.bf16.msra.mxu0 %v1108
    %1349 = vmatprep.subr.bf16.mxu0 %v1113
    %1350 = vmatpush1.bf16.msra.mxu0 %v1112
    %1351 = vmatprep.subr.bf16.mxu0 %v1117
    %1352 = vmatpush1.bf16.msra.mxu0 %v1116
    %1353 = vmatprep.subr.bf16.mxu0 %v1121
    %1354 = vmatpush1.bf16.msra.mxu0 %v1120
    %1355 = vmatprep.subr.bf16.mxu0 %v1125
    %1356 = vmatpush1.bf16.msra.mxu0 %v1124
    %1357 = vmatprep.subr.bf16.mxu0 %v1129
    %1358 = vmatpush1.bf16.msra.mxu0 %v1128
    %1359 = vmatprep.subr.bf16.mxu0 %v1133
    %1360 = vmatpush1.bf16.msra.mxu0 %v1132
    %1361 = vmatprep.subr.bf16.mxu0 %v1137
    %1362 = vmatpush1.bf16.msra.mxu0 %v1136
    %1363 = vmatprep.subr.bf16.mxu0 %v1141
    %1364 = vmatpush1.bf16.msra.mxu0 %v1140
    %1365 = vmatprep.subr.bf16.mxu0 %v1145
    %1366 = vmatpush1.bf16.msra.mxu0 %v1144
    %1367 = vmatprep.subr.bf16.mxu0 %v1149
    %1368 = vmatpush1.bf16.msra.mxu0 %v1148
    %1369 = vmatprep.subr.bf16.mxu0 %v1153
    %1370 = vmatpush1.bf16.msra.mxu0 %v1152
    %1371 = vmatprep.subr.bf16.mxu0 %v1157
    %1372 = vmatpush1.bf16.msra.mxu0 %v1156
    %1373 = vmatprep.subr.bf16.mxu0 %v1161
    %1374 = vmatpush1.bf16.msra.mxu0 %v1160
    %1375 = vmatprep.subr.bf16.mxu0 %v1165
    %1376 = vmatpush1.bf16.msra.mxu0 %v1164
    %1377 = vmatprep.subr.bf16.mxu0 %v1169
    %1378 = vmatpush1.bf16.msra.mxu0 %v1168
    %1379 = vmatprep.mubr.bf16.mxu0 %v813
    %1380 = vmatmul.mubr.bf16.gmra.mrb[0].mxu0 %v812
    %v1381 = vpop.f32.mrb[0].mxu0
    %v1382 = vadd.f32 %v905, %v1381
    %v1383 = vpop.f32.mrb[0].mxu0
    %v1384 = vadd.f32 %v909, %v1383
    %v1385 = vpop.f32.mrb[0].mxu0
    %v1386 = vadd.f32 %v905, %v1385
    %v1387 = vpop.f32.mrb[0].mxu0
    %v1388 = vadd.f32 %v909, %v1387
    %1389 = vmatprep.mubr.bf16.mxu0 %v815
    %1390 = vmatmul.mubr.bf16.gmra.mrb[0].mxu0 %v814
    %v1391 = vpop.f32.mrb[0].mxu0
    %v1392 = vadd.f32 %v905, %v1391
    %v1393 = vpop.f32.mrb[0].mxu0
    %v1394 = vadd.f32 %v909, %v1393
    %v1395 = vpop.f32.mrb[0].mxu0
    %v1396 = vadd.f32 %v905, %v1395
    %v1397 = vpop.f32.mrb[0].mxu0
    %v1398 = vadd.f32 %v909, %v1397
    %1399 = vmatprep.mubr.bf16.mxu0 %v817
    %1400 = vmatmul.mubr.bf16.gmra.mrb[0].mxu0 %v816
    %v1401 = vpop.f32.mrb[0].mxu0
    %v1402 = vadd.f32 %v905, %v1401
    %v1403 = vpop.f32.mrb[0].mxu0
    %v1404 = vadd.f32 %v909, %v1403
    %v1405 = vpop.f32.mrb[0].mxu0
    %v1406 = vadd.f32 %v905, %v1405
    %v1407 = vpop.f32.mrb[0].mxu0
    %v1408 = vadd.f32 %v909, %v1407
    %1409 = vmatprep.mubr.bf16.mxu0 %v819
    %1410 = vmatmul.mubr.bf16.gmra.mrb[0].mxu0 %v818
    %v1411 = vpop.f32.mrb[0].mxu0
    %v1412 = vadd.f32 %v905, %v1411
    %v1413 = vpop.f32.mrb[0].mxu0
    %v1414 = vadd.f32 %v909, %v1413
    %v1415 = vpop.f32.mrb[0].mxu0
    %v1416 = vadd.f32 %v905, %v1415
    %v1417 = vpop.f32.mrb[0].mxu0
    %v1418 = vadd.f32 %v909, %v1417
    %1419 = vmatprep.mubr.bf16.mxu0 %v821
    %1420 = vmatmul.mubr.bf16.gmra.mrb[0].mxu0 %v820
    %v1421 = vpop.f32.mrb[0].mxu0
    %v1422 = vadd.f32 %v905, %v1421
    %v1423 = vpop.f32.mrb[0].mxu0
    %v1424 = vadd.f32 %v909, %v1423
    %v1425 = vpop.f32.mrb[0].mxu0
    %v1426 = vadd.f32 %v905, %v1425
    %v1427 = vpop.f32.mrb[0].mxu0
    %v1428 = vadd.f32 %v909, %v1427
    %1429 = vmatprep.mubr.bf16.mxu0 %v823
    %1430 = vmatmul.mubr.bf16.gmra.mrb[0].mxu0 %v822
    %v1431 = vpop.f32.mrb[0].mxu0
    %v1432 = vadd.f32 %v905, %v1431
    %v1433 = vpop.f32.mrb[0].mxu0
    %v1434 = vadd.f32 %v909, %v1433
    %v1435 = vpop.f32.mrb[0].mxu0
    %v1436 = vadd.f32 %v905, %v1435
    %v1437 = vpop.f32.mrb[0].mxu0
    %v1438 = vadd.f32 %v909, %v1437
    %1439 = vmatprep.mubr.bf16.mxu0 %v825
    %1440 = vmatmul.mubr.bf16.gmra.mrb[0].mxu0 %v824
    %v1441 = vpop.f32.mrb[0].mxu0
    %v1442 = vadd.f32 %v905, %v1441
    %v1443 = vpop.f32.mrb[0].mxu0
    %v1444 = vadd.f32 %v909, %v1443
    %v1445 = vpop.f32.mrb[0].mxu0
    %v1446 = vadd.f32 %v905, %v1445
    %v1447 = vpop.f32.mrb[0].mxu0
    %v1448 = vadd.f32 %v909, %v1447
    %1449 = vmatprep.mubr.bf16.mxu0 %v827
    %1450 = vmatmul.mubr.bf16.gmra.mrb[0].mxu0 %v826
    %v1451 = vpop.f32.mrb[0].mxu0
    %v1452 = vadd.f32 %v905, %v1451
    %v1453 = vpop.f32.mrb[0].mxu0
    %v1454 = vadd.f32 %v909, %v1453
    %v1455 = vpop.f32.mrb[0].mxu0
    %v1456 = vadd.f32 %v905, %v1455
    %v1457 = vpop.f32.mrb[0].mxu0
    %v1458 = vadd.f32 %v909, %v1457
    %1459 = vdwg.mxu0
    %v1460 = vmax.f32 %v1269, %v1271
    %v1461 = vmax.f32 %v1460, %v1382
    %v1462 = vmax.f32 %v1461, %v1384
    %1463 = vmax.xlane.f32.xlu0 %v1462
    %v1464 = vpop.xlane.xlu0 %1463
    %v1465 = vmax.f32 %v1273, %v1275
    %v1466 = vmax.f32 %v1465, %v1386
    %v1467 = vmax.f32 %v1466, %v1388
    %1468 = vmax.xlane.f32.xlu0 %v1467
    %v1469 = vpop.xlane.xlu0 %1468
    %v1470 = vmax.f32 %v1279, %v1281
    %v1471 = vmax.f32 %v1470, %v1392
    %v1472 = vmax.f32 %v1471, %v1394
    %1473 = vmax.xlane.f32.xlu0 %v1472
    %v1474 = vpop.xlane.xlu0 %1473
    %v1475 = vmax.f32 %v1283, %v1285
    %v1476 = vmax.f32 %v1475, %v1396
    %v1477 = vmax.f32 %v1476, %v1398
    %1478 = vmax.xlane.f32.xlu0 %v1477
    %v1479 = vpop.xlane.xlu0 %1478
    %v1480 = vmax.f32 %v1289, %v1291
    %v1481 = vmax.f32 %v1480, %v1402
    %v1482 = vmax.f32 %v1481, %v1404
    %1483 = vmax.xlane.f32.xlu0 %v1482
    %v1484 = vpop.xlane.xlu0 %1483
    %v1485 = vmax.f32 %v1293, %v1295
    %v1486 = vmax.f32 %v1485, %v1406
    %v1487 = vmax.f32 %v1486, %v1408
    %1488 = vmax.xlane.f32.xlu0 %v1487
    %v1489 = vpop.xlane.xlu0 %1488
    %v1490 = vmax.f32 %v1299, %v1301
    %v1491 = vmax.f32 %v1490, %v1412
    %v1492 = vmax.f32 %v1491, %v1414
    %1493 = vmax.xlane.f32.xlu0 %v1492
    %v1494 = vpop.xlane.xlu0 %1493
    %v1495 = vmax.f32 %v1303, %v1305
    %v1496 = vmax.f32 %v1495, %v1416
    %v1497 = vmax.f32 %v1496, %v1418
    %1498 = vmax.xlane.f32.xlu0 %v1497
    %v1499 = vpop.xlane.xlu0 %1498
    %v1500 = vmax.f32 %v1309, %v1311
    %v1501 = vmax.f32 %v1500, %v1422
    %v1502 = vmax.f32 %v1501, %v1424
    %1503 = vmax.xlane.f32.xlu0 %v1502
    %v1504 = vpop.xlane.xlu0 %1503
    %v1505 = vmax.f32 %v1313, %v1315
    %v1506 = vmax.f32 %v1505, %v1426
    %v1507 = vmax.f32 %v1506, %v1428
    %1508 = vmax.xlane.f32.xlu0 %v1507
    %v1509 = vpop.xlane.xlu0 %1508
    %v1510 = vmax.f32 %v1319, %v1321
    %v1511 = vmax.f32 %v1510, %v1432
    %v1512 = vmax.f32 %v1511, %v1434
    %1513 = vmax.xlane.f32.xlu0 %v1512
    %v1514 = vpop.xlane.xlu0 %1513
    %v1515 = vmax.f32 %v1323, %v1325
    %v1516 = vmax.f32 %v1515, %v1436
    %v1517 = vmax.f32 %v1516, %v1438
    %1518 = vmax.xlane.f32.xlu0 %v1517
    %v1519 = vpop.xlane.xlu0 %1518
    %v1520 = vmax.f32 %v1329, %v1331
    %v1521 = vmax.f32 %v1520, %v1442
    %v1522 = vmax.f32 %v1521, %v1444
    %1523 = vmax.xlane.f32.xlu0 %v1522
    %v1524 = vpop.xlane.xlu0 %1523
    %v1525 = vmax.f32 %v1333, %v1335
    %v1526 = vmax.f32 %v1525, %v1446
    %v1527 = vmax.f32 %v1526, %v1448
    %1528 = vmax.xlane.f32.xlu0 %v1527
    %v1529 = vpop.xlane.xlu0 %1528
    %v1530 = vmax.f32 %v1339, %v1341
    %v1531 = vmax.f32 %v1530, %v1452
    %v1532 = vmax.f32 %v1531, %v1454
    %1533 = vmax.xlane.f32.xlu0 %v1532
    %v1534 = vpop.xlane.xlu0 %1533
    %v1535 = vmax.f32 %v1343, %v1345
    %v1536 = vmax.f32 %v1535, %v1456
    %v1537 = vmax.f32 %v1536, %v1458
    %1538 = vmax.xlane.f32.xlu0 %v1537
    %v1539 = vpop.xlane.xlu0 %1538
    %v1540 = vsub.f32 %v1269, %v1464
    %v1541 = vsub.f32 %v1271, %v1464
    %v1542 = vsub.f32 %v1382, %v1464
    %v1543 = vsub.f32 %v1384, %v1464
    %v1544 = vsub.f32 %v1273, %v1469
    %v1545 = vsub.f32 %v1275, %v1469
    %v1546 = vsub.f32 %v1386, %v1469
    %v1547 = vsub.f32 %v1388, %v1469
    %v1548 = vsub.f32 %v1279, %v1474
    %v1549 = vsub.f32 %v1281, %v1474
    %v1550 = vsub.f32 %v1392, %v1474
    %v1551 = vsub.f32 %v1394, %v1474
    %v1552 = vsub.f32 %v1283, %v1479
    %v1553 = vsub.f32 %v1285, %v1479
    %v1554 = vsub.f32 %v1396, %v1479
    %v1555 = vsub.f32 %v1398, %v1479
    %v1556 = vsub.f32 %v1289, %v1484
    %v1557 = vsub.f32 %v1291, %v1484
    %v1558 = vsub.f32 %v1402, %v1484
    %v1559 = vsub.f32 %v1404, %v1484
    %v1560 = vsub.f32 %v1293, %v1489
    %v1561 = vsub.f32 %v1295, %v1489
    %v1562 = vsub.f32 %v1406, %v1489
    %v1563 = vsub.f32 %v1408, %v1489
    %v1564 = vsub.f32 %v1299, %v1494
    %v1565 = vsub.f32 %v1301, %v1494
    %v1566 = vsub.f32 %v1412, %v1494
    %v1567 = vsub.f32 %v1414, %v1494
    %v1568 = vsub.f32 %v1303, %v1499
    %v1569 = vsub.f32 %v1305, %v1499
    %v1570 = vsub.f32 %v1416, %v1499
    %v1571 = vsub.f32 %v1418, %v1499
    %v1572 = vsub.f32 %v1309, %v1504
    %v1573 = vsub.f32 %v1311, %v1504
    %v1574 = vsub.f32 %v1422, %v1504
    %v1575 = vsub.f32 %v1424, %v1504
    %v1576 = vsub.f32 %v1313, %v1509
    %v1577 = vsub.f32 %v1315, %v1509
    %v1578 = vsub.f32 %v1426, %v1509
    %v1579 = vsub.f32 %v1428, %v1509
    %v1580 = vsub.f32 %v1319, %v1514
    %v1581 = vsub.f32 %v1321, %v1514
    %v1582 = vsub.f32 %v1432, %v1514
    %v1583 = vsub.f32 %v1434, %v1514
    %v1584 = vsub.f32 %v1323, %v1519
    %v1585 = vsub.f32 %v1325, %v1519
    %v1586 = vsub.f32 %v1436, %v1519
    %v1587 = vsub.f32 %v1438, %v1519
    %v1588 = vsub.f32 %v1329, %v1524
    %v1589 = vsub.f32 %v1331, %v1524
    %v1590 = vsub.f32 %v1442, %v1524
    %v1591 = vsub.f32 %v1444, %v1524
    %v1592 = vsub.f32 %v1333, %v1529
    %v1593 = vsub.f32 %v1335, %v1529
    %v1594 = vsub.f32 %v1446, %v1529
    %v1595 = vsub.f32 %v1448, %v1529
    %v1596 = vsub.f32 %v1339, %v1534
    %v1597 = vsub.f32 %v1341, %v1534
    %v1598 = vsub.f32 %v1452, %v1534
    %v1599 = vsub.f32 %v1454, %v1534
    %v1600 = vsub.f32 %v1343, %v1539
    %v1601 = vsub.f32 %v1345, %v1539
    %v1602 = vsub.f32 %v1456, %v1539
    %v1603 = vsub.f32 %v1458, %v1539
    %v1604 = vmul.f32 %v1540, 1.442695
    %v1605 = vpow.pop %v1604
    %v1606 = vmul.f32 %v1541, 1.442695
    %v1607 = vpow.pop %v1606
    %v1608 = vmul.f32 %v1542, 1.442695
    %v1609 = vpow.pop %v1608
    %v1610 = vmul.f32 %v1543, 1.442695
    %v1611 = vpow.pop %v1610
    %v1612 = vmul.f32 %v1544, 1.442695
    %v1613 = vpow.pop %v1612
    %v1614 = vmul.f32 %v1545, 1.442695
    %v1615 = vpow.pop %v1614
    %v1616 = vmul.f32 %v1546, 1.442695
    %v1617 = vpow.pop %v1616
    %v1618 = vmul.f32 %v1547, 1.442695
    %v1619 = vpow.pop %v1618
    %v1620 = vmul.f32 %v1548, 1.442695
    %v1621 = vpow.pop %v1620
    %v1622 = vmul.f32 %v1549, 1.442695
    %v1623 = vpow.pop %v1622
    %v1624 = vmul.f32 %v1550, 1.442695
    %v1625 = vpow.pop %v1624
    %v1626 = vmul.f32 %v1551, 1.442695
    %v1627 = vpow.pop %v1626
    %v1628 = vmul.f32 %v1552, 1.442695
    %v1629 = vpow.pop %v1628
    %v1630 = vmul.f32 %v1553, 1.442695
    %v1631 = vpow.pop %v1630
    %v1632 = vmul.f32 %v1554, 1.442695
    %v1633 = vpow.pop %v1632
    %v1634 = vmul.f32 %v1555, 1.442695
    %v1635 = vpow.pop %v1634
    %v1636 = vmul.f32 %v1556, 1.442695
    %v1637 = vpow.pop %v1636
    %v1638 = vmul.f32 %v1557, 1.442695
    %v1639 = vpow.pop %v1638
    %v1640 = vmul.f32 %v1558, 1.442695
    %v1641 = vpow.pop %v1640
    %v1642 = vmul.f32 %v1559, 1.442695
    %v1643 = vpow.pop %v1642
    %v1644 = vmul.f32 %v1560, 1.442695
    %v1645 = vpow.pop %v1644
    %v1646 = vmul.f32 %v1561, 1.442695
    %v1647 = vpow.pop %v1646
    %v1648 = vmul.f32 %v1562, 1.442695
    %v1649 = vpow.pop %v1648
    %v1650 = vmul.f32 %v1563, 1.442695
    %v1651 = vpow.pop %v1650
    %v1652 = vmul.f32 %v1564, 1.442695
    %v1653 = vpow.pop %v1652
    %v1654 = vmul.f32 %v1565, 1.442695
    %v1655 = vpow.pop %v1654
    %v1656 = vmul.f32 %v1566, 1.442695
    %v1657 = vpow.pop %v1656
    %v1658 = vmul.f32 %v1567, 1.442695
    %v1659 = vpow.pop %v1658
    %v1660 = vmul.f32 %v1568, 1.442695
    %v1661 = vpow.pop %v1660
    %v1662 = vmul.f32 %v1569, 1.442695
    %v1663 = vpow.pop %v1662
    %v1664 = vmul.f32 %v1570, 1.442695
    %v1665 = vpow.pop %v1664
    %v1666 = vmul.f32 %v1571, 1.442695
    %v1667 = vpow.pop %v1666
    %v1668 = vmul.f32 %v1572, 1.442695
    %v1669 = vpow.pop %v1668
    %v1670 = vmul.f32 %v1573, 1.442695
    %v1671 = vpow.pop %v1670
    %v1672 = vmul.f32 %v1574, 1.442695
    %v1673 = vpow.pop %v1672
    %v1674 = vmul.f32 %v1575, 1.442695
    %v1675 = vpow.pop %v1674
    %v1676 = vmul.f32 %v1576, 1.442695
    %v1677 = vpow.pop %v1676
    %v1678 = vmul.f32 %v1577, 1.442695
    %v1679 = vpow.pop %v1678
    %v1680 = vmul.f32 %v1578, 1.442695
    %v1681 = vpow.pop %v1680
    %v1682 = vmul.f32 %v1579, 1.442695
    %v1683 = vpow.pop %v1682
    %v1684 = vmul.f32 %v1580, 1.442695
    %v1685 = vpow.pop %v1684
    %v1686 = vmul.f32 %v1581, 1.442695
    %v1687 = vpow.pop %v1686
    %v1688 = vmul.f32 %v1582, 1.442695
    %v1689 = vpow.pop %v1688
    %v1690 = vmul.f32 %v1583, 1.442695
    %v1691 = vpow.pop %v1690
    %v1692 = vmul.f32 %v1584, 1.442695
    %v1693 = vpow.pop %v1692
    %v1694 = vmul.f32 %v1585, 1.442695
    %v1695 = vpow.pop %v1694
    %v1696 = vmul.f32 %v1586, 1.442695
    %v1697 = vpow.pop %v1696
    %v1698 = vmul.f32 %v1587, 1.442695
    %v1699 = vpow.pop %v1698
    %v1700 = vmul.f32 %v1588, 1.442695
    %v1701 = vpow.pop %v1700
    %v1702 = vmul.f32 %v1589, 1.442695
    %v1703 = vpow.pop %v1702
    %v1704 = vmul.f32 %v1590, 1.442695
    %v1705 = vpow.pop %v1704
    %v1706 = vmul.f32 %v1591, 1.442695
    %v1707 = vpow.pop %v1706
    %v1708 = vmul.f32 %v1592, 1.442695
    %v1709 = vpow.pop %v1708
    %v1710 = vmul.f32 %v1593, 1.442695
    %v1711 = vpow.pop %v1710
    %v1712 = vmul.f32 %v1594, 1.442695
    %v1713 = vpow.pop %v1712
    %v1714 = vmul.f32 %v1595, 1.442695
    %v1715 = vpow.pop %v1714
    %v1716 = vmul.f32 %v1596, 1.442695
    %v1717 = vpow.pop %v1716
    %v1718 = vmul.f32 %v1597, 1.442695
    %v1719 = vpow.pop %v1718
    %v1720 = vmul.f32 %v1598, 1.442695
    %v1721 = vpow.pop %v1720
    %v1722 = vmul.f32 %v1599, 1.442695
    %v1723 = vpow.pop %v1722
    %v1724 = vmul.f32 %v1600, 1.442695
    %v1725 = vpow.pop %v1724
    %v1726 = vmul.f32 %v1601, 1.442695
    %v1727 = vpow.pop %v1726
    %v1728 = vmul.f32 %v1602, 1.442695
    %v1729 = vpow.pop %v1728
    %v1730 = vmul.f32 %v1603, 1.442695
    %v1731 = vpow.pop %v1730
    %v1732 = vadd.f32 %v1605, %v1607
    %v1733 = vadd.f32 %v1732, %v1609
    %v1734 = vadd.f32 %v1733, %v1611
    %1735 = vadd.xlane.f32.xlu0 %v1734
    %v1736 = vpop.xlane.xlu0 %1735
    %v1737 = vadd.f32 %v1613, %v1615
    %v1738 = vadd.f32 %v1737, %v1617
    %v1739 = vadd.f32 %v1738, %v1619
    %1740 = vadd.xlane.f32.xlu0 %v1739
    %v1741 = vpop.xlane.xlu0 %1740
    %v1742 = vadd.f32 %v1621, %v1623
    %v1743 = vadd.f32 %v1742, %v1625
    %v1744 = vadd.f32 %v1743, %v1627
    %1745 = vadd.xlane.f32.xlu0 %v1744
    %v1746 = vpop.xlane.xlu0 %1745
    %v1747 = vadd.f32 %v1629, %v1631
    %v1748 = vadd.f32 %v1747, %v1633
    %v1749 = vadd.f32 %v1748, %v1635
    %1750 = vadd.xlane.f32.xlu0 %v1749
    %v1751 = vpop.xlane.xlu0 %1750
    %v1752 = vadd.f32 %v1637, %v1639
    %v1753 = vadd.f32 %v1752, %v1641
    %v1754 = vadd.f32 %v1753, %v1643
    %1755 = vadd.xlane.f32.xlu0 %v1754
    %v1756 = vpop.xlane.xlu0 %1755
    %v1757 = vadd.f32 %v1645, %v1647
    %v1758 = vadd.f32 %v1757, %v1649
    %v1759 = vadd.f32 %v1758, %v1651
    %1760 = vadd.xlane.f32.xlu0 %v1759
    %v1761 = vpop.xlane.xlu0 %1760
    %v1762 = vadd.f32 %v1653, %v1655
    %v1763 = vadd.f32 %v1762, %v1657
    %v1764 = vadd.f32 %v1763, %v1659
    %1765 = vadd.xlane.f32.xlu0 %v1764
    %v1766 = vpop.xlane.xlu0 %1765
    %v1767 = vadd.f32 %v1661, %v1663
    %v1768 = vadd.f32 %v1767, %v1665
    %v1769 = vadd.f32 %v1768, %v1667
    %1770 = vadd.xlane.f32.xlu0 %v1769
    %v1771 = vpop.xlane.xlu0 %1770
    %v1772 = vadd.f32 %v1669, %v1671
    %v1773 = vadd.f32 %v1772, %v1673
    %v1774 = vadd.f32 %v1773, %v1675
    %1775 = vadd.xlane.f32.xlu0 %v1774
    %v1776 = vpop.xlane.xlu0 %1775
    %v1777 = vadd.f32 %v1677, %v1679
    %v1778 = vadd.f32 %v1777, %v1681
    %v1779 = vadd.f32 %v1778, %v1683
    %1780 = vadd.xlane.f32.xlu0 %v1779
    %v1781 = vpop.xlane.xlu0 %1780
    %v1782 = vadd.f32 %v1685, %v1687
    %v1783 = vadd.f32 %v1782, %v1689
    %v1784 = vadd.f32 %v1783, %v1691
    %1785 = vadd.xlane.f32.xlu0 %v1784
    %v1786 = vpop.xlane.xlu0 %1785
    %v1787 = vadd.f32 %v1693, %v1695
    %v1788 = vadd.f32 %v1787, %v1697
    %v1789 = vadd.f32 %v1788, %v1699
    %1790 = vadd.xlane.f32.xlu0 %v1789
    %v1791 = vpop.xlane.xlu0 %1790
    %v1792 = vadd.f32 %v1701, %v1703
    %v1793 = vadd.f32 %v1792, %v1705
    %v1794 = vadd.f32 %v1793, %v1707
    %1795 = vadd.xlane.f32.xlu0 %v1794
    %v1796 = vpop.xlane.xlu0 %1795
    %v1797 = vadd.f32 %v1709, %v1711
    %v1798 = vadd.f32 %v1797, %v1713
    %v1799 = vadd.f32 %v1798, %v1715
    %1800 = vadd.xlane.f32.xlu0 %v1799
    %v1801 = vpop.xlane.xlu0 %1800
    %v1802 = vadd.f32 %v1717, %v1719
    %v1803 = vadd.f32 %v1802, %v1721
    %v1804 = vadd.f32 %v1803, %v1723
    %1805 = vadd.xlane.f32.xlu0 %v1804
    %v1806 = vpop.xlane.xlu0 %1805
    %v1807 = vadd.f32 %v1725, %v1727
    %v1808 = vadd.f32 %v1807, %v1729
    %v1809 = vadd.f32 %v1808, %v1731
    %1810 = vadd.xlane.f32.xlu0 %v1809
    %v1811 = vpop.xlane.xlu0 %1810
    %v1812 = vrcp.pop %v1736
    %v1813 = vrcp.pop %v1741
    %v1814 = vrcp.pop %v1746
    %v1815 = vrcp.pop %v1751
    %v1816 = vrcp.pop %v1756
    %v1817 = vrcp.pop %v1761
    %v1818 = vrcp.pop %v1766
    %v1819 = vrcp.pop %v1771
    %v1820 = vrcp.pop %v1776
    %v1821 = vrcp.pop %v1781
    %v1822 = vrcp.pop %v1786
    %v1823 = vrcp.pop %v1791
    %v1824 = vrcp.pop %v1796
    %v1825 = vrcp.pop %v1801
    %v1826 = vrcp.pop %v1806
    %v1827 = vrcp.pop %v1811
    %v1828 = vmul.f32 %v1736, %v1812
    %v1829 = vmul.f32 %v1741, %v1813
    %v1830 = vmul.f32 %v1746, %v1814
    %v1831 = vmul.f32 %v1751, %v1815
    %v1832 = vmul.f32 %v1756, %v1816
    %v1833 = vmul.f32 %v1761, %v1817
    %v1834 = vmul.f32 %v1766, %v1818
    %v1835 = vmul.f32 %v1771, %v1819
    %v1836 = vmul.f32 %v1776, %v1820
    %v1837 = vmul.f32 %v1781, %v1821
    %v1838 = vmul.f32 %v1786, %v1822
    %v1839 = vmul.f32 %v1791, %v1823
    %v1840 = vmul.f32 %v1796, %v1824
    %v1841 = vmul.f32 %v1801, %v1825
    %v1842 = vmul.f32 %v1806, %v1826
    %v1843 = vmul.f32 %v1811, %v1827
    %v1844 = vsub.f32 2.0, %v1828
    %v1845 = vsub.f32 2.0, %v1829
    %v1846 = vsub.f32 2.0, %v1830
    %v1847 = vsub.f32 2.0, %v1831
    %v1848 = vsub.f32 2.0, %v1832
    %v1849 = vsub.f32 2.0, %v1833
    %v1850 = vsub.f32 2.0, %v1834
    %v1851 = vsub.f32 2.0, %v1835
    %v1852 = vsub.f32 2.0, %v1836
    %v1853 = vsub.f32 2.0, %v1837
    %v1854 = vsub.f32 2.0, %v1838
    %v1855 = vsub.f32 2.0, %v1839
    %v1856 = vsub.f32 2.0, %v1840
    %v1857 = vsub.f32 2.0, %v1841
    %v1858 = vsub.f32 2.0, %v1842
    %v1859 = vsub.f32 2.0, %v1843
    %v1860 = vmul.f32 %v1812, %v1844
    %v1861 = vmul.f32 %v1813, %v1845
    %v1862 = vmul.f32 %v1814, %v1846
    %v1863 = vmul.f32 %v1815, %v1847
    %v1864 = vmul.f32 %v1816, %v1848
    %v1865 = vmul.f32 %v1817, %v1849
    %v1866 = vmul.f32 %v1818, %v1850
    %v1867 = vmul.f32 %v1819, %v1851
    %v1868 = vmul.f32 %v1820, %v1852
    %v1869 = vmul.f32 %v1821, %v1853
    %v1870 = vmul.f32 %v1822, %v1854
    %v1871 = vmul.f32 %v1823, %v1855
    %v1872 = vmul.f32 %v1824, %v1856
    %v1873 = vmul.f32 %v1825, %v1857
    %v1874 = vmul.f32 %v1826, %v1858
    %v1875 = vmul.f32 %v1827, %v1859
    %v1876 = vmul.f32 %v1605, %v1860
    %v1877 = vmul.f32 %v1607, %v1860
    %v1878 = vmul.f32 %v1609, %v1860
    %v1879 = vmul.f32 %v1611, %v1860
    %v1880 = vmul.f32 %v1613, %v1861
    %v1881 = vmul.f32 %v1615, %v1861
    %v1882 = vmul.f32 %v1617, %v1861
    %v1883 = vmul.f32 %v1619, %v1861
    %v1884 = vmul.f32 %v1621, %v1862
    %v1885 = vmul.f32 %v1623, %v1862
    %v1886 = vmul.f32 %v1625, %v1862
    %v1887 = vmul.f32 %v1627, %v1862
    %v1888 = vmul.f32 %v1629, %v1863
    %v1889 = vmul.f32 %v1631, %v1863
    %v1890 = vmul.f32 %v1633, %v1863
    %v1891 = vmul.f32 %v1635, %v1863
    %v1892 = vmul.f32 %v1637, %v1864
    %v1893 = vmul.f32 %v1639, %v1864
    %v1894 = vmul.f32 %v1641, %v1864
    %v1895 = vmul.f32 %v1643, %v1864
    %v1896 = vmul.f32 %v1645, %v1865
    %v1897 = vmul.f32 %v1647, %v1865
    %v1898 = vmul.f32 %v1649, %v1865
    %v1899 = vmul.f32 %v1651, %v1865
    %v1900 = vmul.f32 %v1653, %v1866
    %v1901 = vmul.f32 %v1655, %v1866
    %v1902 = vmul.f32 %v1657, %v1866
    %v1903 = vmul.f32 %v1659, %v1866
    %v1904 = vmul.f32 %v1661, %v1867
    %v1905 = vmul.f32 %v1663, %v1867
    %v1906 = vmul.f32 %v1665, %v1867
    %v1907 = vmul.f32 %v1667, %v1867
    %v1908 = vmul.f32 %v1669, %v1868
    %v1909 = vmul.f32 %v1671, %v1868
    %v1910 = vmul.f32 %v1673, %v1868
    %v1911 = vmul.f32 %v1675, %v1868
    %v1912 = vmul.f32 %v1677, %v1869
    %v1913 = vmul.f32 %v1679, %v1869
    %v1914 = vmul.f32 %v1681, %v1869
    %v1915 = vmul.f32 %v1683, %v1869
    %v1916 = vmul.f32 %v1685, %v1870
    %v1917 = vmul.f32 %v1687, %v1870
    %v1918 = vmul.f32 %v1689, %v1870
    %v1919 = vmul.f32 %v1691, %v1870
    %v1920 = vmul.f32 %v1693, %v1871
    %v1921 = vmul.f32 %v1695, %v1871
    %v1922 = vmul.f32 %v1697, %v1871
    %v1923 = vmul.f32 %v1699, %v1871
    %v1924 = vmul.f32 %v1701, %v1872
    %v1925 = vmul.f32 %v1703, %v1872
    %v1926 = vmul.f32 %v1705, %v1872
    %v1927 = vmul.f32 %v1707, %v1872
    %v1928 = vmul.f32 %v1709, %v1873
    %v1929 = vmul.f32 %v1711, %v1873
    %v1930 = vmul.f32 %v1713, %v1873
    %v1931 = vmul.f32 %v1715, %v1873
    %v1932 = vmul.f32 %v1717, %v1874
    %v1933 = vmul.f32 %v1719, %v1874
    %v1934 = vmul.f32 %v1721, %v1874
    %v1935 = vmul.f32 %v1723, %v1874
    %v1936 = vmul.f32 %v1725, %v1875
    %v1937 = vmul.f32 %v1727, %v1875
    %v1938 = vmul.f32 %v1729, %v1875
    %v1939 = vmul.f32 %v1731, %v1875
    %1940 = vst [vmem:[#allocation8] sm:$0xff] %v1876
    %1941 = vst [vmem:[#allocation8 + $0x8] sm:$0xff] %v1877
    %1942 = vst [vmem:[#allocation8 + $0x10] sm:$0xff] %v1878
    %1943 = vst [vmem:[#allocation8 + $0x18] sm:$0xff] %v1879
    %1944 = vst [vmem:[#allocation8 + $0x20] sm:$0xff] %v1880
    %1945 = vst [vmem:[#allocation8 + $0x28] sm:$0xff] %v1881
    %1946 = vst [vmem:[#allocation8 + $0x30] sm:$0xff] %v1882
    %1947 = vst [vmem:[#allocation8 + $0x38] sm:$0xff] %v1883
    %1948 = vst [vmem:[#allocation8 + $0x40] sm:$0xff] %v1884
    %1949 = vst [vmem:[#allocation8 + $0x48] sm:$0xff] %v1885
    %1950 = vst [vmem:[#allocation8 + $0x50] sm:$0xff] %v1886
    %1951 = vst [vmem:[#allocation8 + $0x58] sm:$0xff] %v1887
    %1952 = vst [vmem:[#allocation8 + $0x60] sm:$0xff] %v1888
    %1953 = vst [vmem:[#allocation8 + $0x68] sm:$0xff] %v1889
    %1954 = vst [vmem:[#allocation8 + $0x70] sm:$0xff] %v1890
    %1955 = vst [vmem:[#allocation8 + $0x78] sm:$0xff] %v1891
    %1956 = vst [vmem:[#allocation8 + $0x80] sm:$0xff] %v1892
    %1957 = vst [vmem:[#allocation8 + $0x88] sm:$0xff] %v1893
    %1958 = vst [vmem:[#allocation8 + $0x90] sm:$0xff] %v1894
    %1959 = vst [vmem:[#allocation8 + $0x98] sm:$0xff] %v1895
    %1960 = vst [vmem:[#allocation8 + $0xa0] sm:$0xff] %v1896
    %1961 = vst [vmem:[#allocation8 + $0xa8] sm:$0xff] %v1897
    %1962 = vst [vmem:[#allocation8 + $0xb0] sm:$0xff] %v1898
    %1963 = vst [vmem:[#allocation8 + $0xb8] sm:$0xff] %v1899
    %1964 = vst [vmem:[#allocation8 + $0xc0] sm:$0xff] %v1900
    %1965 = vst [vmem:[#allocation8 + $0xc8] sm:$0xff] %v1901
    %1966 = vst [vmem:[#allocation8 + $0xd0] sm:$0xff] %v1902
    %1967 = vst [vmem:[#allocation8 + $0xd8] sm:$0xff] %v1903
    %1968 = vst [vmem:[#allocation8 + $0xe0] sm:$0xff] %v1904
    %1969 = vst [vmem:[#allocation8 + $0xe8] sm:$0xff] %v1905
    %1970 = vst [vmem:[#allocation8 + $0xf0] sm:$0xff] %v1906
    %1971 = vst [vmem:[#allocation8 + $0xf8] sm:$0xff] %v1907
    %1972 = vst [vmem:[#allocation8 + $0x100] sm:$0xff] %v1908
    %1973 = vst [vmem:[#allocation8 + $0x108] sm:$0xff] %v1909
    %1974 = vst [vmem:[#allocation8 + $0x110] sm:$0xff] %v1910
    %1975 = vst [vmem:[#allocation8 + $0x118] sm:$0xff] %v1911
    %1976 = vst [vmem:[#allocation8 + $0x120] sm:$0xff] %v1912
    %1977 = vst [vmem:[#allocation8 + $0x128] sm:$0xff] %v1913
    %1978 = vst [vmem:[#allocation8 + $0x130] sm:$0xff] %v1914
    %1979 = vst [vmem:[#allocation8 + $0x138] sm:$0xff] %v1915
    %1980 = vst [vmem:[#allocation8 + $0x140] sm:$0xff] %v1916
    %1981 = vst [vmem:[#allocation8 + $0x148] sm:$0xff] %v1917
    %1982 = vst [vmem:[#allocation8 + $0x150] sm:$0xff] %v1918
    %1983 = vst [vmem:[#allocation8 + $0x158] sm:$0xff] %v1919
    %1984 = vst [vmem:[#allocation8 + $0x160] sm:$0xff] %v1920
    %1985 = vst [vmem:[#allocation8 + $0x168] sm:$0xff] %v1921
    %1986 = vst [vmem:[#allocation8 + $0x170] sm:$0xff] %v1922
    %1987 = vst [vmem:[#allocation8 + $0x178] sm:$0xff] %v1923
    %1988 = vst [vmem:[#allocation8 + $0x180] sm:$0xff] %v1924
    %1989 = vst [vmem:[#allocation8 + $0x188] sm:$0xff] %v1925
    %1990 = vst [vmem:[#allocation8 + $0x190] sm:$0xff] %v1926
    %1991 = vst [vmem:[#allocation8 + $0x198] sm:$0xff] %v1927
    %1992 = vst [vmem:[#allocation8 + $0x1a0] sm:$0xff] %v1928
    %1993 = vst [vmem:[#allocation8 + $0x1a8] sm:$0xff] %v1929
    %1994 = vst [vmem:[#allocation8 + $0x1b0] sm:$0xff] %v1930
    %1995 = vst [vmem:[#allocation8 + $0x1b8] sm:$0xff] %v1931
    %1996 = vst [vmem:[#allocation8 + $0x1c0] sm:$0xff] %v1932
    %1997 = vst [vmem:[#allocation8 + $0x1c8] sm:$0xff] %v1933
    %1998 = vst [vmem:[#allocation8 + $0x1d0] sm:$0xff] %v1934
    %1999 = vst [vmem:[#allocation8 + $0x1d8] sm:$0xff] %v1935
    %2000 = vst [vmem:[#allocation8 + $0x1e0] sm:$0xff] %v1936
    %2001 = vst [vmem:[#allocation8 + $0x1e8] sm:$0xff] %v1937
    %2002 = vst [vmem:[#allocation8 + $0x1f0] sm:$0xff] %v1938
    %2003 = vst [vmem:[#allocation8 + $0x1f8] sm:$0xff] %v1939
    // Predicated region
    $region34: #{tpu_custom_call.1} parent=1 // pred_check
      _
    $region35: #{tpu_custom_call.1} parent=1 // pred_check_branch
      %2005 = sbr.rel (0) target = $region37
    $region36: #{tpu_custom_call.1} parent=1 // pred_region
      %s2007 = ssub.s32 8192, 8192
      %2008 = vsyncadd [#allocation4], %s2007
      %s2009 = sshll.u32 [#allocation8], 4
      %s2010 = int_to_ptr.vmem [resolvable:$true] %s2009
      %2015 = dma.vmem_to_hbm [thread:$0]  %s2010, 8192, %s5, [#allocation4], 512, 512, 32
    $region37: #{tpu_custom_call.1} parent=1 // pred_fallthru
      _
    // Predicated region
    $region38: #{tpu_custom_call.1} parent=1 // pred_check
      _
    $region39: #{tpu_custom_call.1} parent=1 // pred_check_branch
      %2017 = sbr.rel (0) target = $region41
    $region40: #{tpu_custom_call.1} parent=1 // pred_region
      %2018 = dma.done [#allocation4], 8192
    $region41: #{tpu_custom_call.1} parent=1 // pred_fallthru
      _
    %2019 = vsyncpa [#allocation3], 1
    %2020 = vsyncpa [#allocation6], 1
    %2021 = vsyncpa [#allocation4], 1

// kernel: tpu_custom_call.1
$region0: #{tpu_custom_call.1}
  #allocation0 [shape = 'u32[]', space=smem, size = 0x4, offset = 0x4, fixed_abs, tag = 'smem constant byte address 0x4 - core index']
  #allocation1 [shape = 'u32[144,128]{1,0:T(1,128)}', space=vmem, size = 0x12000, scoped, tag = 'internal scratch']
  %s0 = inlined_call_operand.hbm [shape: f32[128,512], index: 0, kind: input, shape index: {}]
  %s1 = inlined_call_operand.hbm [shape: bf16[512,256], index: 1, kind: input, shape index: {}]
  %s2 = inlined_call_operand.vmem [shape: f32[1,256], index: 2, kind: input, shape index: {}]
  %s3 = inlined_call_operand.hbm [shape: bf16[256,512], index: 3, kind: input, shape index: {}]
  %s4 = inlined_call_operand.vmem [shape: f32[1,512], index: 4, kind: input, shape index: {}]
  %s5 = inlined_call_operand.hbm [shape: f32[128,512], index: 5, kind: output, shape index: {}]
  %s6 = sld [smem:[#allocation0]]
  $region42: #{tpu_custom_call.1} parent=0
    _
  %s8 = ssub.s32 1, %s6
  %s9 = scalar_select 0, %s8, %s6
  $region1: #{tpu_custom_call.1} parent=0
    #allocation2 [shape = 'u8[262144]{0}', space=vmem, size = 0x40000, scoped, tag = 'input window, operand 0, single buffered']
    #allocation3 [shape = 's32[1]{0}', space=sflag, size = 0x4, scoped, tag = 'scoped memory for tpu_custom_call.1']
    #allocation4 [shape = 's32[1]{0}', space=sflag, size = 0x4, scoped, tag = 'scoped memory for tpu_custom_call.1']
    #allocation5 [shape = 'u8[262144]{0}', space=vmem, size = 0x40000, scoped, tag = 'input window, operand 1, single buffered']
    #allocation6 [shape = 's32[1]{0}', space=sflag, size = 0x4, scoped, tag = 'scoped memory for tpu_custom_call.1']
    #allocation7 [shape = 'u8[262144]{0}', space=vmem, size = 0x40000, scoped, tag = 'input window, operand 3, single buffered']
    #allocation8 [shape = 'u8[262144]{0}', space=vmem, size = 0x40000, scoped, tag = 'output window, operand 0, single buffered']
    %10 = vsyncpa [#allocation3], 0
    %11 = vsyncpa [#allocation6], 0
    %12 = vsyncpa [#allocation4], 0
    // Predicated region
    $region2: #{tpu_custom_call.1} parent=1 // pred_check
      _
    $region3: #{tpu_custom_call.1} parent=1 // pred_check_branch
      %14 = sbr.rel (0) target = $region5
    $region4: #{tpu_custom_call.1} parent=1 // pred_region
      %s16 = ssub.s32 8192, 8192
      %17 = vsyncadd [#allocation3], %s16
      %s18 = sshll.u32 [#allocation2], 4
      %s19 = int_to_ptr.vmem [resolvable:$true] %s18
      %24 = dma.hbm_to_vmem [thread:$0]  %s0, 8192, %s19, [#allocation3], 512, 512, 32
    $region5: #{tpu_custom_call.1} parent=1 // pred_fallthru
      _
    // Predicated region
    $region6: #{tpu_custom_call.1} parent=1 // pred_check
      _
    $region7: #{tpu_custom_call.1} parent=1 // pred_check_branch
      %26 = sbr.rel (0) target = $region9
    $region8: #{tpu_custom_call.1} parent=1 // pred_region
      %s28 = ssub.s32 8192, 8192
      %29 = vsyncadd [#allocation6], %s28
      %s30 = sshll.u32 [#allocation5], 4
      %s31 = int_to_ptr.vmem [resolvable:$true] %s30
      %36 = dma.hbm_to_vmem [thread:$0]  %s1, 8192, %s31, [#allocation6], 128, 128, 8
    $region9: #{tpu_custom_call.1} parent=1 // pred_fallthru
      _
    // Predicated region
    $region10: #{tpu_custom_call.1} parent=1 // pred_check
      _
    $region11: #{tpu_custom_call.1} parent=1 // pred_check_branch
      %38 = sbr.rel (0) target = $region13
    $region12: #{tpu_custom_call.1} parent=1 // pred_region
      _
    $region13: #{tpu_custom_call.1} parent=1 // pred_fallthru
      _
    // Predicated region
    $region14: #{tpu_custom_call.1} parent=1 // pred_check
      _
    $region15: #{tpu_custom_call.1} parent=1 // pred_check_branch
      %40 = sbr.rel (0) target = $region17
    $region16: #{tpu_custom_call.1} parent=1 // pred_region
      %s42 = ssub.s32 8192, 8192
      %43 = vsyncadd [#allocation6], %s42
      %s44 = sshll.u32 [#allocation7], 4
      %s45 = int_to_ptr.vmem [resolvable:$true] %s44
      %50 = dma.hbm_to_vmem [thread:$0]  %s3, 8192, %s45, [#allocation6], 256, 256, 16
    $region17: #{tpu_custom_call.1} parent=1 // pred_fallthru
      _
    // Predicated region
    $region18: #{tpu_custom_call.1} parent=1 // pred_check
      _
    $region19: #{tpu_custom_call.1} parent=1 // pred_check_branch
      %52 = sbr.rel (0) target = $region21
    $region20: #{tpu_custom_call.1} parent=1 // pred_region
      _
    $region21: #{tpu_custom_call.1} parent=1 // pred_fallthru
      _
    // Predicated region
    $region22: #{tpu_custom_call.1} parent=1 // pred_check
      _
    $region23: #{tpu_custom_call.1} parent=1 // pred_check_branch
      %54 = sbr.rel (0) target = $region25
    $region24: #{tpu_custom_call.1} parent=1 // pred_region
      %55 = dma.done [#allocation3], 8192
    $region25: #{tpu_custom_call.1} parent=1 // pred_fallthru
      _
    // Predicated region
    $region26: #{tpu_custom_call.1} parent=1 // pred_check
      _
    $region27: #{tpu_custom_call.1} parent=1 // pred_check_branch
      %57 = sbr.rel (0) target = $region29
    $region28: #{tpu_custom_call.1} parent=1 // pred_region
      %58 = dma.done [#allocation6], 8192
    $region29: #{tpu_custom_call.1} parent=1 // pred_fallthru
      _
    // Predicated region
    $region30: #{tpu_custom_call.1} parent=1 // pred_check
      _
    $region31: #{tpu_custom_call.1} parent=1 // pred_check_branch
      %60 = sbr.rel (0) target = $region33
    $region32: #{tpu_custom_call.1} parent=1 // pred_region
      %61 = dma.done [#allocation6], 8192
    $region33: #{tpu_custom_call.1} parent=1 // pred_fallthru
      _
    %v62 = vld [vmem:[#allocation2] sm:$0xff]
    %v63 = vld [vmem:[#allocation2 + $0x8] sm:$0xff]
    %v64 = vld [vmem:[#allocation2 + $0x10] sm:$0xff]
    %v65 = vld [vmem:[#allocation2 + $0x18] sm:$0xff]
    %v66 = vld [vmem:[#allocation2 + $0x20] sm:$0xff]
    %v67 = vld [vmem:[#allocation2 + $0x28] sm:$0xff]
    %v68 = vld [vmem:[#allocation2 + $0x30] sm:$0xff]
    %v69 = vld [vmem:[#allocation2 + $0x38] sm:$0xff]
    %v70 = vld [vmem:[#allocation2 + $0x40] sm:$0xff]
    %v71 = vld [vmem:[#allocation2 + $0x48] sm:$0xff]
    %v72 = vld [vmem:[#allocation2 + $0x50] sm:$0xff]
    %v73 = vld [vmem:[#allocation2 + $0x58] sm:$0xff]
    %v74 = vld [vmem:[#allocation2 + $0x60] sm:$0xff]
    %v75 = vld [vmem:[#allocation2 + $0x68] sm:$0xff]
    %v76 = vld [vmem:[#allocation2 + $0x70] sm:$0xff]
    %v77 = vld [vmem:[#allocation2 + $0x78] sm:$0xff]
    %v78 = vld [vmem:[#allocation2 + $0x80] sm:$0xff]
    %v79 = vld [vmem:[#allocation2 + $0x88] sm:$0xff]
    %v80 = vld [vmem:[#allocation2 + $0x90] sm:$0xff]
    %v81 = vld [vmem:[#allocation2 + $0x98] sm:$0xff]
    %v82 = vld [vmem:[#allocation2 + $0xa0] sm:$0xff]
    %v83 = vld [vmem:[#allocation2 + $0xa8] sm:$0xff]
    %v84 = vld [vmem:[#allocation2 + $0xb0] sm:$0xff]
    %v85 = vld [vmem:[#allocation2 + $0xb8] sm:$0xff]
    %v86 = vld [vmem:[#allocation2 + $0xc0] sm:$0xff]
    %v87 = vld [vmem:[#allocation2 + $0xc8] sm:$0xff]
    %v88 = vld [vmem:[#allocation2 + $0xd0] sm:$0xff]
    %v89 = vld [vmem:[#allocation2 + $0xd8] sm:$0xff]
    %v90 = vld [vmem:[#allocation2 + $0xe0] sm:$0xff]
    %v91 = vld [vmem:[#allocation2 + $0xe8] sm:$0xff]
    %v92 = vld [vmem:[#allocation2 + $0xf0] sm:$0xff]
    %v93 = vld [vmem:[#allocation2 + $0xf8] sm:$0xff]
    %v94 = vld [vmem:[#allocation2 + $0x100] sm:$0xff]
    %v95 = vld [vmem:[#allocation2 + $0x108] sm:$0xff]
    %v96 = vld [vmem:[#allocation2 + $0x110] sm:$0xff]
    %v97 = vld [vmem:[#allocation2 + $0x118] sm:$0xff]
    %v98 = vld [vmem:[#allocation2 + $0x120] sm:$0xff]
    %v99 = vld [vmem:[#allocation2 + $0x128] sm:$0xff]
    %v100 = vld [vmem:[#allocation2 + $0x130] sm:$0xff]
    %v101 = vld [vmem:[#allocation2 + $0x138] sm:$0xff]
    %v102 = vld [vmem:[#allocation2 + $0x140] sm:$0xff]
    %v103 = vld [vmem:[#allocation2 + $0x148] sm:$0xff]
    %v104 = vld [vmem:[#allocation2 + $0x150] sm:$0xff]
    %v105 = vld [vmem:[#allocation2 + $0x158] sm:$0xff]
    %v106 = vld [vmem:[#allocation2 + $0x160] sm:$0xff]
    %v107 = vld [vmem:[#allocation2 + $0x168] sm:$0xff]
    %v108 = vld [vmem:[#allocation2 + $0x170] sm:$0xff]
    %v109 = vld [vmem:[#allocation2 + $0x178] sm:$0xff]
    %v110 = vld [vmem:[#allocation2 + $0x180] sm:$0xff]
    %v111 = vld [vmem:[#allocation2 + $0x188] sm:$0xff]
    %v112 = vld [vmem:[#allocation2 + $0x190] sm:$0xff]
    %v113 = vld [vmem:[#allocation2 + $0x198] sm:$0xff]
    %v114 = vld [vmem:[#allocation2 + $0x1a0] sm:$0xff]
    %v115 = vld [vmem:[#allocation2 + $0x1a8] sm:$0xff]
    %v116 = vld [vmem:[#allocation2 + $0x1b0] sm:$0xff]
    %v117 = vld [vmem:[#allocation2 + $0x1b8] sm:$0xff]
    %v118 = vld [vmem:[#allocation2 + $0x1c0] sm:$0xff]
    %v119 = vld [vmem:[#allocation2 + $0x1c8] sm:$0xff]
    %v120 = vld [vmem:[#allocation2 + $0x1d0] sm:$0xff]
    %v121 = vld [vmem:[#allocation2 + $0x1d8] sm:$0xff]
    %v122 = vld [vmem:[#allocation2 + $0x1e0] sm:$0xff]
    %v123 = vld [vmem:[#allocation2 + $0x1e8] sm:$0xff]
    %v124 = vld [vmem:[#allocation2 + $0x1f0] sm:$0xff]
    %v125 = vld [vmem:[#allocation2 + $0x1f8] sm:$0xff]
    %v126 = vpack.c.bf16 %v66, %v62
    %v127 = vpack.c.bf16 %v67, %v63
    %v128 = vpack.c.bf16 %v68, %v64
    %v129 = vpack.c.bf16 %v69, %v65
    %v130 = vpack.c.bf16 %v74, %v70
    %v131 = vpack.c.bf16 %v75, %v71
    %v132 = vpack.c.bf16 %v76, %v72
    %v133 = vpack.c.bf16 %v77, %v73
    %v134 = vpack.c.bf16 %v82, %v78
    %v135 = vpack.c.bf16 %v83, %v79
    %v136 = vpack.c.bf16 %v84, %v80
    %v137 = vpack.c.bf16 %v85, %v81
    %v138 = vpack.c.bf16 %v90, %v86
    %v139 = vpack.c.bf16 %v91, %v87
    %v140 = vpack.c.bf16 %v92, %v88
    %v141 = vpack.c.bf16 %v93, %v89
    %v142 = vpack.c.bf16 %v98, %v94
    %v143 = vpack.c.bf16 %v99, %v95
    %v144 = vpack.c.bf16 %v100, %v96
    %v145 = vpack.c.bf16 %v101, %v97
    %v146 = vpack.c.bf16 %v106, %v102
    %v147 = vpack.c.bf16 %v107, %v103
    %v148 = vpack.c.bf16 %v108, %v104
    %v149 = vpack.c.bf16 %v109, %v105
    %v150 = vpack.c.bf16 %v114, %v110
    %v151 = vpack.c.bf16 %v115, %v111
    %v152 = vpack.c.bf16 %v116, %v112
    %v153 = vpack.c.bf16 %v117, %v113
    %v154 = vpack.c.bf16 %v122, %v118
    %v155 = vpack.c.bf16 %v123, %v119
    %v156 = vpack.c.bf16 %v124, %v120
    %v157 = vpack.c.bf16 %v125, %v121
    %v158 = vld [vmem:[#allocation5] sm:$0xff]
    %v159 = vld [vmem:[#allocation5 + $0x8] sm:$0xff]
    %v160 = vld [vmem:[#allocation5 + $0x10] sm:$0xff]
    %v161 = vld [vmem:[#allocation5 + $0x18] sm:$0xff]
    %v162 = vld [vmem:[#allocation5 + $0x20] sm:$0xff]
    %v163 = vld [vmem:[#allocation5 + $0x28] sm:$0xff]
    %v164 = vld [vmem:[#allocation5 + $0x30] sm:$0xff]
    %v165 = vld [vmem:[#allocation5 + $0x38] sm:$0xff]
    %v166 = vld [vmem:[#allocation5 + $0x40] sm:$0xff]
    %v167 = vld [vmem:[#allocation5 + $0x48] sm:$0xff]
    %v168 = vld [vmem:[#allocation5 + $0x50] sm:$0xff]
    %v169 = vld [vmem:[#allocation5 + $0x58] sm:$0xff]
    %v170 = vld [vmem:[#allocation5 + $0x60] sm:$0xff]
    %v171 = vld [vmem:[#allocation5 + $0x68] sm:$0xff]
    %v172 = vld [vmem:[#allocation5 + $0x70] sm:$0xff]
    %v173 = vld [vmem:[#allocation5 + $0x78] sm:$0xff]
    %v174 = vld [vmem:[#allocation5 + $0x80] sm:$0xff]
    %v175 = vld [vmem:[#allocation5 + $0x88] sm:$0xff]
    %v176 = vld [vmem:[#allocation5 + $0x90] sm:$0xff]
    %v177 = vld [vmem:[#allocation5 + $0x98] sm:$0xff]
    %v178 = vld [vmem:[#allocation5 + $0xa0] sm:$0xff]
    %v179 = vld [vmem:[#allocation5 + $0xa8] sm:$0xff]
    %v180 = vld [vmem:[#allocation5 + $0xb0] sm:$0xff]
    %v181 = vld [vmem:[#allocation5 + $0xb8] sm:$0xff]
    %v182 = vld [vmem:[#allocation5 + $0xc0] sm:$0xff]
    %v183 = vld [vmem:[#allocation5 + $0xc8] sm:$0xff]
    %v184 = vld [vmem:[#allocation5 + $0xd0] sm:$0xff]
    %v185 = vld [vmem:[#allocation5 + $0xd8] sm:$0xff]
    %v186 = vld [vmem:[#allocation5 + $0xe0] sm:$0xff]
    %v187 = vld [vmem:[#allocation5 + $0xe8] sm:$0xff]
    %v188 = vld [vmem:[#allocation5 + $0xf0] sm:$0xff]
    %v189 = vld [vmem:[#allocation5 + $0xf8] sm:$0xff]
    %v190 = vld [vmem:[#allocation5 + $0x100] sm:$0xff]
    %v191 = vld [vmem:[#allocation5 + $0x108] sm:$0xff]
    %v192 = vld [vmem:[#allocation5 + $0x110] sm:$0xff]
    %v193 = vld [vmem:[#allocation5 + $0x118] sm:$0xff]
    %v194 = vld [vmem:[#allocation5 + $0x120] sm:$0xff]
    %v195 = vld [vmem:[#allocation5 + $0x128] sm:$0xff]
    %v196 = vld [vmem:[#allocation5 + $0x130] sm:$0xff]
    %v197 = vld [vmem:[#allocation5 + $0x138] sm:$0xff]
    %v198 = vld [vmem:[#allocation5 + $0x140] sm:$0xff]
    %v199 = vld [vmem:[#allocation5 + $0x148] sm:$0xff]
    %v200 = vld [vmem:[#allocation5 + $0x150] sm:$0xff]
    %v201 = vld [vmem:[#allocation5 + $0x158] sm:$0xff]
    %v202 = vld [vmem:[#allocation5 + $0x160] sm:$0xff]
    %v203 = vld [vmem:[#allocation5 + $0x168] sm:$0xff]
    %v204 = vld [vmem:[#allocation5 + $0x170] sm:$0xff]
    %v205 = vld [vmem:[#allocation5 + $0x178] sm:$0xff]
    %v206 = vld [vmem:[#allocation5 + $0x180] sm:$0xff]
    %v207 = vld [vmem:[#allocation5 + $0x188] sm:$0xff]
    %v208 = vld [vmem:[#allocation5 + $0x190] sm:$0xff]
    %v209 = vld [vmem:[#allocation5 + $0x198] sm:$0xff]
    %v210 = vld [vmem:[#allocation5 + $0x1a0] sm:$0xff]
    %v211 = vld [vmem:[#allocation5 + $0x1a8] sm:$0xff]
    %v212 = vld [vmem:[#allocation5 + $0x1b0] sm:$0xff]
    %v213 = vld [vmem:[#allocation5 + $0x1b8] sm:$0xff]
    %v214 = vld [vmem:[#allocation5 + $0x1c0] sm:$0xff]
    %v215 = vld [vmem:[#allocation5 + $0x1c8] sm:$0xff]
    %v216 = vld [vmem:[#allocation5 + $0x1d0] sm:$0xff]
    %v217 = vld [vmem:[#allocation5 + $0x1d8] sm:$0xff]
    %v218 = vld [vmem:[#allocation5 + $0x1e0] sm:$0xff]
    %v219 = vld [vmem:[#allocation5 + $0x1e8] sm:$0xff]
    %v220 = vld [vmem:[#allocation5 + $0x1f0] sm:$0xff]
    %v221 = vld [vmem:[#allocation5 + $0x1f8] sm:$0xff]
    %v222 = vld [vmem:[%s2] sm:$0x3]
    %v224 = vlaneseq
    %v225 = vshrl.u32 %v224, 7
    %v226 = vsub.s32 0, %v225
    %v227 = vrot.slane %v222, %v226
    %v228 = vlaneseq
    %v229 = vshrl.u32 %v228, 7
    %v230 = vsub.s32 1, %v229
    %v231 = vrot.slane %v222, %v230
    %v298 = vunpack.c.l.b16 %v158
    %v299 = vunpack.c.h.b16 %v158
    %v300 = vunpack.c.l.b16 %v159
    %v301 = vunpack.c.h.b16 %v159
    %v302 = vunpack.c.l.b16 %v160
    %v303 = vunpack.c.h.b16 %v160
    %v304 = vunpack.c.l.b16 %v161
    %v305 = vunpack.c.h.b16 %v161
    %v306 = vunpack.c.l.b16 %v162
    %v307 = vunpack.c.h.b16 %v162
    %v308 = vunpack.c.l.b16 %v163
    %v309 = vunpack.c.h.b16 %v163
    %v310 = vunpack.c.l.b16 %v164
    %v311 = vunpack.c.h.b16 %v164
    %v312 = vunpack.c.l.b16 %v165
    %v313 = vunpack.c.h.b16 %v165
    %v314 = vunpack.c.l.b16 %v166
    %v315 = vunpack.c.h.b16 %v166
    %v316 = vunpack.c.l.b16 %v167
    %v317 = vunpack.c.h.b16 %v167
    %v318 = vunpack.c.l.b16 %v168
    %v319 = vunpack.c.h.b16 %v168
    %v320 = vunpack.c.l.b16 %v169
    %v321 = vunpack.c.h.b16 %v169
    %v322 = vunpack.c.l.b16 %v170
    %v323 = vunpack.c.h.b16 %v170
    %v324 = vunpack.c.l.b16 %v171
    %v325 = vunpack.c.h.b16 %v171
    %v326 = vunpack.c.l.b16 %v172
    %v327 = vunpack.c.h.b16 %v172
    %v328 = vunpack.c.l.b16 %v173
    %v329 = vunpack.c.h.b16 %v173
    %v330 = vunpack.c.l.b16 %v174
    %v331 = vunpack.c.h.b16 %v174
    %v332 = vunpack.c.l.b16 %v175
    %v333 = vunpack.c.h.b16 %v175
    %v334 = vunpack.c.l.b16 %v176
    %v335 = vunpack.c.h.b16 %v176
    %v336 = vunpack.c.l.b16 %v177
    %v337 = vunpack.c.h.b16 %v177
    %v338 = vunpack.c.l.b16 %v178
    %v339 = vunpack.c.h.b16 %v178
    %v340 = vunpack.c.l.b16 %v179
    %v341 = vunpack.c.h.b16 %v179
    %v342 = vunpack.c.l.b16 %v180
    %v343 = vunpack.c.h.b16 %v180
    %v344 = vunpack.c.l.b16 %v181
    %v345 = vunpack.c.h.b16 %v181
    %v346 = vunpack.c.l.b16 %v182
    %v347 = vunpack.c.h.b16 %v182
    %v348 = vunpack.c.l.b16 %v183
    %v349 = vunpack.c.h.b16 %v183
    %v350 = vunpack.c.l.b16 %v184
    %v351 = vunpack.c.h.b16 %v184
    %v352 = vunpack.c.l.b16 %v185
    %v353 = vunpack.c.h.b16 %v185
    %v354 = vunpack.c.l.b16 %v186
    %v355 = vunpack.c.h.b16 %v186
    %v356 = vunpack.c.l.b16 %v187
    %v357 = vunpack.c.h.b16 %v187
    %v358 = vunpack.c.l.b16 %v188
    %v359 = vunpack.c.h.b16 %v188
    %v360 = vunpack.c.l.b16 %v189
    %v361 = vunpack.c.h.b16 %v189
    %v362 = vunpack.c.l.b16 %v190
    %v363 = vunpack.c.h.b16 %v190
    %v364 = vunpack.c.l.b16 %v191
    %v365 = vunpack.c.h.b16 %v191
    %v366 = vunpack.c.l.b16 %v192
    %v367 = vunpack.c.h.b16 %v192
    %v368 = vunpack.c.l.b16 %v193
    %v369 = vunpack.c.h.b16 %v193
    %v370 = vunpack.c.l.b16 %v194
    %v371 = vunpack.c.h.b16 %v194
    %v372 = vunpack.c.l.b16 %v195
    %v373 = vunpack.c.h.b16 %v195
    %v374 = vunpack.c.l.b16 %v196
    %v375 = vunpack.c.h.b16 %v196
    %v376 = vunpack.c.l.b16 %v197
    %v377 = vunpack.c.h.b16 %v197
    %v378 = vunpack.c.l.b16 %v198
    %v379 = vunpack.c.h.b16 %v198
    %v380 = vunpack.c.l.b16 %v199
    %v381 = vunpack.c.h.b16 %v199
    %v382 = vunpack.c.l.b16 %v200
    %v383 = vunpack.c.h.b16 %v200
    %v384 = vunpack.c.l.b16 %v201
    %v385 = vunpack.c.h.b16 %v201
    %v386 = vunpack.c.l.b16 %v202
    %v387 = vunpack.c.h.b16 %v202
    %v388 = vunpack.c.l.b16 %v203
    %v389 = vunpack.c.h.b16 %v203
    %v390 = vunpack.c.l.b16 %v204
    %v391 = vunpack.c.h.b16 %v204
    %v392 = vunpack.c.l.b16 %v205
    %v393 = vunpack.c.h.b16 %v205
    %v394 = vunpack.c.l.b16 %v206
    %v395 = vunpack.c.h.b16 %v206
    %v396 = vunpack.c.l.b16 %v207
    %v397 = vunpack.c.h.b16 %v207
    %v398 = vunpack.c.l.b16 %v208
    %v399 = vunpack.c.h.b16 %v208
    %v400 = vunpack.c.l.b16 %v209
    %v401 = vunpack.c.h.b16 %v209
    %v402 = vunpack.c.l.b16 %v210
    %v403 = vunpack.c.h.b16 %v210
    %v404 = vunpack.c.l.b16 %v211
    %v405 = vunpack.c.h.b16 %v211
    %v406 = vunpack.c.l.b16 %v212
    %v407 = vunpack.c.h.b16 %v212
    %v408 = vunpack.c.l.b16 %v213
    %v409 = vunpack.c.h.b16 %v213
    %v410 = vunpack.c.l.b16 %v214
    %v411 = vunpack.c.h.b16 %v214
    %v412 = vunpack.c.l.b16 %v215
    %v413 = vunpack.c.h.b16 %v215
    %v414 = vunpack.c.l.b16 %v216
    %v415 = vunpack.c.h.b16 %v216
    %v416 = vunpack.c.l.b16 %v217
    %v417 = vunpack.c.h.b16 %v217
    %v418 = vunpack.c.l.b16 %v218
    %v419 = vunpack.c.h.b16 %v218
    %v420 = vunpack.c.l.b16 %v219
    %v421 = vunpack.c.h.b16 %v219
    %v422 = vunpack.c.l.b16 %v220
    %v423 = vunpack.c.h.b16 %v220
    %v424 = vunpack.c.l.b16 %v221
    %v425 = vunpack.c.h.b16 %v221
    %v426 = vpack.c.b16 %v300, %v298
    %v427 = vpack.c.b16 %v301, %v299
    %v428 = vpack.c.b16 %v304, %v302
    %v429 = vpack.c.b16 %v305, %v303
    %v430 = vpack.c.b16 %v308, %v306
    %v431 = vpack.c.b16 %v309, %v307
    %v432 = vpack.c.b16 %v312, %v310
    %v433 = vpack.c.b16 %v313, %v311
    %v434 = vpack.c.b16 %v316, %v314
    %v435 = vpack.c.b16 %v317, %v315
    %v436 = vpack.c.b16 %v320, %v318
    %v437 = vpack.c.b16 %v321, %v319
    %v438 = vpack.c.b16 %v324, %v322
    %v439 = vpack.c.b16 %v325, %v323
    %v440 = vpack.c.b16 %v328, %v326
    %v441 = vpack.c.b16 %v329, %v327
    %v442 = vpack.c.b16 %v332, %v330
    %v443 = vpack.c.b16 %v333, %v331
    %v444 = vpack.c.b16 %v336, %v334
    %v445 = vpack.c.b16 %v337, %v335
    %v446 = vpack.c.b16 %v340, %v338
    %v447 = vpack.c.b16 %v341, %v339
    %v448 = vpack.c.b16 %v344, %v342
    %v449 = vpack.c.b16 %v345, %v343
    %v450 = vpack.c.b16 %v348, %v346
    %v451 = vpack.c.b16 %v349, %v347
    %v452 = vpack.c.b16 %v352, %v350
    %v453 = vpack.c.b16 %v353, %v351
    %v454 = vpack.c.b16 %v356, %v354
    %v455 = vpack.c.b16 %v357, %v355
    %v456 = vpack.c.b16 %v360, %v358
    %v457 = vpack.c.b16 %v361, %v359
    %v458 = vpack.c.b16 %v364, %v362
    %v459 = vpack.c.b16 %v365, %v363
    %v460 = vpack.c.b16 %v368, %v366
    %v461 = vpack.c.b16 %v369, %v367
    %v462 = vpack.c.b16 %v372, %v370
    %v463 = vpack.c.b16 %v373, %v371
    %v464 = vpack.c.b16 %v376, %v374
    %v465 = vpack.c.b16 %v377, %v375
    %v466 = vpack.c.b16 %v380, %v378
    %v467 = vpack.c.b16 %v381, %v379
    %v468 = vpack.c.b16 %v384, %v382
    %v469 = vpack.c.b16 %v385, %v383
    %v470 = vpack.c.b16 %v388, %v386
    %v471 = vpack.c.b16 %v389, %v387
    %v472 = vpack.c.b16 %v392, %v390
    %v473 = vpack.c.b16 %v393, %v391
    %v474 = vpack.c.b16 %v396, %v394
    %v475 = vpack.c.b16 %v397, %v395
    %v476 = vpack.c.b16 %v400, %v398
    %v477 = vpack.c.b16 %v401, %v399
    %v478 = vpack.c.b16 %v404, %v402
    %v479 = vpack.c.b16 %v405, %v403
    %v480 = vpack.c.b16 %v408, %v406
    %v481 = vpack.c.b16 %v409, %v407
    %v482 = vpack.c.b16 %v412, %v410
    %v483 = vpack.c.b16 %v413, %v411
    %v484 = vpack.c.b16 %v416, %v414
    %v485 = vpack.c.b16 %v417, %v415
    %v486 = vpack.c.b16 %v420, %v418
    %v487 = vpack.c.b16 %v421, %v419
    %v488 = vpack.c.b16 %v424, %v422
    %v489 = vpack.c.b16 %v425, %v423
    %554 = vmatprep.subr.bf16.mxu0 %v427
    %555 = vmatpush1.bf16.msra.mxu0 %v426
    %556 = vmatprep.subr.bf16.mxu0 %v429
    %557 = vmatpush1.bf16.msra.mxu0 %v428
    %558 = vmatprep.subr.bf16.mxu0 %v431
    %559 = vmatpush1.bf16.msra.mxu0 %v430
    %560 = vmatprep.subr.bf16.mxu0 %v433
    %561 = vmatpush1.bf16.msra.mxu0 %v432
    %562 = vmatprep.subr.bf16.mxu0 %v435
    %563 = vmatpush1.bf16.msra.mxu0 %v434
    %564 = vmatprep.subr.bf16.mxu0 %v437
    %565 = vmatpush1.bf16.msra.mxu0 %v436
    %566 = vmatprep.subr.bf16.mxu0 %v439
    %567 = vmatpush1.bf16.msra.mxu0 %v438
    %568 = vmatprep.subr.bf16.mxu0 %v441
    %569 = vmatpush1.bf16.msra.mxu0 %v440
    %570 = vmatprep.subr.bf16.mxu0 %v443
    %571 = vmatpush1.bf16.msra.mxu0 %v442
    %572 = vmatprep.subr.bf16.mxu0 %v445
    %573 = vmatpush1.bf16.msra.mxu0 %v444
    %574 = vmatprep.subr.bf16.mxu0 %v447
    %575 = vmatpush1.bf16.msra.mxu0 %v446
    %576 = vmatprep.subr.bf16.mxu0 %v449
    %577 = vmatpush1.bf16.msra.mxu0 %v448
    %578 = vmatprep.subr.bf16.mxu0 %v451
    %579 = vmatpush1.bf16.msra.mxu0 %v450
    %580 = vmatprep.subr.bf16.mxu0 %v453
    %581 = vmatpush1.bf16.msra.mxu0 %v452
    %582 = vmatprep.subr.bf16.mxu0 %v455
    %583 = vmatpush1.bf16.msra.mxu0 %v454
    %584 = vmatprep.subr.bf16.mxu0 %v457
    %585 = vmatpush1.bf16.msra.mxu0 %v456
    %586 = vmatprep.mubr.bf16.mxu0 %v127
    %587 = vmatmul.mubr.bf16.gmra.mrb[0].mxu0 %v126
    %v588 = vpop.f32.mrb[0].mxu0
    %v589 = vadd.f32 %v227, %v588
    %v590 = vpop.f32.mrb[0].mxu0
    %v591 = vadd.f32 %v231, %v590
    %v592 = vpop.f32.mrb[0].mxu0
    %v593 = vadd.f32 %v227, %v592
    %v594 = vpop.f32.mrb[0].mxu0
    %v595 = vadd.f32 %v231, %v594
    %596 = vmatprep.mubr.bf16.mxu0 %v131
    %597 = vmatmul.mubr.bf16.gmra.mrb[0].mxu0 %v130
    %v598 = vpop.f32.mrb[0].mxu0
    %v599 = vadd.f32 %v227, %v598
    %v600 = vpop.f32.mrb[0].mxu0
    %v601 = vadd.f32 %v231, %v600
    %v602 = vpop.f32.mrb[0].mxu0
    %v603 = vadd.f32 %v227, %v602
    %v604 = vpop.f32.mrb[0].mxu0
    %v605 = vadd.f32 %v231, %v604
    %606 = vmatprep.mubr.bf16.mxu0 %v135
    %607 = vmatmul.mubr.bf16.gmra.mrb[0].mxu0 %v134
    %v608 = vpop.f32.mrb[0].mxu0
    %v609 = vadd.f32 %v227, %v608
    %v610 = vpop.f32.mrb[0].mxu0
    %v611 = vadd.f32 %v231, %v610
    %v612 = vpop.f32.mrb[0].mxu0
    %v613 = vadd.f32 %v227, %v612
    %v614 = vpop.f32.mrb[0].mxu0
    %v615 = vadd.f32 %v231, %v614
    %616 = vmatprep.mubr.bf16.mxu0 %v139
    %617 = vmatmul.mubr.bf16.gmra.mrb[0].mxu0 %v138
    %v618 = vpop.f32.mrb[0].mxu0
    %v619 = vadd.f32 %v227, %v618
    %v620 = vpop.f32.mrb[0].mxu0
    %v621 = vadd.f32 %v231, %v620
    %v622 = vpop.f32.mrb[0].mxu0
    %v623 = vadd.f32 %v227, %v622
    %v624 = vpop.f32.mrb[0].mxu0
    %v625 = vadd.f32 %v231, %v624
    %626 = vmatprep.mubr.bf16.mxu0 %v143
    %627 = vmatmul.mubr.bf16.gmra.mrb[0].mxu0 %v142
    %v628 = vpop.f32.mrb[0].mxu0
    %v629 = vadd.f32 %v227, %v628
    %v630 = vpop.f32.mrb[0].mxu0
    %v631 = vadd.f32 %v231, %v630
    %v632 = vpop.f32.mrb[0].mxu0
    %v633 = vadd.f32 %v227, %v632
    %v634 = vpop.f32.mrb[0].mxu0
    %v635 = vadd.f32 %v231, %v634
    %636 = vmatprep.mubr.bf16.mxu0 %v147
    %637 = vmatmul.mubr.bf16.gmra.mrb[0].mxu0 %v146
    %v638 = vpop.f32.mrb[0].mxu0
    %v639 = vadd.f32 %v227, %v638
    %v640 = vpop.f32.mrb[0].mxu0
    %v641 = vadd.f32 %v231, %v640
    %v642 = vpop.f32.mrb[0].mxu0
    %v643 = vadd.f32 %v227, %v642
    %v644 = vpop.f32.mrb[0].mxu0
    %v645 = vadd.f32 %v231, %v644
    %646 = vmatprep.mubr.bf16.mxu0 %v151
    %647 = vmatmul.mubr.bf16.gmra.mrb[0].mxu0 %v150
    %v648 = vpop.f32.mrb[0].mxu0
    %v649 = vadd.f32 %v227, %v648
    %v650 = vpop.f32.mrb[0].mxu0
    %v651 = vadd.f32 %v231, %v650
    %v652 = vpop.f32.mrb[0].mxu0
    %v653 = vadd.f32 %v227, %v652
    %v654 = vpop.f32.mrb[0].mxu0
    %v655 = vadd.f32 %v231, %v654
    %656 = vmatprep.mubr.bf16.mxu0 %v155
    %657 = vmatmul.mubr.bf16.gmra.mrb[0].mxu0 %v154
    %v658 = vpop.f32.mrb[0].mxu0
    %v659 = vadd.f32 %v227, %v658
    %v660 = vpop.f32.mrb[0].mxu0
    %v661 = vadd.f32 %v231, %v660
    %v662 = vpop.f32.mrb[0].mxu0
    %v663 = vadd.f32 %v227, %v662
    %v664 = vpop.f32.mrb[0].mxu0
    %v665 = vadd.f32 %v231, %v664
    %666 = vdwg.mxu0
    %667 = vmatprep.subr.bf16.mxu0 %v459
    %668 = vmatpush1.bf16.msra.mxu0 %v458
    %669 = vmatprep.subr.bf16.mxu0 %v461
    %670 = vmatpush1.bf16.msra.mxu0 %v460
    %671 = vmatprep.subr.bf16.mxu0 %v463
    %672 = vmatpush1.bf16.msra.mxu0 %v462
    %673 = vmatprep.subr.bf16.mxu0 %v465
    %674 = vmatpush1.bf16.msra.mxu0 %v464
    %675 = vmatprep.subr.bf16.mxu0 %v467
    %676 = vmatpush1.bf16.msra.mxu0 %v466
    %677 = vmatprep.subr.bf16.mxu0 %v469
    %678 = vmatpush1.bf16.msra.mxu0 %v468
    %679 = vmatprep.subr.bf16.mxu0 %v471
    %680 = vmatpush1.bf16.msra.mxu0 %v470
    %681 = vmatprep.subr.bf16.mxu0 %v473
    %682 = vmatpush1.bf16.msra.mxu0 %v472
    %683 = vmatprep.subr.bf16.mxu0 %v475
    %684 = vmatpush1.bf16.msra.mxu0 %v474
    %685 = vmatprep.subr.bf16.mxu0 %v477
    %686 = vmatpush1.bf16.msra.mxu0 %v476
    %687 = vmatprep.subr.bf16.mxu0 %v479
    %688 = vmatpush1.bf16.msra.mxu0 %v478
    %689 = vmatprep.subr.bf16.mxu0 %v481
    %690 = vmatpush1.bf16.msra.mxu0 %v480
    %691 = vmatprep.subr.bf16.mxu0 %v483
    %692 = vmatpush1.bf16.msra.mxu0 %v482
    %693 = vmatprep.subr.bf16.mxu0 %v485
    %694 = vmatpush1.bf16.msra.mxu0 %v484
    %695 = vmatprep.subr.bf16.mxu0 %v487
    %696 = vmatpush1.bf16.msra.mxu0 %v486
    %697 = vmatprep.subr.bf16.mxu0 %v489
    %698 = vmatpush1.bf16.msra.mxu0 %v488
    %699 = vmatprep.mubr.bf16.mxu0 %v129
    %700 = vmatmul.mubr.bf16.gmra.mrb[0].mxu0 %v128
    %v701 = vpop.f32.mrb[0].mxu0
    %v702 = vadd.f32 %v589, %v701
    %v703 = vpop.f32.mrb[0].mxu0
    %v704 = vadd.f32 %v591, %v703
    %v705 = vpop.f32.mrb[0].mxu0
    %v706 = vadd.f32 %v593, %v705
    %v707 = vpop.f32.mrb[0].mxu0
    %v708 = vadd.f32 %v595, %v707
    %709 = vmatprep.mubr.bf16.mxu0 %v133
    %710 = vmatmul.mubr.bf16.gmra.mrb[0].mxu0 %v132
    %v711 = vpop.f32.mrb[0].mxu0
    %v712 = vadd.f32 %v599, %v711
    %v713 = vpop.f32.mrb[0].mxu0
    %v714 = vadd.f32 %v601, %v713
    %v715 = vpop.f32.mrb[0].mxu0
    %v716 = vadd.f32 %v603, %v715
    %v717 = vpop.f32.mrb[0].mxu0
    %v718 = vadd.f32 %v605, %v717
    %719 = vmatprep.mubr.bf16.mxu0 %v137
    %720 = vmatmul.mubr.bf16.gmra.mrb[0].mxu0 %v136
    %v721 = vpop.f32.mrb[0].mxu0
    %v722 = vadd.f32 %v609, %v721
    %v723 = vpop.f32.mrb[0].mxu0
    %v724 = vadd.f32 %v611, %v723
    %v725 = vpop.f32.mrb[0].mxu0
    %v726 = vadd.f32 %v613, %v725
    %v727 = vpop.f32.mrb[0].mxu0
    %v728 = vadd.f32 %v615, %v727
    %729 = vmatprep.mubr.bf16.mxu0 %v141
    %730 = vmatmul.mubr.bf16.gmra.mrb[0].mxu0 %v140
    %v731 = vpop.f32.mrb[0].mxu0
    %v732 = vadd.f32 %v619, %v731
    %v733 = vpop.f32.mrb[0].mxu0
    %v734 = vadd.f32 %v621, %v733
    %v735 = vpop.f32.mrb[0].mxu0
    %v736 = vadd.f32 %v623, %v735
    %v737 = vpop.f32.mrb[0].mxu0
    %v738 = vadd.f32 %v625, %v737
    %739 = vmatprep.mubr.bf16.mxu0 %v145
    %740 = vmatmul.mubr.bf16.gmra.mrb[0].mxu0 %v144
    %v741 = vpop.f32.mrb[0].mxu0
    %v742 = vadd.f32 %v629, %v741
    %v743 = vpop.f32.mrb[0].mxu0
    %v744 = vadd.f32 %v631, %v743
    %v745 = vpop.f32.mrb[0].mxu0
    %v746 = vadd.f32 %v633, %v745
    %v747 = vpop.f32.mrb[0].mxu0
    %v748 = vadd.f32 %v635, %v747
    %749 = vmatprep.mubr.bf16.mxu0 %v149
    %750 = vmatmul.mubr.bf16.gmra.mrb[0].mxu0 %v148
    %v751 = vpop.f32.mrb[0].mxu0
    %v752 = vadd.f32 %v639, %v751
    %v753 = vpop.f32.mrb[0].mxu0
    %v754 = vadd.f32 %v641, %v753
    %v755 = vpop.f32.mrb[0].mxu0
    %v756 = vadd.f32 %v643, %v755
    %v757 = vpop.f32.mrb[0].mxu0
    %v758 = vadd.f32 %v645, %v757
    %759 = vmatprep.mubr.bf16.mxu0 %v153
    %760 = vmatmul.mubr.bf16.gmra.mrb[0].mxu0 %v152
    %v761 = vpop.f32.mrb[0].mxu0
    %v762 = vadd.f32 %v649, %v761
    %v763 = vpop.f32.mrb[0].mxu0
    %v764 = vadd.f32 %v651, %v763
    %v765 = vpop.f32.mrb[0].mxu0
    %v766 = vadd.f32 %v653, %v765
    %v767 = vpop.f32.mrb[0].mxu0
    %v768 = vadd.f32 %v655, %v767
    %769 = vmatprep.mubr.bf16.mxu0 %v157
    %770 = vmatmul.mubr.bf16.gmra.mrb[0].mxu0 %v156
    %v771 = vpop.f32.mrb[0].mxu0
    %v772 = vadd.f32 %v659, %v771
    %v773 = vpop.f32.mrb[0].mxu0
    %v774 = vadd.f32 %v661, %v773
    %v775 = vpop.f32.mrb[0].mxu0
    %v776 = vadd.f32 %v663, %v775
    %v777 = vpop.f32.mrb[0].mxu0
    %v778 = vadd.f32 %v665, %v777
    %779 = vdwg.mxu0
    %v780 = vmax.f32 %v702, 0.0
    %v781 = vmax.f32 %v704, 0.0
    %v782 = vmax.f32 %v706, 0.0
    %v783 = vmax.f32 %v708, 0.0
    %v784 = vmax.f32 %v712, 0.0
    %v785 = vmax.f32 %v714, 0.0
    %v786 = vmax.f32 %v716, 0.0
    %v787 = vmax.f32 %v718, 0.0
    %v788 = vmax.f32 %v722, 0.0
    %v789 = vmax.f32 %v724, 0.0
    %v790 = vmax.f32 %v726, 0.0
    %v791 = vmax.f32 %v728, 0.0
    %v792 = vmax.f32 %v732, 0.0
    %v793 = vmax.f32 %v734, 0.0
    %v794 = vmax.f32 %v736, 0.0
    %v795 = vmax.f32 %v738, 0.0
    %v796 = vmax.f32 %v742, 0.0
    %v797 = vmax.f32 %v744, 0.0
    %v798 = vmax.f32 %v746, 0.0
    %v799 = vmax.f32 %v748, 0.0
    %v800 = vmax.f32 %v752, 0.0
    %v801 = vmax.f32 %v754, 0.0
    %v802 = vmax.f32 %v756, 0.0
    %v803 = vmax.f32 %v758, 0.0
    %v804 = vmax.f32 %v762, 0.0
    %v805 = vmax.f32 %v764, 0.0
    %v806 = vmax.f32 %v766, 0.0
    %v807 = vmax.f32 %v768, 0.0
    %v808 = vmax.f32 %v772, 0.0
    %v809 = vmax.f32 %v774, 0.0
    %v810 = vmax.f32 %v776, 0.0
    %v811 = vmax.f32 %v778, 0.0
    %v812 = vpack.c.bf16 %v782, %v780
    %v813 = vpack.c.bf16 %v783, %v781
    %v814 = vpack.c.bf16 %v786, %v784
    %v815 = vpack.c.bf16 %v787, %v785
    %v816 = vpack.c.bf16 %v790, %v788
    %v817 = vpack.c.bf16 %v791, %v789
    %v818 = vpack.c.bf16 %v794, %v792
    %v819 = vpack.c.bf16 %v795, %v793
    %v820 = vpack.c.bf16 %v798, %v796
    %v821 = vpack.c.bf16 %v799, %v797
    %v822 = vpack.c.bf16 %v802, %v800
    %v823 = vpack.c.bf16 %v803, %v801
    %v824 = vpack.c.bf16 %v806, %v804
    %v825 = vpack.c.bf16 %v807, %v805
    %v826 = vpack.c.bf16 %v810, %v808
    %v827 = vpack.c.bf16 %v811, %v809
    %v828 = vld [vmem:[#allocation7] sm:$0xff]
    %v829 = vld [vmem:[#allocation7 + $0x8] sm:$0xff]
    %v830 = vld [vmem:[#allocation7 + $0x10] sm:$0xff]
    %v831 = vld [vmem:[#allocation7 + $0x18] sm:$0xff]
    %v832 = vld [vmem:[#allocation7 + $0x20] sm:$0xff]
    %v833 = vld [vmem:[#allocation7 + $0x28] sm:$0xff]
    %v834 = vld [vmem:[#allocation7 + $0x30] sm:$0xff]
    %v835 = vld [vmem:[#allocation7 + $0x38] sm:$0xff]
    %v836 = vld [vmem:[#allocation7 + $0x40] sm:$0xff]
    %v837 = vld [vmem:[#allocation7 + $0x48] sm:$0xff]
    %v838 = vld [vmem:[#allocation7 + $0x50] sm:$0xff]
    %v839 = vld [vmem:[#allocation7 + $0x58] sm:$0xff]
    %v840 = vld [vmem:[#allocation7 + $0x60] sm:$0xff]
    %v841 = vld [vmem:[#allocation7 + $0x68] sm:$0xff]
    %v842 = vld [vmem:[#allocation7 + $0x70] sm:$0xff]
    %v843 = vld [vmem:[#allocation7 + $0x78] sm:$0xff]
    %v844 = vld [vmem:[#allocation7 + $0x80] sm:$0xff]
    %v845 = vld [vmem:[#allocation7 + $0x88] sm:$0xff]
    %v846 = vld [vmem:[#allocation7 + $0x90] sm:$0xff]
    %v847 = vld [vmem:[#allocation7 + $0x98] sm:$0xff]
    %v848 = vld [vmem:[#allocation7 + $0xa0] sm:$0xff]
    %v849 = vld [vmem:[#allocation7 + $0xa8] sm:$0xff]
    %v850 = vld [vmem:[#allocation7 + $0xb0] sm:$0xff]
    %v851 = vld [vmem:[#allocation7 + $0xb8] sm:$0xff]
    %v852 = vld [vmem:[#allocation7 + $0xc0] sm:$0xff]
    %v853 = vld [vmem:[#allocation7 + $0xc8] sm:$0xff]
    %v854 = vld [vmem:[#allocation7 + $0xd0] sm:$0xff]
    %v855 = vld [vmem:[#allocation7 + $0xd8] sm:$0xff]
    %v856 = vld [vmem:[#allocation7 + $0xe0] sm:$0xff]
    %v857 = vld [vmem:[#allocation7 + $0xe8] sm:$0xff]
    %v858 = vld [vmem:[#allocation7 + $0xf0] sm:$0xff]
    %v859 = vld [vmem:[#allocation7 + $0xf8] sm:$0xff]
    %v860 = vld [vmem:[#allocation7 + $0x100] sm:$0xff]
    %v861 = vld [vmem:[#allocation7 + $0x108] sm:$0xff]
    %v862 = vld [vmem:[#allocation7 + $0x110] sm:$0xff]
    %v863 = vld [vmem:[#allocation7 + $0x118] sm:$0xff]
    %v864 = vld [vmem:[#allocation7 + $0x120] sm:$0xff]
    %v865 = vld [vmem:[#allocation7 + $0x128] sm:$0xff]
    %v866 = vld [vmem:[#allocation7 + $0x130] sm:$0xff]
    %v867 = vld [vmem:[#allocation7 + $0x138] sm:$0xff]
    %v868 = vld [vmem:[#allocation7 + $0x140] sm:$0xff]
    %v869 = vld [vmem:[#allocation7 + $0x148] sm:$0xff]
    %v870 = vld [vmem:[#allocation7 + $0x150] sm:$0xff]
    %v871 = vld [vmem:[#allocation7 + $0x158] sm:$0xff]
    %v872 = vld [vmem:[#allocation7 + $0x160] sm:$0xff]
    %v873 = vld [vmem:[#allocation7 + $0x168] sm:$0xff]
    %v874 = vld [vmem:[#allocation7 + $0x170] sm:$0xff]
    %v875 = vld [vmem:[#allocation7 + $0x178] sm:$0xff]
    %v876 = vld [vmem:[#allocation7 + $0x180] sm:$0xff]
    %v877 = vld [vmem:[#allocation7 + $0x188] sm:$0xff]
    %v878 = vld [vmem:[#allocation7 + $0x190] sm:$0xff]
    %v879 = vld [vmem:[#allocation7 + $0x198] sm:$0xff]
    %v880 = vld [vmem:[#allocation7 + $0x1a0] sm:$0xff]
    %v881 = vld [vmem:[#allocation7 + $0x1a8] sm:$0xff]
    %v882 = vld [vmem:[#allocation7 + $0x1b0] sm:$0xff]
    %v883 = vld [vmem:[#allocation7 + $0x1b8] sm:$0xff]
    %v884 = vld [vmem:[#allocation7 + $0x1c0] sm:$0xff]
    %v885 = vld [vmem:[#allocation7 + $0x1c8] sm:$0xff]
    %v886 = vld [vmem:[#allocation7 + $0x1d0] sm:$0xff]
    %v887 = vld [vmem:[#allocation7 + $0x1d8] sm:$0xff]
    %v888 = vld [vmem:[#allocation7 + $0x1e0] sm:$0xff]
    %v889 = vld [vmem:[#allocation7 + $0x1e8] sm:$0xff]
    %v890 = vld [vmem:[#allocation7 + $0x1f0] sm:$0xff]
    %v891 = vld [vmem:[#allocation7 + $0x1f8] sm:$0xff]
    %v892 = vld [vmem:[%s4] sm:$0xf]
    %v894 = vlaneseq
    %v895 = vshrl.u32 %v894, 7
    %v896 = vsub.s32 0, %v895
    %v897 = vrot.slane %v892, %v896
    %v898 = vlaneseq
    %v899 = vshrl.u32 %v898, 7
    %v900 = vsub.s32 1, %v899
    %v901 = vrot.slane %v892, %v900
    %v902 = vlaneseq
    %v903 = vshrl.u32 %v902, 7
    %v904 = vsub.s32 2, %v903
    %v905 = vrot.slane %v892, %v904
    %v906 = vlaneseq
    %v907 = vshrl.u32 %v906, 7
    %v908 = vsub.s32 3, %v907
    %v909 = vrot.slane %v892, %v908
    %v978 = vunpack.c.l.b16 %v828
    %v979 = vunpack.c.h.b16 %v828
    %v980 = vunpack.c.l.b16 %v829
    %v981 = vunpack.c.h.b16 %v829
    %v982 = vunpack.c.l.b16 %v830
    %v983 = vunpack.c.h.b16 %v830
    %v984 = vunpack.c.l.b16 %v831
    %v985 = vunpack.c.h.b16 %v831
    %v986 = vunpack.c.l.b16 %v832
    %v987 = vunpack.c.h.b16 %v832
    %v988 = vunpack.c.l.b16 %v833
    %v989 = vunpack.c.h.b16 %v833
    %v990 = vunpack.c.l.b16 %v834
    %v991 = vunpack.c.h.b16 %v834
    %v992 = vunpack.c.l.b16 %v835
    %v993 = vunpack.c.h.b16 %v835
    %v994 = vunpack.c.l.b16 %v836
    %v995 = vunpack.c.h.b16 %v836
    %v996 = vunpack.c.l.b16 %v837
    %v997 = vunpack.c.h.b16 %v837
    %v998 = vunpack.c.l.b16 %v838
    %v999 = vunpack.c.h.b16 %v838
    %v1000 = vunpack.c.l.b16 %v839
    %v1001 = vunpack.c.h.b16 %v839
    %v1002 = vunpack.c.l.b16 %v840
    %v1003 = vunpack.c.h.b16 %v840
    %v1004 = vunpack.c.l.b16 %v841
    %v1005 = vunpack.c.h.b16 %v841
    %v1006 = vunpack.c.l.b16 %v842
    %v1007 = vunpack.c.h.b16 %v842
    %v1008 = vunpack.c.l.b16 %v843
    %v1009 = vunpack.c.h.b16 %v843
    %v1010 = vunpack.c.l.b16 %v844
    %v1011 = vunpack.c.h.b16 %v844
    %v1012 = vunpack.c.l.b16 %v845
    %v1013 = vunpack.c.h.b16 %v845
    %v1014 = vunpack.c.l.b16 %v846
    %v1015 = vunpack.c.h.b16 %v846
    %v1016 = vunpack.c.l.b16 %v847
    %v1017 = vunpack.c.h.b16 %v847
    %v1018 = vunpack.c.l.b16 %v848
    %v1019 = vunpack.c.h.b16 %v848
    %v1020 = vunpack.c.l.b16 %v849
    %v1021 = vunpack.c.h.b16 %v849
    %v1022 = vunpack.c.l.b16 %v850
    %v1023 = vunpack.c.h.b16 %v850
    %v1024 = vunpack.c.l.b16 %v851
    %v1025 = vunpack.c.h.b16 %v851
    %v1026 = vunpack.c.l.b16 %v852
    %v1027 = vunpack.c.h.b16 %v852
    %v1028 = vunpack.c.l.b16 %v853
    %v1029 = vunpack.c.h.b16 %v853
    %v1030 = vunpack.c.l.b16 %v854
    %v1031 = vunpack.c.h.b16 %v854
    %v1032 = vunpack.c.l.b16 %v855
    %v1033 = vunpack.c.h.b16 %v855
    %v1034 = vunpack.c.l.b16 %v856
    %v1035 = vunpack.c.h.b16 %v856
    %v1036 = vunpack.c.l.b16 %v857
    %v1037 = vunpack.c.h.b16 %v857
    %v1038 = vunpack.c.l.b16 %v858
    %v1039 = vunpack.c.h.b16 %v858
    %v1040 = vunpack.c.l.b16 %v859
    %v1041 = vunpack.c.h.b16 %v859
    %v1042 = vunpack.c.l.b16 %v860
    %v1043 = vunpack.c.h.b16 %v860
    %v1044 = vunpack.c.l.b16 %v861
    %v1045 = vunpack.c.h.b16 %v861
    %v1046 = vunpack.c.l.b16 %v862
    %v1047 = vunpack.c.h.b16 %v862
    %v1048 = vunpack.c.l.b16 %v863
    %v1049 = vunpack.c.h.b16 %v863
    %v1050 = vunpack.c.l.b16 %v864
    %v1051 = vunpack.c.h.b16 %v864
    %v1052 = vunpack.c.l.b16 %v865
    %v1053 = vunpack.c.h.b16 %v865
    %v1054 = vunpack.c.l.b16 %v866
    %v1055 = vunpack.c.h.b16 %v866
    %v1056 = vunpack.c.l.b16 %v867
    %v1057 = vunpack.c.h.b16 %v867
    %v1058 = vunpack.c.l.b16 %v868
    %v1059 = vunpack.c.h.b16 %v868
    %v1060 = vunpack.c.l.b16 %v869
    %v1061 = vunpack.c.h.b16 %v869
    %v1062 = vunpack.c.l.b16 %v870
    %v1063 = vunpack.c.h.b16 %v870
    %v1064 = vunpack.c.l.b16 %v871
    %v1065 = vunpack.c.h.b16 %v871
    %v1066 = vunpack.c.l.b16 %v872
    %v1067 = vunpack.c.h.b16 %v872
    %v1068 = vunpack.c.l.b16 %v873
    %v1069 = vunpack.c.h.b16 %v873
    %v1070 = vunpack.c.l.b16 %v874
    %v1071 = vunpack.c.h.b16 %v874
    %v1072 = vunpack.c.l.b16 %v875
    %v1073 = vunpack.c.h.b16 %v875
    %v1074 = vunpack.c.l.b16 %v876
    %v1075 = vunpack.c.h.b16 %v876
    %v1076 = vunpack.c.l.b16 %v877
    %v1077 = vunpack.c.h.b16 %v877
    %v1078 = vunpack.c.l.b16 %v878
    %v1079 = vunpack.c.h.b16 %v878
    %v1080 = vunpack.c.l.b16 %v879
    %v1081 = vunpack.c.h.b16 %v879
    %v1082 = vunpack.c.l.b16 %v880
    %v1083 = vunpack.c.h.b16 %v880
    %v1084 = vunpack.c.l.b16 %v881
    %v1085 = vunpack.c.h.b16 %v881
    %v1086 = vunpack.c.l.b16 %v882
    %v1087 = vunpack.c.h.b16 %v882
    %v1088 = vunpack.c.l.b16 %v883
    %v1089 = vunpack.c.h.b16 %v883
    %v1090 = vunpack.c.l.b16 %v884
    %v1091 = vunpack.c.h.b16 %v884
    %v1092 = vunpack.c.l.b16 %v885
    %v1093 = vunpack.c.h.b16 %v885
    %v1094 = vunpack.c.l.b16 %v886
    %v1095 = vunpack.c.h.b16 %v886
    %v1096 = vunpack.c.l.b16 %v887
    %v1097 = vunpack.c.h.b16 %v887
    %v1098 = vunpack.c.l.b16 %v888
    %v1099 = vunpack.c.h.b16 %v888
    %v1100 = vunpack.c.l.b16 %v889
    %v1101 = vunpack.c.h.b16 %v889
    %v1102 = vunpack.c.l.b16 %v890
    %v1103 = vunpack.c.h.b16 %v890
    %v1104 = vunpack.c.l.b16 %v891
    %v1105 = vunpack.c.h.b16 %v891
    %v1106 = vpack.c.b16 %v982, %v978
    %v1107 = vpack.c.b16 %v983, %v979
    %v1108 = vpack.c.b16 %v984, %v980
    %v1109 = vpack.c.b16 %v985, %v981
    %v1110 = vpack.c.b16 %v990, %v986
    %v1111 = vpack.c.b16 %v991, %v987
    %v1112 = vpack.c.b16 %v992, %v988
    %v1113 = vpack.c.b16 %v993, %v989
    %v1114 = vpack.c.b16 %v998, %v994
    %v1115 = vpack.c.b16 %v999, %v995
    %v1116 = vpack.c.b16 %v1000, %v996
    %v1117 = vpack.c.b16 %v1001, %v997
    %v1118 = vpack.c.b16 %v1006, %v1002
    %v1119 = vpack.c.b16 %v1007, %v1003
    %v1120 = vpack.c.b16 %v1008, %v1004
    %v1121 = vpack.c.b16 %v1009, %v1005
    %v1122 = vpack.c.b16 %v1014, %v1010
    %v1123 = vpack.c.b16 %v1015, %v1011
    %v1124 = vpack.c.b16 %v1016, %v1012
    %v1125 = vpack.c.b16 %v1017, %v1013
    %v1126 = vpack.c.b16 %v1022, %v1018
    %v1127 = vpack.c.b16 %v1023, %v1019
    %v1128 = vpack.c.b16 %v1024, %v1020
    %v1129 = vpack.c.b16 %v1025, %v1021
    %v1130 = vpack.c.b16 %v1030, %v1026
    %v1131 = vpack.c.b16 %v1031, %v1027
    %v1132 = vpack.c.b16 %v1032, %v1028
    %v1133 = vpack.c.b16 %v1033, %v1029
    %v1134 = vpack.c.b16 %v1038, %v1034
    %v1135 = vpack.c.b16 %v1039, %v1035
    %v1136 = vpack.c.b16 %v1040, %v1036
    %v1137 = vpack.c.b16 %v1041, %v1037
    %v1138 = vpack.c.b16 %v1046, %v1042
    %v1139 = vpack.c.b16 %v1047, %v1043
    %v1140 = vpack.c.b16 %v1048, %v1044
    %v1141 = vpack.c.b16 %v1049, %v1045
    %v1142 = vpack.c.b16 %v1054, %v1050
    %v1143 = vpack.c.b16 %v1055, %v1051
    %v1144 = vpack.c.b16 %v1056, %v1052
    %v1145 = vpack.c.b16 %v1057, %v1053
    %v1146 = vpack.c.b16 %v1062, %v1058
    %v1147 = vpack.c.b16 %v1063, %v1059
    %v1148 = vpack.c.b16 %v1064, %v1060
    %v1149 = vpack.c.b16 %v1065, %v1061
    %v1150 = vpack.c.b16 %v1070, %v1066
    %v1151 = vpack.c.b16 %v1071, %v1067
    %v1152 = vpack.c.b16 %v1072, %v1068
    %v1153 = vpack.c.b16 %v1073, %v1069
    %v1154 = vpack.c.b16 %v1078, %v1074
    %v1155 = vpack.c.b16 %v1079, %v1075
    %v1156 = vpack.c.b16 %v1080, %v1076
    %v1157 = vpack.c.b16 %v1081, %v1077
    %v1158 = vpack.c.b16 %v1086, %v1082
    %v1159 = vpack.c.b16 %v1087, %v1083
    %v1160 = vpack.c.b16 %v1088, %v1084
    %v1161 = vpack.c.b16 %v1089, %v1085
    %v1162 = vpack.c.b16 %v1094, %v1090
    %v1163 = vpack.c.b16 %v1095, %v1091
    %v1164 = vpack.c.b16 %v1096, %v1092
    %v1165 = vpack.c.b16 %v1097, %v1093
    %v1166 = vpack.c.b16 %v1102, %v1098
    %v1167 = vpack.c.b16 %v1103, %v1099
    %v1168 = vpack.c.b16 %v1104, %v1100
    %v1169 = vpack.c.b16 %v1105, %v1101
    %1234 = vmatprep.subr.bf16.mxu0 %v1107
    %1235 = vmatpush1.bf16.msra.mxu0 %v1106
    %1236 = vmatprep.subr.bf16.mxu0 %v1111
    %1237 = vmatpush1.bf16.msra.mxu0 %v1110
    %1238 = vmatprep.subr.bf16.mxu0 %v1115
    %1239 = vmatpush1.bf16.msra.mxu0 %v1114
    %1240 = vmatprep.subr.bf16.mxu0 %v1119
    %1241 = vmatpush1.bf16.msra.mxu0 %v1118
    %1242 = vmatprep.subr.bf16.mxu0 %v1123
    %1243 = vmatpush1.bf16.msra.mxu0 %v1122
    %1244 = vmatprep.subr.bf16.mxu0 %v1127
    %1245 = vmatpush1.bf16.msra.mxu0 %v1126
    %1246 = vmatprep.subr.bf16.mxu0 %v1131
    %1247 = vmatpush1.bf16.msra.mxu0 %v1130
    %1248 = vmatprep.subr.bf16.mxu0 %v1135
    %1249 = vmatpush1.bf16.msra.mxu0 %v1134
    %1250 = vmatprep.subr.bf16.mxu0 %v1139
    %1251 = vmatpush1.bf16.msra.mxu0 %v1138
    %1252 = vmatprep.subr.bf16.mxu0 %v1143
    %1253 = vmatpush1.bf16.msra.mxu0 %v1142
    %1254 = vmatprep.subr.bf16.mxu0 %v1147
    %1255 = vmatpush1.bf16.msra.mxu0 %v1146
    %1256 = vmatprep.subr.bf16.mxu0 %v1151
    %1257 = vmatpush1.bf16.msra.mxu0 %v1150
    %1258 = vmatprep.subr.bf16.mxu0 %v1155
    %1259 = vmatpush1.bf16.msra.mxu0 %v1154
    %1260 = vmatprep.subr.bf16.mxu0 %v1159
    %1261 = vmatpush1.bf16.msra.mxu0 %v1158
    %1262 = vmatprep.subr.bf16.mxu0 %v1163
    %1263 = vmatpush1.bf16.msra.mxu0 %v1162
    %1264 = vmatprep.subr.bf16.mxu0 %v1167
    %1265 = vmatpush1.bf16.msra.mxu0 %v1166
    %1266 = vmatprep.mubr.bf16.mxu0 %v813
    %1267 = vmatmul.mubr.bf16.gmra.mrb[0].mxu0 %v812
    %v1268 = vpop.f32.mrb[0].mxu0
    %v1269 = vadd.f32 %v897, %v1268
    %v1270 = vpop.f32.mrb[0].mxu0
    %v1271 = vadd.f32 %v901, %v1270
    %v1272 = vpop.f32.mrb[0].mxu0
    %v1273 = vadd.f32 %v897, %v1272
    %v1274 = vpop.f32.mrb[0].mxu0
    %v1275 = vadd.f32 %v901, %v1274
    %1276 = vmatprep.mubr.bf16.mxu0 %v815
    %1277 = vmatmul.mubr.bf16.gmra.mrb[0].mxu0 %v814
    %v1278 = vpop.f32.mrb[0].mxu0
    %v1279 = vadd.f32 %v897, %v1278
    %v1280 = vpop.f32.mrb[0].mxu0
    %v1281 = vadd.f32 %v901, %v1280
    %v1282 = vpop.f32.mrb[0].mxu0
    %v1283 = vadd.f32 %v897, %v1282
    %v1284 = vpop.f32.mrb[0].mxu0
    %v1285 = vadd.f32 %v901, %v1284
    %1286 = vmatprep.mubr.bf16.mxu0 %v817
    %1287 = vmatmul.mubr.bf16.gmra.mrb[0].mxu0 %v816
    %v1288 = vpop.f32.mrb[0].mxu0
    %v1289 = vadd.f32 %v897, %v1288
    %v1290 = vpop.f32.mrb[0].mxu0
    %v1291 = vadd.f32 %v901, %v1290
    %v1292 = vpop.f32.mrb[0].mxu0
    %v1293 = vadd.f32 %v897, %v1292
    %v1294 = vpop.f32.mrb[0].mxu0
    %v1295 = vadd.f32 %v901, %v1294
    %1296 = vmatprep.mubr.bf16.mxu0 %v819
    %1297 = vmatmul.mubr.bf16.gmra.mrb[0].mxu0 %v818
    %v1298 = vpop.f32.mrb[0].mxu0
    %v1299 = vadd.f32 %v897, %v1298
    %v1300 = vpop.f32.mrb[0].mxu0
    %v1301 = vadd.f32 %v901, %v1300
    %v1302 = vpop.f32.mrb[0].mxu0
    %v1303 = vadd.f32 %v897, %v1302
    %v1304 = vpop.f32.mrb[0].mxu0
    %v1305 = vadd.f32 %v901, %v1304
    %1306 = vmatprep.mubr.bf16.mxu0 %v821
    %1307 = vmatmul.mubr.bf16.gmra.mrb[0].mxu0 %v820
    %v1308 = vpop.f32.mrb[0].mxu0
    %v1309 = vadd.f32 %v897, %v1308
    %v1310 = vpop.f32.mrb[0].mxu0
    %v1311 = vadd.f32 %v901, %v1310
    %v1312 = vpop.f32.mrb[0].mxu0
    %v1313 = vadd.f32 %v897, %v1312
    %v1314 = vpop.f32.mrb[0].mxu0
    %v1315 = vadd.f32 %v901, %v1314
    %1316 = vmatprep.mubr.bf16.mxu0 %v823
    %1317 = vmatmul.mubr.bf16.gmra.mrb[0].mxu0 %v822
    %v1318 = vpop.f32.mrb[0].mxu0
    %v1319 = vadd.f32 %v897, %v1318
    %v1320 = vpop.f32.mrb[0].mxu0
    %v1321 = vadd.f32 %v901, %v1320
    %v1322 = vpop.f32.mrb[0].mxu0
    %v1323 = vadd.f32 %v897, %v1322
    %v1324 = vpop.f32.mrb[0].mxu0
    %v1325 = vadd.f32 %v901, %v1324
    %1326 = vmatprep.mubr.bf16.mxu0 %v825
    %1327 = vmatmul.mubr.bf16.gmra.mrb[0].mxu0 %v824
    %v1328 = vpop.f32.mrb[0].mxu0
    %v1329 = vadd.f32 %v897, %v1328
    %v1330 = vpop.f32.mrb[0].mxu0
    %v1331 = vadd.f32 %v901, %v1330
    %v1332 = vpop.f32.mrb[0].mxu0
    %v1333 = vadd.f32 %v897, %v1332
    %v1334 = vpop.f32.mrb[0].mxu0
    %v1335 = vadd.f32 %v901, %v1334
    %1336 = vmatprep.mubr.bf16.mxu0 %v827
    %1337 = vmatmul.mubr.bf16.gmra.mrb[0].mxu0 %v826
    %v1338 = vpop.f32.mrb[0].mxu0
    %v1339 = vadd.f32 %v897, %v1338
    %v1340 = vpop.f32.mrb[0].mxu0
    %v1341 = vadd.f32 %v901, %v1340
    %v1342 = vpop.f32.mrb[0].mxu0
    %v1343 = vadd.f32 %v897, %v1342
    %v1344 = vpop.f32.mrb[0].mxu0
    %v1345 = vadd.f32 %v901, %v1344
    %1346 = vdwg.mxu0
    %1347 = vmatprep.subr.bf16.mxu0 %v1109
    %1348 = vmatpush1.bf16.msra.mxu0 %v1108
    %1349 = vmatprep.subr.bf16.mxu0 %v1113
    %1350 = vmatpush1.bf16.msra.mxu0 %v1112
    %1351 = vmatprep.subr.bf16.mxu0 %v1117
    %1352 = vmatpush1.bf16.msra.mxu0 %v1116
    %1353 = vmatprep.subr.bf16.mxu0 %v1121
    %1354 = vmatpush1.bf16.msra.mxu0 %v1120
    %1355 = vmatprep.subr.bf16.mxu0 %v1125
    %1356 = vmatpush1.bf16.msra.mxu0 %v1124
    %1357 = vmatprep.subr.bf16.mxu0 %v1129
    %1358 = vmatpush1.bf16.msra.mxu0 %v1128
    %1359 = vmatprep.subr.bf16.mxu0 %v1133
    %1360 = vmatpush1.bf16.msra.mxu0 %v1132
    %1361 = vmatprep.subr.bf16.mxu0 %v1137
    %1362 = vmatpush1.bf16.msra.mxu0 %v1136
    %1363 = vmatprep.subr.bf16.mxu0 %v1141
    %1364 = vmatpush1.bf16.msra.mxu0 %v1140
    %1365 = vmatprep.subr.bf16.mxu0 %v1145
    %1366 = vmatpush1.bf16.msra.mxu0 %v1144
    %1367 = vmatprep.subr.bf16.mxu0 %v1149
    %1368 = vmatpush1.bf16.msra.mxu0 %v1148
    %1369 = vmatprep.subr.bf16.mxu0 %v1153
    %1370 = vmatpush1.bf16.msra.mxu0 %v1152
    %1371 = vmatprep.subr.bf16.mxu0 %v1157
    %1372 = vmatpush1.bf16.msra.mxu0 %v1156
    %1373 = vmatprep.subr.bf16.mxu0 %v1161
    %1374 = vmatpush1.bf16.msra.mxu0 %v1160
    %1375 = vmatprep.subr.bf16.mxu0 %v1165
    %1376 = vmatpush1.bf16.msra.mxu0 %v1164
    %1377 = vmatprep.subr.bf16.mxu0 %v1169
    %1378 = vmatpush1.bf16.msra.mxu0 %v1168
    %1379 = vmatprep.mubr.bf16.mxu0 %v813
    %1380 = vmatmul.mubr.bf16.gmra.mrb[0].mxu0 %v812
    %v1381 = vpop.f32.mrb[0].mxu0
    %v1382 = vadd.f32 %v905, %v1381
    %v1383 = vpop.f32.mrb[0].mxu0
    %v1384 = vadd.f32 %v909, %v1383
    %v1385 = vpop.f32.mrb[0].mxu0
    %v1386 = vadd.f32 %v905, %v1385
    %v1387 = vpop.f32.mrb[0].mxu0
    %v1388 = vadd.f32 %v909, %v1387
    %1389 = vmatprep.mubr.bf16.mxu0 %v815
    %1390 = vmatmul.mubr.bf16.gmra.mrb[0].mxu0 %v814
    %v1391 = vpop.f32.mrb[0].mxu0
    %v1392 = vadd.f32 %v905, %v1391
    %v1393 = vpop.f32.mrb[0].mxu0
    %v1394 = vadd.f32 %v909, %v1393
    %v1395 = vpop.f32.mrb[0].mxu0
    %v1396 = vadd.f32 %v905, %v1395
    %v1397 = vpop.f32.mrb[0].mxu0
    %v1398 = vadd.f32 %v909, %v1397
    %1399 = vmatprep.mubr.bf16.mxu0 %v817
    %1400 = vmatmul.mubr.bf16.gmra.mrb[0].mxu0 %v816
    %v1401 = vpop.f32.mrb[0].mxu0
    %v1402 = vadd.f32 %v905, %v1401
    %v1403 = vpop.f32.mrb[0].mxu0
    %v1404 = vadd.f32 %v909, %v1403
    %v1405 = vpop.f32.mrb[0].mxu0
    %v1406 = vadd.f32 %v905, %v1405
    %v1407 = vpop.f32.mrb[0].mxu0
    %v1408 = vadd.f32 %v909, %v1407
    %1409 = vmatprep.mubr.bf16.mxu0 %v819
    %1410 = vmatmul.mubr.bf16.gmra.mrb[0].mxu0 %v818
    %v1411 = vpop.f32.mrb[0].mxu0
    %v1412 = vadd.f32 %v905, %v1411
    %v1413 = vpop.f32.mrb[0].mxu0
    %v1414 = vadd.f32 %v909, %v1413
    %v1415 = vpop.f32.mrb[0].mxu0
    %v1416 = vadd.f32 %v905, %v1415
    %v1417 = vpop.f32.mrb[0].mxu0
    %v1418 = vadd.f32 %v909, %v1417
    %1419 = vmatprep.mubr.bf16.mxu0 %v821
    %1420 = vmatmul.mubr.bf16.gmra.mrb[0].mxu0 %v820
    %v1421 = vpop.f32.mrb[0].mxu0
    %v1422 = vadd.f32 %v905, %v1421
    %v1423 = vpop.f32.mrb[0].mxu0
    %v1424 = vadd.f32 %v909, %v1423
    %v1425 = vpop.f32.mrb[0].mxu0
    %v1426 = vadd.f32 %v905, %v1425
    %v1427 = vpop.f32.mrb[0].mxu0
    %v1428 = vadd.f32 %v909, %v1427
    %1429 = vmatprep.mubr.bf16.mxu0 %v823
    %1430 = vmatmul.mubr.bf16.gmra.mrb[0].mxu0 %v822
    %v1431 = vpop.f32.mrb[0].mxu0
    %v1432 = vadd.f32 %v905, %v1431
    %v1433 = vpop.f32.mrb[0].mxu0
    %v1434 = vadd.f32 %v909, %v1433
    %v1435 = vpop.f32.mrb[0].mxu0
    %v1436 = vadd.f32 %v905, %v1435
    %v1437 = vpop.f32.mrb[0].mxu0
    %v1438 = vadd.f32 %v909, %v1437
    %1439 = vmatprep.mubr.bf16.mxu0 %v825
    %1440 = vmatmul.mubr.bf16.gmra.mrb[0].mxu0 %v824
    %v1441 = vpop.f32.mrb[0].mxu0
    %v1442 = vadd.f32 %v905, %v1441
    %v1443 = vpop.f32.mrb[0].mxu0
    %v1444 = vadd.f32 %v909, %v1443
    %v1445 = vpop.f32.mrb[0].mxu0
    %v1446 = vadd.f32 %v905, %v1445
    %v1447 = vpop.f32.mrb[0].mxu0
    %v1448 = vadd.f32 %v909, %v1447
    %1449 = vmatprep.mubr.bf16.mxu0 %v827
    %1450 = vmatmul.mubr.bf16.gmra.mrb[0].mxu0 %v826
    %v1451 = vpop.f32.mrb[0].mxu0
    %v1452 = vadd.f32 %v905, %v1451
    %v1453 = vpop.f32.mrb[0].mxu0
    %v1454 = vadd.f32 %v909, %v1453
    %v1455 = vpop.f32.mrb[0].mxu0
    %v1456 = vadd.f32 %v905, %v1455
    %v1457 = vpop.f32.mrb[0].mxu0
    %v1458 = vadd.f32 %v909, %v1457
    %1459 = vdwg.mxu0
    %v1460 = vmax.f32 %v1269, %v1271
    %v1461 = vmax.f32 %v1460, %v1382
    %v1462 = vmax.f32 %v1461, %v1384
    %1463 = vmax.xlane.f32.xlu0 %v1462
    %v1464 = vpop.xlane.xlu0 %1463
    %v1465 = vmax.f32 %v1273, %v1275
    %v1466 = vmax.f32 %v1465, %v1386
    %v1467 = vmax.f32 %v1466, %v1388
    %1468 = vmax.xlane.f32.xlu0 %v1467
    %v1469 = vpop.xlane.xlu0 %1468
    %v1470 = vmax.f32 %v1279, %v1281
    %v1471 = vmax.f32 %v1470, %v1392
    %v1472 = vmax.f32 %v1471, %v1394
    %1473 = vmax.xlane.f32.xlu0 %v1472
    %v1474 = vpop.xlane.xlu0 %1473
    %v1475 = vmax.f32 %v1283, %v1285
    %v1476 = vmax.f32 %v1475, %v1396
    %v1477 = vmax.f32 %v1476, %v1398
    %1478 = vmax.xlane.f32.xlu0 %v1477
    %v1479 = vpop.xlane.xlu0 %1478
    %v1480 = vmax.f32 %v1289, %v1291
    %v1481 = vmax.f32 %v1480, %v1402
    %v1482 = vmax.f32 %v1481, %v1404
    %1483 = vmax.xlane.f32.xlu0 %v1482
    %v1484 = vpop.xlane.xlu0 %1483
    %v1485 = vmax.f32 %v1293, %v1295
    %v1486 = vmax.f32 %v1485, %v1406
    %v1487 = vmax.f32 %v1486, %v1408
    %1488 = vmax.xlane.f32.xlu0 %v1487
    %v1489 = vpop.xlane.xlu0 %1488
    %v1490 = vmax.f32 %v1299, %v1301
    %v1491 = vmax.f32 %v1490, %v1412
    %v1492 = vmax.f32 %v1491, %v1414
    %1493 = vmax.xlane.f32.xlu0 %v1492
    %v1494 = vpop.xlane.xlu0 %1493
    %v1495 = vmax.f32 %v1303, %v1305
    %v1496 = vmax.f32 %v1495, %v1416
    %v1497 = vmax.f32 %v1496, %v1418
    %1498 = vmax.xlane.f32.xlu0 %v1497
    %v1499 = vpop.xlane.xlu0 %1498
    %v1500 = vmax.f32 %v1309, %v1311
    %v1501 = vmax.f32 %v1500, %v1422
    %v1502 = vmax.f32 %v1501, %v1424
    %1503 = vmax.xlane.f32.xlu0 %v1502
    %v1504 = vpop.xlane.xlu0 %1503
    %v1505 = vmax.f32 %v1313, %v1315
    %v1506 = vmax.f32 %v1505, %v1426
    %v1507 = vmax.f32 %v1506, %v1428
    %1508 = vmax.xlane.f32.xlu0 %v1507
    %v1509 = vpop.xlane.xlu0 %1508
    %v1510 = vmax.f32 %v1319, %v1321
    %v1511 = vmax.f32 %v1510, %v1432
    %v1512 = vmax.f32 %v1511, %v1434
    %1513 = vmax.xlane.f32.xlu0 %v1512
    %v1514 = vpop.xlane.xlu0 %1513
    %v1515 = vmax.f32 %v1323, %v1325
    %v1516 = vmax.f32 %v1515, %v1436
    %v1517 = vmax.f32 %v1516, %v1438
    %1518 = vmax.xlane.f32.xlu0 %v1517
    %v1519 = vpop.xlane.xlu0 %1518
    %v1520 = vmax.f32 %v1329, %v1331
    %v1521 = vmax.f32 %v1520, %v1442
    %v1522 = vmax.f32 %v1521, %v1444
    %1523 = vmax.xlane.f32.xlu0 %v1522
    %v1524 = vpop.xlane.xlu0 %1523
    %v1525 = vmax.f32 %v1333, %v1335
    %v1526 = vmax.f32 %v1525, %v1446
    %v1527 = vmax.f32 %v1526, %v1448
    %1528 = vmax.xlane.f32.xlu0 %v1527
    %v1529 = vpop.xlane.xlu0 %1528
    %v1530 = vmax.f32 %v1339, %v1341
    %v1531 = vmax.f32 %v1530, %v1452
    %v1532 = vmax.f32 %v1531, %v1454
    %1533 = vmax.xlane.f32.xlu0 %v1532
    %v1534 = vpop.xlane.xlu0 %1533
    %v1535 = vmax.f32 %v1343, %v1345
    %v1536 = vmax.f32 %v1535, %v1456
    %v1537 = vmax.f32 %v1536, %v1458
    %1538 = vmax.xlane.f32.xlu0 %v1537
    %v1539 = vpop.xlane.xlu0 %1538
    %v1540 = vsub.f32 %v1269, %v1464
    %v1541 = vsub.f32 %v1271, %v1464
    %v1542 = vsub.f32 %v1382, %v1464
    %v1543 = vsub.f32 %v1384, %v1464
    %v1544 = vsub.f32 %v1273, %v1469
    %v1545 = vsub.f32 %v1275, %v1469
    %v1546 = vsub.f32 %v1386, %v1469
    %v1547 = vsub.f32 %v1388, %v1469
    %v1548 = vsub.f32 %v1279, %v1474
    %v1549 = vsub.f32 %v1281, %v1474
    %v1550 = vsub.f32 %v1392, %v1474
    %v1551 = vsub.f32 %v1394, %v1474
    %v1552 = vsub.f32 %v1283, %v1479
    %v1553 = vsub.f32 %v1285, %v1479
    %v1554 = vsub.f32 %v1396, %v1479
    %v1555 = vsub.f32 %v1398, %v1479
    %v1556 = vsub.f32 %v1289, %v1484
    %v1557 = vsub.f32 %v1291, %v1484
    %v1558 = vsub.f32 %v1402, %v1484
    %v1559 = vsub.f32 %v1404, %v1484
    %v1560 = vsub.f32 %v1293, %v1489
    %v1561 = vsub.f32 %v1295, %v1489
    %v1562 = vsub.f32 %v1406, %v1489
    %v1563 = vsub.f32 %v1408, %v1489
    %v1564 = vsub.f32 %v1299, %v1494
    %v1565 = vsub.f32 %v1301, %v1494
    %v1566 = vsub.f32 %v1412, %v1494
    %v1567 = vsub.f32 %v1414, %v1494
    %v1568 = vsub.f32 %v1303, %v1499
    %v1569 = vsub.f32 %v1305, %v1499
    %v1570 = vsub.f32 %v1416, %v1499
    %v1571 = vsub.f32 %v1418, %v1499
    %v1572 = vsub.f32 %v1309, %v1504
    %v1573 = vsub.f32 %v1311, %v1504
    %v1574 = vsub.f32 %v1422, %v1504
    %v1575 = vsub.f32 %v1424, %v1504
    %v1576 = vsub.f32 %v1313, %v1509
    %v1577 = vsub.f32 %v1315, %v1509
    %v1578 = vsub.f32 %v1426, %v1509
    %v1579 = vsub.f32 %v1428, %v1509
    %v1580 = vsub.f32 %v1319, %v1514
    %v1581 = vsub.f32 %v1321, %v1514
    %v1582 = vsub.f32 %v1432, %v1514
    %v1583 = vsub.f32 %v1434, %v1514
    %v1584 = vsub.f32 %v1323, %v1519
    %v1585 = vsub.f32 %v1325, %v1519
    %v1586 = vsub.f32 %v1436, %v1519
    %v1587 = vsub.f32 %v1438, %v1519
    %v1588 = vsub.f32 %v1329, %v1524
    %v1589 = vsub.f32 %v1331, %v1524
    %v1590 = vsub.f32 %v1442, %v1524
    %v1591 = vsub.f32 %v1444, %v1524
    %v1592 = vsub.f32 %v1333, %v1529
    %v1593 = vsub.f32 %v1335, %v1529
    %v1594 = vsub.f32 %v1446, %v1529
    %v1595 = vsub.f32 %v1448, %v1529
    %v1596 = vsub.f32 %v1339, %v1534
    %v1597 = vsub.f32 %v1341, %v1534
    %v1598 = vsub.f32 %v1452, %v1534
    %v1599 = vsub.f32 %v1454, %v1534
    %v1600 = vsub.f32 %v1343, %v1539
    %v1601 = vsub.f32 %v1345, %v1539
    %v1602 = vsub.f32 %v1456, %v1539
    %v1603 = vsub.f32 %v1458, %v1539
    %v1604 = vmul.f32 %v1540, 1.442695
    %v1605 = vpow.pop %v1604
    %v1606 = vmul.f32 %v1541, 1.442695
    %v1607 = vpow.pop %v1606
    %v1608 = vmul.f32 %v1542, 1.442695
    %v1609 = vpow.pop %v1608
    %v1610 = vmul.f32 %v1543, 1.442695
    %v1611 = vpow.pop %v1610
    %v1612 = vmul.f32 %v1544, 1.442695
    %v1613 = vpow.pop %v1612
    %v1614 = vmul.f32 %v1545, 1.442695
    %v1615 = vpow.pop %v1614
    %v1616 = vmul.f32 %v1546, 1.442695
    %v1617 = vpow.pop %v1616
    %v1618 = vmul.f32 %v1547, 1.442695
    %v1619 = vpow.pop %v1618
    %v1620 = vmul.f32 %v1548, 1.442695
    %v1621 = vpow.pop %v1620
    %v1622 = vmul.f32 %v1549, 1.442695
    %v1623 = vpow.pop %v1622
    %v1624 = vmul.f32 %v1550, 1.442695
    %v1625 = vpow.pop %v1624
    %v1626 = vmul.f32 %v1551, 1.442695
    %v1627 = vpow.pop %v1626
    %v1628 = vmul.f32 %v1552, 1.442695
    %v1629 = vpow.pop %v1628
    %v1630 = vmul.f32 %v1553, 1.442695
    %v1631 = vpow.pop %v1630
    %v1632 = vmul.f32 %v1554, 1.442695
    %v1633 = vpow.pop %v1632
    %v1634 = vmul.f32 %v1555, 1.442695
    %v1635 = vpow.pop %v1634
    %v1636 = vmul.f32 %v1556, 1.442695
    %v1637 = vpow.pop %v1636
    %v1638 = vmul.f32 %v1557, 1.442695
    %v1639 = vpow.pop %v1638
    %v1640 = vmul.f32 %v1558, 1.442695
    %v1641 = vpow.pop %v1640
    %v1642 = vmul.f32 %v1559, 1.442695
    %v1643 = vpow.pop %v1642
    %v1644 = vmul.f32 %v1560, 1.442695
    %v1645 = vpow.pop %v1644
    %v1646 = vmul.f32 %v1561, 1.442695
    %v1647 = vpow.pop %v1646
    %v1648 = vmul.f32 %v1562, 1.442695
    %v1649 = vpow.pop %v1648
    %v1650 = vmul.f32 %v1563, 1.442695
    %v1651 = vpow.pop %v1650
    %v1652 = vmul.f32 %v1564, 1.442695
    %v1653 = vpow.pop %v1652
    %v1654 = vmul.f32 %v1565, 1.442695
    %v1655 = vpow.pop %v1654
    %v1656 = vmul.f32 %v1566, 1.442695
    %v1657 = vpow.pop %v1656
    %v1658 = vmul.f32 %v1567, 1.442695
    %v1659 = vpow.pop %v1658
    %v1660 = vmul.f32 %v1568, 1.442695
    %v1661 = vpow.pop %v1660
    %v1662 = vmul.f32 %v1569, 1.442695
    %v1663 = vpow.pop %v1662
    %v1664 = vmul.f32 %v1570, 1.442695
    %v1665 = vpow.pop %v1664
    %v1666 = vmul.f32 %v1571, 1.442695
    %v1667 = vpow.pop %v1666
    %v1668 = vmul.f32 %v1572, 1.442695
    %v1669 = vpow.pop %v1668
    %v1670 = vmul.f32 %v1573, 1.442695
    %v1671 = vpow.pop %v1670
    %v1672 = vmul.f32 %v1574, 1.442695
    %v1673 = vpow.pop %v1672
    %v1674 = vmul.f32 %v1575, 1.442695
    %v1675 = vpow.pop %v1674
    %v1676 = vmul.f32 %v1576, 1.442695
    %v1677 = vpow.pop %v1676
    %v1678 = vmul.f32 %v1577, 1.442695
    %v1679 = vpow.pop %v1678
    %v1680 = vmul.f32 %v1578, 1.442695
    %v1681 = vpow.pop %v1680
    %v1682 = vmul.f32 %v1579, 1.442695
    %v1683 = vpow.pop %v1682
    %v1684 = vmul.f32 %v1580, 1.442695
    %v1685 = vpow.pop %v1684
    %v1686 = vmul.f32 %v1581, 1.442695
    %v1687 = vpow.pop %v1686
    %v1688 = vmul.f32 %v1582, 1.442695
    %v1689 = vpow.pop %v1688
    %v1690 = vmul.f32 %v1583, 1.442695
    %v1691 = vpow.pop %v1690
    %v1692 = vmul.f32 %v1584, 1.442695
    %v1693 = vpow.pop %v1692
    %v1694 = vmul.f32 %v1585, 1.442695
    %v1695 = vpow.pop %v1694
    %v1696 = vmul.f32 %v1586, 1.442695
    %v1697 = vpow.pop %v1696
    %v1698 = vmul.f32 %v1587, 1.442695
    %v1699 = vpow.pop %v1698
    %v1700 = vmul.f32 %v1588, 1.442695
    %v1701 = vpow.pop %v1700
    %v1702 = vmul.f32 %v1589, 1.442695
    %v1703 = vpow.pop %v1702
    %v1704 = vmul.f32 %v1590, 1.442695
    %v1705 = vpow.pop %v1704
    %v1706 = vmul.f32 %v1591, 1.442695
    %v1707 = vpow.pop %v1706
    %v1708 = vmul.f32 %v1592, 1.442695
    %v1709 = vpow.pop %v1708
    %v1710 = vmul.f32 %v1593, 1.442695
    %v1711 = vpow.pop %v1710
    %v1712 = vmul.f32 %v1594, 1.442695
    %v1713 = vpow.pop %v1712
    %v1714 = vmul.f32 %v1595, 1.442695
    %v1715 = vpow.pop %v1714
    %v1716 = vmul.f32 %v1596, 1.442695
    %v1717 = vpow.pop %v1716
    %v1718 = vmul.f32 %v1597, 1.442695
    %v1719 = vpow.pop %v1718
    %v1720 = vmul.f32 %v1598, 1.442695
    %v1721 = vpow.pop %v1720
    %v1722 = vmul.f32 %v1599, 1.442695
    %v1723 = vpow.pop %v1722
    %v1724 = vmul.f32 %v1600, 1.442695
    %v1725 = vpow.pop %v1724
    %v1726 = vmul.f32 %v1601, 1.442695
    %v1727 = vpow.pop %v1726
    %v1728 = vmul.f32 %v1602, 1.442695
    %v1729 = vpow.pop %v1728
    %v1730 = vmul.f32 %v1603, 1.442695
    %v1731 = vpow.pop %v1730
    %v1732 = vadd.f32 %v1605, %v1607
    %v1733 = vadd.f32 %v1732, %v1609
    %v1734 = vadd.f32 %v1733, %v1611
    %1735 = vadd.xlane.f32.xlu0 %v1734
    %v1736 = vpop.xlane.xlu0 %1735
    %v1737 = vadd.f32 %v1613, %v1615
    %v1738 = vadd.f32 %v1737, %v1617
    %v1739 = vadd.f32 %v1738, %v1619
    %1740 = vadd.xlane.f32.xlu0 %v1739
    %v1741 = vpop.xlane.xlu0 %1740
    %v1742 = vadd.f32 %v1621, %v1623
    %v1743 = vadd.f32 %v1742, %v1625
    %v1744 = vadd.f32 %v1743, %v1627
    %1745 = vadd.xlane.f32.xlu0 %v1744
    %v1746 = vpop.xlane.xlu0 %1745
    %v1747 = vadd.f32 %v1629, %v1631
    %v1748 = vadd.f32 %v1747, %v1633
    %v1749 = vadd.f32 %v1748, %v1635
    %1750 = vadd.xlane.f32.xlu0 %v1749
    %v1751 = vpop.xlane.xlu0 %1750
    %v1752 = vadd.f32 %v1637, %v1639
    %v1753 = vadd.f32 %v1752, %v1641
    %v1754 = vadd.f32 %v1753, %v1643
    %1755 = vadd.xlane.f32.xlu0 %v1754
    %v1756 = vpop.xlane.xlu0 %1755
    %v1757 = vadd.f32 %v1645, %v1647
    %v1758 = vadd.f32 %v1757, %v1649
    %v1759 = vadd.f32 %v1758, %v1651
    %1760 = vadd.xlane.f32.xlu0 %v1759
    %v1761 = vpop.xlane.xlu0 %1760
    %v1762 = vadd.f32 %v1653, %v1655
    %v1763 = vadd.f32 %v1762, %v1657
    %v1764 = vadd.f32 %v1763, %v1659
    %1765 = vadd.xlane.f32.xlu0 %v1764
    %v1766 = vpop.xlane.xlu0 %1765
    %v1767 = vadd.f32 %v1661, %v1663
    %v1768 = vadd.f32 %v1767, %v1665
    %v1769 = vadd.f32 %v1768, %v1667
    %1770 = vadd.xlane.f32.xlu0 %v1769
    %v1771 = vpop.xlane.xlu0 %1770
    %v1772 = vadd.f32 %v1669, %v1671
    %v1773 = vadd.f32 %v1772, %v1673
    %v1774 = vadd.f32 %v1773, %v1675
    %1775 = vadd.xlane.f32.xlu0 %v1774
    %v1776 = vpop.xlane.xlu0 %1775
    %v1777 = vadd.f32 %v1677, %v1679
    %v1778 = vadd.f32 %v1777, %v1681
    %v1779 = vadd.f32 %v1778, %v1683
    %1780 = vadd.xlane.f32.xlu0 %v1779
    %v1781 = vpop.xlane.xlu0 %1780
    %v1782 = vadd.f32 %v1685, %v1687
    %v1783 = vadd.f32 %v1782, %v1689
    %v1784 = vadd.f32 %v1783, %v1691
    %1785 = vadd.xlane.f32.xlu0 %v1784
    %v1786 = vpop.xlane.xlu0 %1785
    %v1787 = vadd.f32 %v1693, %v1695
    %v1788 = vadd.f32 %v1787, %v1697
    %v1789 = vadd.f32 %v1788, %v1699
    %1790 = vadd.xlane.f32.xlu0 %v1789
    %v1791 = vpop.xlane.xlu0 %1790
    %v1792 = vadd.f32 %v1701, %v1703
    %v1793 = vadd.f32 %v1792, %v1705
    %v1794 = vadd.f32 %v1793, %v1707
    %1795 = vadd.xlane.f32.xlu0 %v1794
    %v1796 = vpop.xlane.xlu0 %1795
    %v1797 = vadd.f32 %v1709, %v1711
    %v1798 = vadd.f32 %v1797, %v1713
    %v1799 = vadd.f32 %v1798, %v1715
    %1800 = vadd.xlane.f32.xlu0 %v1799
    %v1801 = vpop.xlane.xlu0 %1800
    %v1802 = vadd.f32 %v1717, %v1719
    %v1803 = vadd.f32 %v1802, %v1721
    %v1804 = vadd.f32 %v1803, %v1723
    %1805 = vadd.xlane.f32.xlu0 %v1804
    %v1806 = vpop.xlane.xlu0 %1805
    %v1807 = vadd.f32 %v1725, %v1727
    %v1808 = vadd.f32 %v1807, %v1729
    %v1809 = vadd.f32 %v1808, %v1731
    %1810 = vadd.xlane.f32.xlu0 %v1809
    %v1811 = vpop.xlane.xlu0 %1810
    %v1812 = vrcp.pop %v1736
    %v1813 = vrcp.pop %v1741
    %v1814 = vrcp.pop %v1746
    %v1815 = vrcp.pop %v1751
    %v1816 = vrcp.pop %v1756
    %v1817 = vrcp.pop %v1761
    %v1818 = vrcp.pop %v1766
    %v1819 = vrcp.pop %v1771
    %v1820 = vrcp.pop %v1776
    %v1821 = vrcp.pop %v1781
    %v1822 = vrcp.pop %v1786
    %v1823 = vrcp.pop %v1791
    %v1824 = vrcp.pop %v1796
    %v1825 = vrcp.pop %v1801
    %v1826 = vrcp.pop %v1806
    %v1827 = vrcp.pop %v1811
    %v1828 = vmul.f32 %v1736, %v1812
    %v1829 = vmul.f32 %v1741, %v1813
    %v1830 = vmul.f32 %v1746, %v1814
    %v1831 = vmul.f32 %v1751, %v1815
    %v1832 = vmul.f32 %v1756, %v1816
    %v1833 = vmul.f32 %v1761, %v1817
    %v1834 = vmul.f32 %v1766, %v1818
    %v1835 = vmul.f32 %v1771, %v1819
    %v1836 = vmul.f32 %v1776, %v1820
    %v1837 = vmul.f32 %v1781, %v1821
    %v1838 = vmul.f32 %v1786, %v1822
    %v1839 = vmul.f32 %v1791, %v1823
    %v1840 = vmul.f32 %v1796, %v1824
    %v1841 = vmul.f32 %v1801, %v1825
    %v1842 = vmul.f32 %v1806, %v1826
    %v1843 = vmul.f32 %v1811, %v1827
    %v1844 = vsub.f32 2.0, %v1828
    %v1845 = vsub.f32 2.0, %v1829
    %v1846 = vsub.f32 2.0, %v1830
    %v1847 = vsub.f32 2.0, %v1831
    %v1848 = vsub.f32 2.0, %v1832
    %v1849 = vsub.f32 2.0, %v1833
    %v1850 = vsub.f32 2.0, %v1834
    %v1851 = vsub.f32 2.0, %v1835
    %v1852 = vsub.f32 2.0, %v1836
    %v1853 = vsub.f32 2.0, %v1837
    %v1854 = vsub.f32 2.0, %v1838
    %v1855 = vsub.f32 2.0, %v1839
    %v1856 = vsub.f32 2.0, %v1840
    %v1857 = vsub.f32 2.0, %v1841
    %v1858 = vsub.f32 2.0, %v1842
    %v1859 = vsub.f32 2.0, %v1843
    %v1860 = vmul.f32 %v1812, %v1844
    %v1861 = vmul.f32 %v1813, %v1845
    %v1862 = vmul.f32 %v1814, %v1846
    %v1863 = vmul.f32 %v1815, %v1847
    %v1864 = vmul.f32 %v1816, %v1848
    %v1865 = vmul.f32 %v1817, %v1849
    %v1866 = vmul.f32 %v1818, %v1850
    %v1867 = vmul.f32 %v1819, %v1851
    %v1868 = vmul.f32 %v1820, %v1852
    %v1869 = vmul.f32 %v1821, %v1853
    %v1870 = vmul.f32 %v1822, %v1854
    %v1871 = vmul.f32 %v1823, %v1855
    %v1872 = vmul.f32 %v1824, %v1856
    %v1873 = vmul.f32 %v1825, %v1857
    %v1874 = vmul.f32 %v1826, %v1858
    %v1875 = vmul.f32 %v1827, %v1859
    %v1876 = vmul.f32 %v1605, %v1860
    %v1877 = vmul.f32 %v1607, %v1860
    %v1878 = vmul.f32 %v1609, %v1860
    %v1879 = vmul.f32 %v1611, %v1860
    %v1880 = vmul.f32 %v1613, %v1861
    %v1881 = vmul.f32 %v1615, %v1861
    %v1882 = vmul.f32 %v1617, %v1861
    %v1883 = vmul.f32 %v1619, %v1861
    %v1884 = vmul.f32 %v1621, %v1862
    %v1885 = vmul.f32 %v1623, %v1862
    %v1886 = vmul.f32 %v1625, %v1862
    %v1887 = vmul.f32 %v1627, %v1862
    %v1888 = vmul.f32 %v1629, %v1863
    %v1889 = vmul.f32 %v1631, %v1863
    %v1890 = vmul.f32 %v1633, %v1863
    %v1891 = vmul.f32 %v1635, %v1863
    %v1892 = vmul.f32 %v1637, %v1864
    %v1893 = vmul.f32 %v1639, %v1864
    %v1894 = vmul.f32 %v1641, %v1864
    %v1895 = vmul.f32 %v1643, %v1864
    %v1896 = vmul.f32 %v1645, %v1865
    %v1897 = vmul.f32 %v1647, %v1865
    %v1898 = vmul.f32 %v1649, %v1865
    %v1899 = vmul.f32 %v1651, %v1865
    %v1900 = vmul.f32 %v1653, %v1866
    %v1901 = vmul.f32 %v1655, %v1866
    %v1902 = vmul.f32 %v1657, %v1866
    %v1903 = vmul.f32 %v1659, %v1866
    %v1904 = vmul.f32 %v1661, %v1867
    %v1905 = vmul.f32 %v1663, %v1867
    %v1906 = vmul.f32 %v1665, %v1867
    %v1907 = vmul.f32 %v1667, %v1867
    %v1908 = vmul.f32 %v1669, %v1868
    %v1909 = vmul.f32 %v1671, %v1868
    %v1910 = vmul.f32 %v1673, %v1868
    %v1911 = vmul.f32 %v1675, %v1868
    %v1912 = vmul.f32 %v1677, %v1869
    %v1913 = vmul.f32 %v1679, %v1869
    %v1914 = vmul.f32 %v1681, %v1869
    %v1915 = vmul.f32 %v1683, %v1869
    %v1916 = vmul.f32 %v1685, %v1870
    %v1917 = vmul.f32 %v1687, %v1870
    %v1918 = vmul.f32 %v1689, %v1870
    %v1919 = vmul.f32 %v1691, %v1870
    %v1920 = vmul.f32 %v1693, %v1871
    %v1921 = vmul.f32 %v1695, %v1871
    %v1922 = vmul.f32 %v1697, %v1871
    %v1923 = vmul.f32 %v1699, %v1871
    %v1924 = vmul.f32 %v1701, %v1872
    %v1925 = vmul.f32 %v1703, %v1872
    %v1926 = vmul.f32 %v1705, %v1872
    %v1927 = vmul.f32 %v1707, %v1872
    %v1928 = vmul.f32 %v1709, %v1873
    %v1929 = vmul.f32 %v1711, %v1873
    %v1930 = vmul.f32 %v1713, %v1873
    %v1931 = vmul.f32 %v1715, %v1873
    %v1932 = vmul.f32 %v1717, %v1874
    %v1933 = vmul.f32 %v1719, %v1874
    %v1934 = vmul.f32 %v1721, %v1874
    %v1935 = vmul.f32 %v1723, %v1874
    %v1936 = vmul.f32 %v1725, %v1875
    %v1937 = vmul.f32 %v1727, %v1875
    %v1938 = vmul.f32 %v1729, %v1875
    %v1939 = vmul.f32 %v1731, %v1875
    %1940 = vst [vmem:[#allocation8] sm:$0xff] %v1876
    %1941 = vst [vmem:[#allocation8 + $0x8] sm:$0xff] %v1877
    %1942 = vst [vmem:[#allocation8 + $0x10] sm:$0xff] %v1878
    %1943 = vst [vmem:[#allocation8 + $0x18] sm:$0xff] %v1879
    %1944 = vst [vmem:[#allocation8 + $0x20] sm:$0xff] %v1880
    %1945 = vst [vmem:[#allocation8 + $0x28] sm:$0xff] %v1881
    %1946 = vst [vmem:[#allocation8 + $0x30] sm:$0xff] %v1882
    %1947 = vst [vmem:[#allocation8 + $0x38] sm:$0xff] %v1883
    %1948 = vst [vmem:[#allocation8 + $0x40] sm:$0xff] %v1884
    %1949 = vst [vmem:[#allocation8 + $0x48] sm:$0xff] %v1885
    %1950 = vst [vmem:[#allocation8 + $0x50] sm:$0xff] %v1886
    %1951 = vst [vmem:[#allocation8 + $0x58] sm:$0xff] %v1887
    %1952 = vst [vmem:[#allocation8 + $0x60] sm:$0xff] %v1888
    %1953 = vst [vmem:[#allocation8 + $0x68] sm:$0xff] %v1889
    %1954 = vst [vmem:[#allocation8 + $0x70] sm:$0xff] %v1890
    %1955 = vst [vmem:[#allocation8 + $0x78] sm:$0xff] %v1891
    %1956 = vst [vmem:[#allocation8 + $0x80] sm:$0xff] %v1892
    %1957 = vst [vmem:[#allocation8 + $0x88] sm:$0xff] %v1893
    %1958 = vst [vmem:[#allocation8 + $0x90] sm:$0xff] %v1894
    %1959 = vst [vmem:[#allocation8 + $0x98] sm:$0xff] %v1895
    %1960 = vst [vmem:[#allocation8 + $0xa0] sm:$0xff] %v1896
    %1961 = vst [vmem:[#allocation8 + $0xa8] sm:$0xff] %v1897
    %1962 = vst [vmem:[#allocation8 + $0xb0] sm:$0xff] %v1898
    %1963 = vst [vmem:[#allocation8 + $0xb8] sm:$0xff] %v1899
    %1964 = vst [vmem:[#allocation8 + $0xc0] sm:$0xff] %v1900
    %1965 = vst [vmem:[#allocation8 + $0xc8] sm:$0xff] %v1901
    %1966 = vst [vmem:[#allocation8 + $0xd0] sm:$0xff] %v1902
    %1967 = vst [vmem:[#allocation8 + $0xd8] sm:$0xff] %v1903
    %1968 = vst [vmem:[#allocation8 + $0xe0] sm:$0xff] %v1904
    %1969 = vst [vmem:[#allocation8 + $0xe8] sm:$0xff] %v1905
    %1970 = vst [vmem:[#allocation8 + $0xf0] sm:$0xff] %v1906
    %1971 = vst [vmem:[#allocation8 + $0xf8] sm:$0xff] %v1907
    %1972 = vst [vmem:[#allocation8 + $0x100] sm:$0xff] %v1908
    %1973 = vst [vmem:[#allocation8 + $0x108] sm:$0xff] %v1909
    %1974 = vst [vmem:[#allocation8 + $0x110] sm:$0xff] %v1910
    %1975 = vst [vmem:[#allocation8 + $0x118] sm:$0xff] %v1911
    %1976 = vst [vmem:[#allocation8 + $0x120] sm:$0xff] %v1912
    %1977 = vst [vmem:[#allocation8 + $0x128] sm:$0xff] %v1913
    %1978 = vst [vmem:[#allocation8 + $0x130] sm:$0xff] %v1914
    %1979 = vst [vmem:[#allocation8 + $0x138] sm:$0xff] %v1915
    %1980 = vst [vmem:[#allocation8 + $0x140] sm:$0xff] %v1916
    %1981 = vst [vmem:[#allocation8 + $0x148] sm:$0xff] %v1917
    %1982 = vst [vmem:[#allocation8 + $0x150] sm:$0xff] %v1918
    %1983 = vst [vmem:[#allocation8 + $0x158] sm:$0xff] %v1919
    %1984 = vst [vmem:[#allocation8 + $0x160] sm:$0xff] %v1920
    %1985 = vst [vmem:[#allocation8 + $0x168] sm:$0xff] %v1921
    %1986 = vst [vmem:[#allocation8 + $0x170] sm:$0xff] %v1922
    %1987 = vst [vmem:[#allocation8 + $0x178] sm:$0xff] %v1923
    %1988 = vst [vmem:[#allocation8 + $0x180] sm:$0xff] %v1924
    %1989 = vst [vmem:[#allocation8 + $0x188] sm:$0xff] %v1925
    %1990 = vst [vmem:[#allocation8 + $0x190] sm:$0xff] %v1926
    %1991 = vst [vmem:[#allocation8 + $0x198] sm:$0xff] %v1927
    %1992 = vst [vmem:[#allocation8 + $0x1a0] sm:$0xff] %v1928
    %1993 = vst [vmem:[#allocation8 + $0x1a8] sm:$0xff] %v1929
    %1994 = vst [vmem:[#allocation8 + $0x1b0] sm:$0xff] %v1930
    %1995 = vst [vmem:[#allocation8 + $0x1b8] sm:$0xff] %v1931
    %1996 = vst [vmem:[#allocation8 + $0x1c0] sm:$0xff] %v1932
    %1997 = vst [vmem:[#allocation8 + $0x1c8] sm:$0xff] %v1933
    %1998 = vst [vmem:[#allocation8 + $0x1d0] sm:$0xff] %v1934
    %1999 = vst [vmem:[#allocation8 + $0x1d8] sm:$0xff] %v1935
    %2000 = vst [vmem:[#allocation8 + $0x1e0] sm:$0xff] %v1936
    %2001 = vst [vmem:[#allocation8 + $0x1e8] sm:$0xff] %v1937
    %2002 = vst [vmem:[#allocation8 + $0x1f0] sm:$0xff] %v1938
    %2003 = vst [vmem:[#allocation8 + $0x1f8] sm:$0xff] %v1939
    // Predicated region
    $region34: #{tpu_custom_call.1} parent=1 // pred_check
      _
    $region35: #{tpu_custom_call.1} parent=1 // pred_check_branch
      %2005 = sbr.rel (0) target = $region37
    $region36: #{tpu_custom_call.1} parent=1 // pred_region
      %s2007 = ssub.s32 8192, 8192
      %2008 = vsyncadd [#allocation4], %s2007
      %s2009 = sshll.u32 [#allocation8], 4
      %s2010 = int_to_ptr.vmem [resolvable:$true] %s2009
      %2015 = dma.vmem_to_hbm [thread:$0]  %s2010, 8192, %s5, [#allocation4], 512, 512, 32
    $region37: #{tpu_custom_call.1} parent=1 // pred_fallthru
      _
    // Predicated region
    $region38: #{tpu_custom_call.1} parent=1 // pred_check
      _
    $region39: #{tpu_custom_call.1} parent=1 // pred_check_branch
      %2017 = sbr.rel (0) target = $region41
    $region40: #{tpu_custom_call.1} parent=1 // pred_region
      %2018 = dma.done [#allocation4], 8192
    $region41: #{tpu_custom_call.1} parent=1 // pred_fallthru
      _
    %2019 = vsyncpa [#allocation3], 1
    %2020 = vsyncpa [#allocation6], 1
    %2021 = vsyncpa [#allocation4], 1

</llo_original>
